<compile_context>
chip_gen: v5e
topology: v5e:2x2
jax: 0.10.0
libtpu: 0.0.40
codegen_flags: <defaults>
</compile_context>

<pallas_src>
import functools
import math

import jax
import jax.numpy as jnp
from jax import lax
from jax.experimental import pallas as pl
from jax.experimental.pallas import tpu as pltpu

_HIGHEST = jax.lax.Precision.HIGHEST


# -----------------------------------------------------------------------------
# Kernel: one grid step = `nb` batch elements x one `th1`-wide query-head tile
# against ALL key/value heads (streamed one key head at a time).
#   q_ref   : (nb, th1*S, hs)
#   k_ref   : (nb, heads*S, hs)
#   v_ref   : (nb, heads*S, hs)
#   ctx_ref : (nb, S, th1*hs)
#   attn_ref: (nb, th1*S, heads*S)    if attn_5d=False (small-S slab layout)
#             (nb, th1, heads, S, S)  if attn_5d=True  (final layout, S%128==0)
# -----------------------------------------------------------------------------
def _attn_kernel(q_ref, k_ref, v_ref, ctx_ref, attn_ref, *,
                 heads, th1, S, hs, scale, attn_5d):
    f32 = jnp.float32
    q = q_ref[...].astype(f32) * scale          # fold 1/sqrt(hs) into Q once
    nb = q.shape[0]

    ctx_acc = jnp.zeros((nb, th1 * S, hs), f32)

    # Streamed softmax: one key head per iteration (unrolled; heads is small).
    for h2 in range(heads):
        k_blk = k_ref[:, h2 * S:(h2 + 1) * S, :].astype(f32)     # (nb, S, hs)
        v_blk = v_ref[:, h2 * S:(h2 + 1) * S, :].astype(f32)     # (nb, S, hs)

        # s[b, m, j] = q[b, m, :] . k_blk[b, j, :]  (batched MXU contraction)
        s_blk = lax.dot_general(q, k_blk, (((2,), (2,)), ((0,), (0,))),
                                precision=_HIGHEST,
                                preferred_element_type=f32)       # (nb, th1*S, S)

        m = jnp.max(s_blk, axis=-1, keepdims=True)
        e = jnp.exp(s_blk - m)
        den = jnp.sum(e, axis=-1, keepdims=True)
        p_blk = e / den                                           # exact softmax

        if attn_5d:
            attn_ref[:, :, h2, :, :] = (
                p_blk.reshape(nb, th1, S, S).astype(attn_ref.dtype))
        else:
            attn_ref[:, :, h2 * S:(h2 + 1) * S] = p_blk.astype(attn_ref.dtype)

        # ctx_acc[b, m, :] += p_blk[b, m, :] @ v_blk[b, :, :]
        ctx_acc = ctx_acc + lax.dot_general(
            p_blk, v_blk, (((2,), (1,)), ((0,), (0,))),
            precision=_HIGHEST, preferred_element_type=f32)       # (nb, th1*S, hs)

    # Re-pack (th1*S, hs) rows -> (S, th1*hs) lanes with per-head static-slice
    # stores (no concat copy).
    for h in range(th1):
        ctx_ref[:, :, h * hs:(h + 1) * hs] = (
            ctx_acc[:, h * S:(h + 1) * S, :].astype(ctx_ref.dtype))


def _pick_tiles(B, heads, S, hs, budget_bytes=20 * 1024 * 1024):
    """Pick (nb, th1): batch-block and query-head-tile sizes.

    Largest tiles that divide B / heads, keep TPU block-layout constraints, and
    fit a conservative per-step VMEM budget (double-buffered I/O + temps)."""
    itemsize = 4  # f32

    def step_bytes(nb, th1):
        q = nb * th1 * S * hs * itemsize
        kv = 2 * nb * heads * S * hs * itemsize
        ctx = nb * S * th1 * hs * itemsize
        attn = nb * th1 * S * heads * S * itemsize
        return 2 * (q + kv + ctx + attn) + attn + 2 * q

    def divisors_desc(n, cap):
        return [d for d in range(min(n, cap), 0, -1) if n % d == 0]

    def th1_ok(th1):
        if th1 == heads:
            return True
        # Tiled h1 blocks: sublane dim th1*S and ctx lane dim th1*hs must tile.
        return (th1 * S) % 8 == 0 and (th1 * hs) % 128 == 0

    valid_th1 = [t for t in divisors_desc(heads, heads) if th1_ok(t)]
    for nb in divisors_desc(B, 8):
        for th1 in valid_th1:
            if step_bytes(nb, th1) <= budget_bytes:
                return nb, th1
    return 1, valid_th1[-1]


def qkv_attention(Q, K, V, valid_lens=None):
    """Pallas TPU implementation of QKVAttention.forward.

    Q, K, V: [B, heads, S, hs].
    valid_lens: accepted for API parity; the PyTorch reference never applies it.
    Returns (context [B, S, heads*hs], attention_weights [B, heads, heads, S, S]).
    """
    del valid_lens  # unused, exactly as in the reference forward
    B, heads, S, hs = Q.shape
    H = heads * hs
    hS = heads * S
    scale = 1.0 / math.sqrt(hs)
    out_dtype = Q.dtype

    nb, th1 = _pick_tiles(B, heads, S, hs)
    grid = (B // nb, heads // th1)

    # Free, contiguous reshapes: flatten heads into the row axis.
    qf = Q.reshape(B, hS, hs)
    kf = K.reshape(B, hS, hs)
    vf = V.reshape(B, hS, hs)

    # Emit attention directly in [B, h1, h2, S, S] when S is lane-dense;
    # otherwise use the (hS, hS) slab + wrapper transpose (small-S fallback,
    # avoids sub-128 masked stores on the dominant attention output).
    attn_5d = (S % 128 == 0)

    in_specs = [
        pl.BlockSpec((nb, th1 * S, hs), lambda bb, hb: (bb, hb, 0)),   # Q tile
        pl.BlockSpec((nb, hS, hs), lambda bb, hb: (bb, 0, 0)),         # K (all heads)
        pl.BlockSpec((nb, hS, hs), lambda bb, hb: (bb, 0, 0)),         # V (all heads)
    ]
    ctx_spec = pl.BlockSpec((nb, S, th1 * hs), lambda bb, hb: (bb, 0, hb))
    if attn_5d:
        attn_shape = jax.ShapeDtypeStruct((B, heads, heads, S, S), out_dtype)
        attn_spec = pl.BlockSpec((nb, th1, heads, S, S),
                                 lambda bb, hb: (bb, hb, 0, 0, 0))
    else:
        attn_shape = jax.ShapeDtypeStruct((B, hS, hS), out_dtype)
        attn_spec = pl.BlockSpec((nb, th1 * S, hS), lambda bb, hb: (bb, hb, 0))

    kernel = functools.partial(_attn_kernel, heads=heads, th1=th1, S=S, hs=hs,
                               scale=scale, attn_5d=attn_5d)

    ctx, attn_out = pl.pallas_call(
        kernel,
        out_shape=(jax.ShapeDtypeStruct((B, S, H), out_dtype), attn_shape),
        grid=grid,
        in_specs=in_specs,
        out_specs=(ctx_spec, attn_spec),
        compiler_params=pltpu.CompilerParams(
            dimension_semantics=("parallel", "parallel"),
            vmem_limit_bytes=48 * 1024 * 1024),
    )(qf, kf, vf)

    if attn_5d:
        attn_w = attn_out
    else:
        # attn_out[b, h1*S+i, h2*S+j] -> [b, h1, h2, i, j]
        attn_w = attn_out.reshape(B, heads, S, heads, S).transpose(0, 1, 3, 2, 4)
    return ctx, attn_w


# -----------------------------------------------------------------------------
# Pure-JAX reference for numerical verification.
# -----------------------------------------------------------------------------
def _ref_qkv_attention(Q, K, V):
    B, heads, S, hs = Q.shape
    scores = jnp.einsum("bhsd,bgtd->bhgst", Q, K,
                        precision=_HIGHEST) / math.sqrt(hs)
    attn = jax.nn.softmax(scores, axis=-1)
    ctx = jnp.einsum("bhgst,bgtd->bhsd", attn, V, precision=_HIGHEST)
    ctx = ctx.transpose(0, 2, 1, 3).reshape(B, S, heads * hs)
    return ctx, attn


if __name__ == "__main__":
    B, heads, S, hs = 2, 4, 8, 8          # hidden = heads*hs = 32
    key = jax.random.PRNGKey(0)
    kq, kk, kv = jax.random.split(key, 3)
    Q = jax.random.normal(kq, (B, heads, S, hs), jnp.float32)
    K = jax.random.normal(kk, (B, heads, S, hs), jnp.float32)
    V = jax.random.normal(kv, (B, heads, S, hs), jnp.float32)
    valid_lens = jnp.full((B, S), S, jnp.int32)   # accepted but unused

    ctx, attn_w = qkv_attention(Q, K, V, valid_lens)
    jax.block_until_ready((ctx, attn_w))

    assert ctx.shape == (B, S, heads * hs)
    assert attn_w.shape == (B, heads, heads, S, S)

    ctx_ref, attn_ref = _ref_qkv_attention(Q, K, V)
    assert bool(jnp.allclose(attn_w, attn_ref, atol=2e-3, rtol=2e-3)), "attn mismatch"
    assert bool(jnp.allclose(ctx, ctx_ref, atol=2e-3, rtol=2e-3)), "context mismatch"

    print("KERNEL_OK")
</pallas_src>

<mosaic_0001>
module attributes {stable_mosaic.version = 11 : i64} {
  func.func @_attn_kernel(%arg0: i32, %arg1: i32, %arg2: memref<2x32x8xf32, #tpu.memory_space<vmem>>, %arg3: memref<2x32x8xf32, #tpu.memory_space<vmem>>, %arg4: memref<2x32x8xf32, #tpu.memory_space<vmem>>, %arg5: memref<2x8x32xf32, #tpu.memory_space<vmem>>, %arg6: memref<2x32x32xf32, #tpu.memory_space<vmem>>) attributes {dimension_semantics = [#tpu.dimension_semantics<parallel>, #tpu.dimension_semantics<parallel>], iteration_bounds = array<i64: 1, 1>, scalar_prefetch = 0 : i64, scratch_operands = 0 : i64, tpu.core_type = #tpu.core_type<tc>, window_params = [{transform_indices = @transform_0, window_bounds = array<i64: 2, 32, 8>}, {transform_indices = @transform_1, window_bounds = array<i64: 2, 32, 8>}, {transform_indices = @transform_2, window_bounds = array<i64: 2, 32, 8>}, {transform_indices = @transform_3, window_bounds = array<i64: 2, 8, 32>}, {transform_indices = @transform_4, window_bounds = array<i64: 2, 32, 32>}]} {
    %c0 = arith.constant 0 : index
    %c0_0 = arith.constant 0 : index
    %c0_1 = arith.constant 0 : index
    %0 = vector.load %arg2[%c0, %c0_0, %c0_1] : memref<2x32x8xf32, #tpu.memory_space<vmem>>, vector<2x32x8xf32>
    %cst = arith.constant 0.353553385 : f32
    %1 = vector.broadcast %cst : f32 to vector<2x32x8xf32>
    %2 = arith.mulf %0, %1 : vector<2x32x8xf32>
    %cst_2 = arith.constant 0.000000e+00 : f32
    %3 = vector.broadcast %cst_2 : f32 to vector<2x32x8xf32>
    %c0_3 = arith.constant 0 : index
    %c0_4 = arith.constant 0 : index
    %c0_5 = arith.constant 0 : index
    %4 = vector.load %arg3[%c0_3, %c0_4, %c0_5] : memref<2x32x8xf32, #tpu.memory_space<vmem>>, vector<2x8x8xf32>
    %c0_6 = arith.constant 0 : index
    %c0_7 = arith.constant 0 : index
    %c0_8 = arith.constant 0 : index
    %5 = vector.load %arg4[%c0_6, %c0_7, %c0_8] : memref<2x32x8xf32, #tpu.memory_space<vmem>>, vector<2x8x8xf32>
    %cst_9 = arith.constant dense<0.000000e+00> : vector<2x32x8xf32>
    %6 = tpu.matmul %2, %4, %cst_9 {dimension_numbers = #tpu.dot_dimension_numbers<[2], [2], [1], [1], [0, 0, 0, 1, 1, 1], [0], [0]>, precision = #tpu.contract_precision<fp32>} : vector<2x32x8xf32>, vector<2x8x8xf32>, vector<2x32x8xf32> -> vector<2x32x8xf32>
    %cst_10 = arith.constant dense<0xFF800000> : vector<2x32xf32>
    %7 = vector.multi_reduction <maximumf>, %6, %cst_10 [2] : vector<2x32x8xf32> to vector<2x32xf32>
    %8 = vector.shape_cast %7 : vector<2x32xf32> to vector<2x32x1xf32>
    %9 = vector.broadcast %8 : vector<2x32x1xf32> to vector<2x32x8xf32>
    %10 = arith.subf %6, %9 : vector<2x32x8xf32>
    %11 = math.exp %10 : vector<2x32x8xf32>
    %cst_11 = arith.constant dense<0.000000e+00> : vector<2x32xf32>
    %12 = vector.multi_reduction <add>, %11, %cst_11 [2] : vector<2x32x8xf32> to vector<2x32xf32>
    %13 = vector.shape_cast %12 : vector<2x32xf32> to vector<2x32x1xf32>
    %14 = vector.broadcast %13 : vector<2x32x1xf32> to vector<2x32x8xf32>
    %15 = arith.divf %11, %14 : vector<2x32x8xf32>
    %c0_12 = arith.constant 0 : index
    %c0_13 = arith.constant 0 : index
    %c0_14 = arith.constant 0 : index
    %16 = vector.load %arg6[%c0_12, %c0_13, %c0_14] : memref<2x32x32xf32, #tpu.memory_space<vmem>>, vector<2x32x8xf32>
    tpu.vector_store %arg6[%c0_12, %c0_13, %c0_14], %15 {strides = array<i32>} : memref<2x32x32xf32, #tpu.memory_space<vmem>>, vector<2x32x8xf32>,
    %cst_15 = arith.constant dense<0.000000e+00> : vector<2x32x8xf32>
    %17 = tpu.matmul %15, %5, %cst_15 {dimension_numbers = #tpu.dot_dimension_numbers<[2], [1], [1], [2], [0, 0, 0, 1, 1, 2], [0], [0]>, precision = #tpu.contract_precision<fp32>} : vector<2x32x8xf32>, vector<2x8x8xf32>, vector<2x32x8xf32> -> vector<2x32x8xf32>
    %18 = arith.addf %3, %17 : vector<2x32x8xf32>
    %c0_16 = arith.constant 0 : index
    %c8 = arith.constant 8 : index
    %c0_17 = arith.constant 0 : index
    %19 = vector.load %arg3[%c0_16, %c8, %c0_17] : memref<2x32x8xf32, #tpu.memory_space<vmem>>, vector<2x8x8xf32>
    %c0_18 = arith.constant 0 : index
    %c8_19 = arith.constant 8 : index
    %c0_20 = arith.constant 0 : index
    %20 = vector.load %arg4[%c0_18, %c8_19, %c0_20] : memref<2x32x8xf32, #tpu.memory_space<vmem>>, vector<2x8x8xf32>
    %cst_21 = arith.constant dense<0.000000e+00> : vector<2x32x8xf32>
    %21 = tpu.matmul %2, %19, %cst_21 {dimension_numbers = #tpu.dot_dimension_numbers<[2], [2], [1], [1], [0, 0, 0, 1, 1, 1], [0], [0]>, precision = #tpu.contract_precision<fp32>} : vector<2x32x8xf32>, vector<2x8x8xf32>, vector<2x32x8xf32> -> vector<2x32x8xf32>
    %cst_22 = arith.constant dense<0xFF800000> : vector<2x32xf32>
    %22 = vector.multi_reduction <maximumf>, %21, %cst_22 [2] : vector<2x32x8xf32> to vector<2x32xf32>
    %23 = vector.shape_cast %22 : vector<2x32xf32> to vector<2x32x1xf32>
    %24 = vector.broadcast %23 : vector<2x32x1xf32> to vector<2x32x8xf32>
    %25 = arith.subf %21, %24 : vector<2x32x8xf32>
    %26 = math.exp %25 : vector<2x32x8xf32>
    %cst_23 = arith.constant dense<0.000000e+00> : vector<2x32xf32>
    %27 = vector.multi_reduction <add>, %26, %cst_23 [2] : vector<2x32x8xf32> to vector<2x32xf32>
    %28 = vector.shape_cast %27 : vector<2x32xf32> to vector<2x32x1xf32>
    %29 = vector.broadcast %28 : vector<2x32x1xf32> to vector<2x32x8xf32>
    %30 = arith.divf %26, %29 : vector<2x32x8xf32>
    %c0_24 = arith.constant 0 : index
    %c0_25 = arith.constant 0 : index
    %c8_26 = arith.constant 8 : index
    %31 = vector.load %arg6[%c0_24, %c0_25, %c8_26] : memref<2x32x32xf32, #tpu.memory_space<vmem>>, vector<2x32x8xf32>
    tpu.vector_store %arg6[%c0_24, %c0_25, %c8_26], %30 {strides = array<i32>} : memref<2x32x32xf32, #tpu.memory_space<vmem>>, vector<2x32x8xf32>,
    %cst_27 = arith.constant dense<0.000000e+00> : vector<2x32x8xf32>
    %32 = tpu.matmul %30, %20, %cst_27 {dimension_numbers = #tpu.dot_dimension_numbers<[2], [1], [1], [2], [0, 0, 0, 1, 1, 2], [0], [0]>, precision = #tpu.contract_precision<fp32>} : vector<2x32x8xf32>, vector<2x8x8xf32>, vector<2x32x8xf32> -> vector<2x32x8xf32>
    %33 = arith.addf %18, %32 : vector<2x32x8xf32>
    %c0_28 = arith.constant 0 : index
    %c16 = arith.constant 16 : index
    %c0_29 = arith.constant 0 : index
    %34 = vector.load %arg3[%c0_28, %c16, %c0_29] : memref<2x32x8xf32, #tpu.memory_space<vmem>>, vector<2x8x8xf32>
    %c0_30 = arith.constant 0 : index
    %c16_31 = arith.constant 16 : index
    %c0_32 = arith.constant 0 : index
    %35 = vector.load %arg4[%c0_30, %c16_31, %c0_32] : memref<2x32x8xf32, #tpu.memory_space<vmem>>, vector<2x8x8xf32>
    %cst_33 = arith.constant dense<0.000000e+00> : vector<2x32x8xf32>
    %36 = tpu.matmul %2, %34, %cst_33 {dimension_numbers = #tpu.dot_dimension_numbers<[2], [2], [1], [1], [0, 0, 0, 1, 1, 1], [0], [0]>, precision = #tpu.contract_precision<fp32>} : vector<2x32x8xf32>, vector<2x8x8xf32>, vector<2x32x8xf32> -> vector<2x32x8xf32>
    %cst_34 = arith.constant dense<0xFF800000> : vector<2x32xf32>
    %37 = vector.multi_reduction <maximumf>, %36, %cst_34 [2] : vector<2x32x8xf32> to vector<2x32xf32>
    %38 = vector.shape_cast %37 : vector<2x32xf32> to vector<2x32x1xf32>
    %39 = vector.broadcast %38 : vector<2x32x1xf32> to vector<2x32x8xf32>
    %40 = arith.subf %36, %39 : vector<2x32x8xf32>
    %41 = math.exp %40 : vector<2x32x8xf32>
    %cst_35 = arith.constant dense<0.000000e+00> : vector<2x32xf32>
    %42 = vector.multi_reduction <add>, %41, %cst_35 [2] : vector<2x32x8xf32> to vector<2x32xf32>
    %43 = vector.shape_cast %42 : vector<2x32xf32> to vector<2x32x1xf32>
    %44 = vector.broadcast %43 : vector<2x32x1xf32> to vector<2x32x8xf32>
    %45 = arith.divf %41, %44 : vector<2x32x8xf32>
    %c0_36 = arith.constant 0 : index
    %c0_37 = arith.constant 0 : index
    %c16_38 = arith.constant 16 : index
    %46 = vector.load %arg6[%c0_36, %c0_37, %c16_38] : memref<2x32x32xf32, #tpu.memory_space<vmem>>, vector<2x32x8xf32>
    tpu.vector_store %arg6[%c0_36, %c0_37, %c16_38], %45 {strides = array<i32>} : memref<2x32x32xf32, #tpu.memory_space<vmem>>, vector<2x32x8xf32>,
    %cst_39 = arith.constant dense<0.000000e+00> : vector<2x32x8xf32>
    %47 = tpu.matmul %45, %35, %cst_39 {dimension_numbers = #tpu.dot_dimension_numbers<[2], [1], [1], [2], [0, 0, 0, 1, 1, 2], [0], [0]>, precision = #tpu.contract_precision<fp32>} : vector<2x32x8xf32>, vector<2x8x8xf32>, vector<2x32x8xf32> -> vector<2x32x8xf32>
    %48 = arith.addf %33, %47 : vector<2x32x8xf32>
    %c0_40 = arith.constant 0 : index
    %c24 = arith.constant 24 : index
    %c0_41 = arith.constant 0 : index
    %49 = vector.load %arg3[%c0_40, %c24, %c0_41] : memref<2x32x8xf32, #tpu.memory_space<vmem>>, vector<2x8x8xf32>
    %c0_42 = arith.constant 0 : index
    %c24_43 = arith.constant 24 : index
    %c0_44 = arith.constant 0 : index
    %50 = vector.load %arg4[%c0_42, %c24_43, %c0_44] : memref<2x32x8xf32, #tpu.memory_space<vmem>>, vector<2x8x8xf32>
    %cst_45 = arith.constant dense<0.000000e+00> : vector<2x32x8xf32>
    %51 = tpu.matmul %2, %49, %cst_45 {dimension_numbers = #tpu.dot_dimension_numbers<[2], [2], [1], [1], [0, 0, 0, 1, 1, 1], [0], [0]>, precision = #tpu.contract_precision<fp32>} : vector<2x32x8xf32>, vector<2x8x8xf32>, vector<2x32x8xf32> -> vector<2x32x8xf32>
    %cst_46 = arith.constant dense<0xFF800000> : vector<2x32xf32>
    %52 = vector.multi_reduction <maximumf>, %51, %cst_46 [2] : vector<2x32x8xf32> to vector<2x32xf32>
    %53 = vector.shape_cast %52 : vector<2x32xf32> to vector<2x32x1xf32>
    %54 = vector.broadcast %53 : vector<2x32x1xf32> to vector<2x32x8xf32>
    %55 = arith.subf %51, %54 : vector<2x32x8xf32>
    %56 = math.exp %55 : vector<2x32x8xf32>
    %cst_47 = arith.constant dense<0.000000e+00> : vector<2x32xf32>
    %57 = vector.multi_reduction <add>, %56, %cst_47 [2] : vector<2x32x8xf32> to vector<2x32xf32>
    %58 = vector.shape_cast %57 : vector<2x32xf32> to vector<2x32x1xf32>
    %59 = vector.broadcast %58 : vector<2x32x1xf32> to vector<2x32x8xf32>
    %60 = arith.divf %56, %59 : vector<2x32x8xf32>
    %c0_48 = arith.constant 0 : index
    %c0_49 = arith.constant 0 : index
    %c24_50 = arith.constant 24 : index
    %61 = vector.load %arg6[%c0_48, %c0_49, %c24_50] : memref<2x32x32xf32, #tpu.memory_space<vmem>>, vector<2x32x8xf32>
    tpu.vector_store %arg6[%c0_48, %c0_49, %c24_50], %60 {strides = array<i32>} : memref<2x32x32xf32, #tpu.memory_space<vmem>>, vector<2x32x8xf32>,
    %cst_51 = arith.constant dense<0.000000e+00> : vector<2x32x8xf32>
    %62 = tpu.matmul %60, %50, %cst_51 {dimension_numbers = #tpu.dot_dimension_numbers<[2], [1], [1], [2], [0, 0, 0, 1, 1, 2], [0], [0]>, precision = #tpu.contract_precision<fp32>} : vector<2x32x8xf32>, vector<2x8x8xf32>, vector<2x32x8xf32> -> vector<2x32x8xf32>
    %63 = arith.addf %48, %62 : vector<2x32x8xf32>
    %64 = vector.extract_strided_slice %63 {offsets = [0, 0, 0], sizes = [2, 8, 8], strides = [1, 1, 1]} : vector<2x32x8xf32> to vector<2x8x8xf32>
    %c0_52 = arith.constant 0 : index
    %c0_53 = arith.constant 0 : index
    %c0_54 = arith.constant 0 : index
    %65 = vector.load %arg5[%c0_52, %c0_53, %c0_54] : memref<2x8x32xf32, #tpu.memory_space<vmem>>, vector<2x8x8xf32>
    tpu.vector_store %arg5[%c0_52, %c0_53, %c0_54], %64 {strides = array<i32>} : memref<2x8x32xf32, #tpu.memory_space<vmem>>, vector<2x8x8xf32>,
    %66 = vector.extract_strided_slice %63 {offsets = [0, 8, 0], sizes = [2, 8, 8], strides = [1, 1, 1]} : vector<2x32x8xf32> to vector<2x8x8xf32>
    %c0_55 = arith.constant 0 : index
    %c0_56 = arith.constant 0 : index
    %c8_57 = arith.constant 8 : index
    %67 = vector.load %arg5[%c0_55, %c0_56, %c8_57] : memref<2x8x32xf32, #tpu.memory_space<vmem>>, vector<2x8x8xf32>
    tpu.vector_store %arg5[%c0_55, %c0_56, %c8_57], %66 {strides = array<i32>} : memref<2x8x32xf32, #tpu.memory_space<vmem>>, vector<2x8x8xf32>,
    %68 = vector.extract_strided_slice %63 {offsets = [0, 16, 0], sizes = [2, 8, 8], strides = [1, 1, 1]} : vector<2x32x8xf32> to vector<2x8x8xf32>
    %c0_58 = arith.constant 0 : index
    %c0_59 = arith.constant 0 : index
    %c16_60 = arith.constant 16 : index
    %69 = vector.load %arg5[%c0_58, %c0_59, %c16_60] : memref<2x8x32xf32, #tpu.memory_space<vmem>>, vector<2x8x8xf32>
    tpu.vector_store %arg5[%c0_58, %c0_59, %c16_60], %68 {strides = array<i32>} : memref<2x8x32xf32, #tpu.memory_space<vmem>>, vector<2x8x8xf32>,
    %70 = vector.extract_strided_slice %63 {offsets = [0, 24, 0], sizes = [2, 8, 8], strides = [1, 1, 1]} : vector<2x32x8xf32> to vector<2x8x8xf32>
    %c0_61 = arith.constant 0 : index
    %c0_62 = arith.constant 0 : index
    %c24_63 = arith.constant 24 : index
    %71 = vector.load %arg5[%c0_61, %c0_62, %c24_63] : memref<2x8x32xf32, #tpu.memory_space<vmem>>, vector<2x8x8xf32>
    tpu.vector_store %arg5[%c0_61, %c0_62, %c24_63], %70 {strides = array<i32>} : memref<2x8x32xf32, #tpu.memory_space<vmem>>, vector<2x8x8xf32>,
    return
  }
  func.func @transform_0(%arg0: i32, %arg1: i32) -> (i32, i32, i32) {
    %c0_i32 = arith.constant 0 : i32
    %c0_i32_0 = arith.constant 0 : i32
    return %arg0, %arg1, %c0_i32 : i32, i32, i32
  }
  func.func @transform_1(%arg0: i32, %arg1: i32) -> (i32, i32, i32) {
    %c0_i32 = arith.constant 0 : i32
    %c0_i32_0 = arith.constant 0 : i32
    %c0_i32_1 = arith.constant 0 : i32
    return %arg0, %c0_i32, %c0_i32_0 : i32, i32, i32
  }
  func.func @transform_2(%arg0: i32, %arg1: i32) -> (i32, i32, i32) {
    %c0_i32 = arith.constant 0 : i32
    %c0_i32_0 = arith.constant 0 : i32
    %c0_i32_1 = arith.constant 0 : i32
    return %arg0, %c0_i32, %c0_i32_0 : i32, i32, i32
  }
  func.func @transform_3(%arg0: i32, %arg1: i32) -> (i32, i32, i32) {
    %c0_i32 = arith.constant 0 : i32
    %c0_i32_0 = arith.constant 0 : i32
    return %arg0, %c0_i32, %arg1 : i32, i32, i32
  }
  func.func @transform_4(%arg0: i32, %arg1: i32) -> (i32, i32, i32) {
    %c0_i32 = arith.constant 0 : i32
    %c0_i32_0 = arith.constant 0 : i32
    return %arg0, %arg1, %c0_i32 : i32, i32, i32
  }
}

</mosaic_0001>

<llo_original>
// kernel: tpu_custom_call.1
$region0: #{tpu_custom_call.1}
  #allocation0 [shape = 'u32[]', space=smem, size = 0x4, offset = 0x4, fixed_abs, tag = 'smem constant byte address 0x4 - core index']
  #allocation1 [shape = 'u32[72,128]{1,0:T(1,128)}', space=vmem, size = 0x9000, scoped, tag = 'internal scratch']
  %s0 = inlined_call_operand.vmem [shape: f32[2,32,8], index: 0, kind: input, shape index: {}]
  %s1 = inlined_call_operand.vmem [shape: f32[2,32,8], index: 1, kind: input, shape index: {}]
  %s2 = inlined_call_operand.vmem [shape: f32[2,32,8], index: 2, kind: input, shape index: {}]
  %s3 = inlined_call_operand.hbm [shape: f32[2,8,32], index: 3, kind: output, shape index: {0}]
  %s4 = inlined_call_operand.hbm [shape: f32[2,32,32], index: 4, kind: output, shape index: {1}]
  %5 = xla_tuple %s3, %s4
  %s6 = sld [smem:[#allocation0]]
  $region30: #{tpu_custom_call.1} parent=0
    _
  %s8 = ssub.s32 1, %s6
  %s9 = scalar_select 0, %s8, %s6
  $region1: #{tpu_custom_call.1} parent=0
    #allocation2 [shape = 'u8[8192]{0}', space=vmem, size = 0x2000, scoped, tag = 'output window, operand 0, single buffered']
    #allocation3 [shape = 's32[1]{0}', space=sflag, size = 0x4, scoped, tag = 'scoped memory for tpu_custom_call.1']
    #allocation4 [shape = 'u8[32768]{0}', space=vmem, size = 0x8000, scoped, tag = 'output window, operand 1, single buffered']
    #allocation5 [shape = 's32[1]{0}', space=sflag, size = 0x4, scoped, tag = 'scoped memory for tpu_custom_call.1']
    %10 = vsyncpa [#allocation3], 0
    %11 = vsyncpa [#allocation5], 0
    // Predicated region
    $region2: #{tpu_custom_call.1} parent=1 // pred_check
      _
    $region3: #{tpu_custom_call.1} parent=1 // pred_check_branch
      %13 = sbr.rel (0) target = $region5
    $region4: #{tpu_custom_call.1} parent=1 // pred_region
      _
    $region5: #{tpu_custom_call.1} parent=1 // pred_fallthru
      _
    // Predicated region
    $region6: #{tpu_custom_call.1} parent=1 // pred_check
      _
    $region7: #{tpu_custom_call.1} parent=1 // pred_check_branch
      %15 = sbr.rel (0) target = $region9
    $region8: #{tpu_custom_call.1} parent=1 // pred_region
      _
    $region9: #{tpu_custom_call.1} parent=1 // pred_fallthru
      _
    // Predicated region
    $region10: #{tpu_custom_call.1} parent=1 // pred_check
      _
    $region11: #{tpu_custom_call.1} parent=1 // pred_check_branch
      %17 = sbr.rel (0) target = $region13
    $region12: #{tpu_custom_call.1} parent=1 // pred_region
      _
    $region13: #{tpu_custom_call.1} parent=1 // pred_fallthru
      _
    %v18 = vld [vmem:[%s0] sm:$0xff]
    %v19 = vld [vmem:[%s0 + $0x8] sm:$0xff]
    %v20 = vld [vmem:[%s0 + $0x10] sm:$0xff]
    %v21 = vld [vmem:[%s0 + $0x18] sm:$0xff]
    %v22 = vld [vmem:[%s0 + $0x20] sm:$0xff]
    %v23 = vld [vmem:[%s0 + $0x28] sm:$0xff]
    %v24 = vld [vmem:[%s0 + $0x30] sm:$0xff]
    %v25 = vld [vmem:[%s0 + $0x38] sm:$0xff]
    %v26 = vmul.f32 %v18, 0.35355338
    %v27 = vmul.f32 %v19, 0.35355338
    %v28 = vmul.f32 %v20, 0.35355338
    %v29 = vmul.f32 %v21, 0.35355338
    %v30 = vmul.f32 %v22, 0.35355338
    %v31 = vmul.f32 %v23, 0.35355338
    %v32 = vmul.f32 %v24, 0.35355338
    %v33 = vmul.f32 %v25, 0.35355338
    %v34 = vld [vmem:[%s1] sm:$0xff]
    %v35 = vld [vmem:[%s1 + $0x20] sm:$0xff]
    %v36 = vld [vmem:[%s2] sm:$0xff]
    %v37 = vld [vmem:[%s2 + $0x20] sm:$0xff]
    %vm38 = vcmask 64512
    %v40 = vsel %vm38, %v26, 0
    %v43 = vsel %vm38, %v27, 0
    %v46 = vsel %vm38, %v28, 0
    %v49 = vsel %vm38, %v29, 0
    %v52 = vsel %vm38, %v34, 0
    %54 = vmatpush.xpose.msra.mxu0 0.0
    %55 = vmatpush.xpose.msra.mxu0 0.0
    %56 = vmatpush.xpose.msra.mxu0 0.0
    %57 = vmatpush.xpose.msra.mxu0 0.0
    %58 = vmatpush.xpose.msra.mxu0 0.0
    %59 = vmatpush.xpose.msra.mxu0 0.0
    %60 = vmatpush.xpose.msra.mxu0 0.0
    %61 = vmatpush.xpose.msra.mxu0 0.0
    %62 = vmatpush.xpose.msra.mxu0 0.0
    %63 = vmatpush.xpose.msra.mxu0 0.0
    %64 = vmatpush.xpose.msra.mxu0 0.0
    %65 = vmatpush.xpose.msra.mxu0 0.0
    %66 = vmatpush.xpose.msra.mxu0 0.0
    %67 = vmatpush.xpose.msra.mxu0 0.0
    %68 = vmatpush.xpose.msra.mxu0 0.0
    %v69 = vand.u32 %v52, 4294901760
    %70 = vmatpush.xpose.msra.mxu0 %v69
    %v71 = vand.u32 %v40, 4294901760
    %v72 = vsub.f32 %v40, %v71
    %v73 = vand.u32 %v72, 4294901760
    %v74 = vsub.f32 %v72, %v73
    %v75 = vand.u32 %v74, 4294901760
    %76 = vmatmul.f32.gmra.mxu0 %v75
    %v77 = vpop.f32.mrf.mxu0
    %v78 = vadd.f32 0.0, %v77
    %v79 = vand.u32 %v43, 4294901760
    %v80 = vsub.f32 %v43, %v79
    %v81 = vand.u32 %v80, 4294901760
    %v82 = vsub.f32 %v80, %v81
    %v83 = vand.u32 %v82, 4294901760
    %84 = vmatmul.f32.gmra.mxu0 %v83
    %v85 = vpop.f32.mrf.mxu0
    %v86 = vadd.f32 0.0, %v85
    %v87 = vand.u32 %v46, 4294901760
    %v88 = vsub.f32 %v46, %v87
    %v89 = vand.u32 %v88, 4294901760
    %v90 = vsub.f32 %v88, %v89
    %v91 = vand.u32 %v90, 4294901760
    %92 = vmatmul.f32.gmra.mxu0 %v91
    %v93 = vpop.f32.mrf.mxu0
    %v94 = vadd.f32 0.0, %v93
    %v95 = vand.u32 %v49, 4294901760
    %v96 = vsub.f32 %v49, %v95
    %v97 = vand.u32 %v96, 4294901760
    %v98 = vsub.f32 %v96, %v97
    %v99 = vand.u32 %v98, 4294901760
    %100 = vmatmul.f32.gmra.mxu0 %v99
    %v101 = vpop.f32.mrf.mxu0
    %v102 = vadd.f32 0.0, %v101
    %103 = vdwg.mxu0
    %104 = vmatpush.xpose.msra.mxu0 0.0
    %105 = vmatpush.xpose.msra.mxu0 0.0
    %106 = vmatpush.xpose.msra.mxu0 0.0
    %107 = vmatpush.xpose.msra.mxu0 0.0
    %108 = vmatpush.xpose.msra.mxu0 0.0
    %109 = vmatpush.xpose.msra.mxu0 0.0
    %110 = vmatpush.xpose.msra.mxu0 0.0
    %111 = vmatpush.xpose.msra.mxu0 0.0
    %112 = vmatpush.xpose.msra.mxu0 0.0
    %113 = vmatpush.xpose.msra.mxu0 0.0
    %114 = vmatpush.xpose.msra.mxu0 0.0
    %115 = vmatpush.xpose.msra.mxu0 0.0
    %116 = vmatpush.xpose.msra.mxu0 0.0
    %117 = vmatpush.xpose.msra.mxu0 0.0
    %118 = vmatpush.xpose.msra.mxu0 0.0
    %v119 = vand.u32 %v52, 4294901760
    %v120 = vsub.f32 %v52, %v119
    %v121 = vand.u32 %v120, 4294901760
    %v122 = vsub.f32 %v120, %v121
    %v123 = vand.u32 %v122, 4294901760
    %124 = vmatpush.xpose.msra.mxu0 %v123
    %v125 = vand.u32 %v40, 4294901760
    %126 = vmatmul.f32.gmra.mxu0 %v125
    %v127 = vpop.f32.mrf.mxu0
    %v128 = vadd.f32 %v78, %v127
    %v129 = vand.u32 %v43, 4294901760
    %130 = vmatmul.f32.gmra.mxu0 %v129
    %v131 = vpop.f32.mrf.mxu0
    %v132 = vadd.f32 %v86, %v131
    %v133 = vand.u32 %v46, 4294901760
    %134 = vmatmul.f32.gmra.mxu0 %v133
    %v135 = vpop.f32.mrf.mxu0
    %v136 = vadd.f32 %v94, %v135
    %v137 = vand.u32 %v49, 4294901760
    %138 = vmatmul.f32.gmra.mxu0 %v137
    %v139 = vpop.f32.mrf.mxu0
    %v140 = vadd.f32 %v102, %v139
    %141 = vdwg.mxu0
    %142 = vmatpush.xpose.msra.mxu0 0.0
    %143 = vmatpush.xpose.msra.mxu0 0.0
    %144 = vmatpush.xpose.msra.mxu0 0.0
    %145 = vmatpush.xpose.msra.mxu0 0.0
    %146 = vmatpush.xpose.msra.mxu0 0.0
    %147 = vmatpush.xpose.msra.mxu0 0.0
    %148 = vmatpush.xpose.msra.mxu0 0.0
    %149 = vmatpush.xpose.msra.mxu0 0.0
    %150 = vmatpush.xpose.msra.mxu0 0.0
    %151 = vmatpush.xpose.msra.mxu0 0.0
    %152 = vmatpush.xpose.msra.mxu0 0.0
    %153 = vmatpush.xpose.msra.mxu0 0.0
    %154 = vmatpush.xpose.msra.mxu0 0.0
    %155 = vmatpush.xpose.msra.mxu0 0.0
    %156 = vmatpush.xpose.msra.mxu0 0.0
    %v157 = vand.u32 %v52, 4294901760
    %v158 = vsub.f32 %v52, %v157
    %159 = vmatpush.xpose.msra.mxu0 %v158
    %v160 = vand.u32 %v40, 4294901760
    %v161 = vsub.f32 %v40, %v160
    %162 = vmatmul.f32.gmra.mxu0 %v161
    %v163 = vpop.f32.mrf.mxu0
    %v164 = vadd.f32 %v128, %v163
    %v165 = vand.u32 %v43, 4294901760
    %v166 = vsub.f32 %v43, %v165
    %167 = vmatmul.f32.gmra.mxu0 %v166
    %v168 = vpop.f32.mrf.mxu0
    %v169 = vadd.f32 %v132, %v168
    %v170 = vand.u32 %v46, 4294901760
    %v171 = vsub.f32 %v46, %v170
    %172 = vmatmul.f32.gmra.mxu0 %v171
    %v173 = vpop.f32.mrf.mxu0
    %v174 = vadd.f32 %v136, %v173
    %v175 = vand.u32 %v49, 4294901760
    %v176 = vsub.f32 %v49, %v175
    %177 = vmatmul.f32.gmra.mxu0 %v176
    %v178 = vpop.f32.mrf.mxu0
    %v179 = vadd.f32 %v140, %v178
    %180 = vdwg.mxu0
    %181 = vmatpush.xpose.msra.mxu0 0.0
    %182 = vmatpush.xpose.msra.mxu0 0.0
    %183 = vmatpush.xpose.msra.mxu0 0.0
    %184 = vmatpush.xpose.msra.mxu0 0.0
    %185 = vmatpush.xpose.msra.mxu0 0.0
    %186 = vmatpush.xpose.msra.mxu0 0.0
    %187 = vmatpush.xpose.msra.mxu0 0.0
    %188 = vmatpush.xpose.msra.mxu0 0.0
    %189 = vmatpush.xpose.msra.mxu0 0.0
    %190 = vmatpush.xpose.msra.mxu0 0.0
    %191 = vmatpush.xpose.msra.mxu0 0.0
    %192 = vmatpush.xpose.msra.mxu0 0.0
    %193 = vmatpush.xpose.msra.mxu0 0.0
    %194 = vmatpush.xpose.msra.mxu0 0.0
    %195 = vmatpush.xpose.msra.mxu0 0.0
    %v196 = vand.u32 %v52, 4294901760
    %197 = vmatpush.xpose.msra.mxu0 %v196
    %v198 = vand.u32 %v40, 4294901760
    %v199 = vsub.f32 %v40, %v198
    %v200 = vand.u32 %v199, 4294901760
    %201 = vmatmul.f32.gmra.mxu0 %v200
    %v202 = vpop.f32.mrf.mxu0
    %v203 = vadd.f32 %v164, %v202
    %v204 = vand.u32 %v43, 4294901760
    %v205 = vsub.f32 %v43, %v204
    %v206 = vand.u32 %v205, 4294901760
    %207 = vmatmul.f32.gmra.mxu0 %v206
    %v208 = vpop.f32.mrf.mxu0
    %v209 = vadd.f32 %v169, %v208
    %v210 = vand.u32 %v46, 4294901760
    %v211 = vsub.f32 %v46, %v210
    %v212 = vand.u32 %v211, 4294901760
    %213 = vmatmul.f32.gmra.mxu0 %v212
    %v214 = vpop.f32.mrf.mxu0
    %v215 = vadd.f32 %v174, %v214
    %v216 = vand.u32 %v49, 4294901760
    %v217 = vsub.f32 %v49, %v216
    %v218 = vand.u32 %v217, 4294901760
    %219 = vmatmul.f32.gmra.mxu0 %v218
    %v220 = vpop.f32.mrf.mxu0
    %v221 = vadd.f32 %v179, %v220
    %222 = vdwg.mxu0
    %223 = vmatpush.xpose.msra.mxu0 0.0
    %224 = vmatpush.xpose.msra.mxu0 0.0
    %225 = vmatpush.xpose.msra.mxu0 0.0
    %226 = vmatpush.xpose.msra.mxu0 0.0
    %227 = vmatpush.xpose.msra.mxu0 0.0
    %228 = vmatpush.xpose.msra.mxu0 0.0
    %229 = vmatpush.xpose.msra.mxu0 0.0
    %230 = vmatpush.xpose.msra.mxu0 0.0
    %231 = vmatpush.xpose.msra.mxu0 0.0
    %232 = vmatpush.xpose.msra.mxu0 0.0
    %233 = vmatpush.xpose.msra.mxu0 0.0
    %234 = vmatpush.xpose.msra.mxu0 0.0
    %235 = vmatpush.xpose.msra.mxu0 0.0
    %236 = vmatpush.xpose.msra.mxu0 0.0
    %237 = vmatpush.xpose.msra.mxu0 0.0
    %v238 = vand.u32 %v52, 4294901760
    %v239 = vsub.f32 %v52, %v238
    %v240 = vand.u32 %v239, 4294901760
    %241 = vmatpush.xpose.msra.mxu0 %v240
    %v242 = vand.u32 %v40, 4294901760
    %243 = vmatmul.f32.gmra.mxu0 %v242
    %v244 = vpop.f32.mrf.mxu0
    %v245 = vadd.f32 %v203, %v244
    %v246 = vand.u32 %v43, 4294901760
    %247 = vmatmul.f32.gmra.mxu0 %v246
    %v248 = vpop.f32.mrf.mxu0
    %v249 = vadd.f32 %v209, %v248
    %v250 = vand.u32 %v46, 4294901760
    %251 = vmatmul.f32.gmra.mxu0 %v250
    %v252 = vpop.f32.mrf.mxu0
    %v253 = vadd.f32 %v215, %v252
    %v254 = vand.u32 %v49, 4294901760
    %255 = vmatmul.f32.gmra.mxu0 %v254
    %v256 = vpop.f32.mrf.mxu0
    %v257 = vadd.f32 %v221, %v256
    %258 = vdwg.mxu0
    %259 = vmatpush.xpose.msra.mxu0 0.0
    %260 = vmatpush.xpose.msra.mxu0 0.0
    %261 = vmatpush.xpose.msra.mxu0 0.0
    %262 = vmatpush.xpose.msra.mxu0 0.0
    %263 = vmatpush.xpose.msra.mxu0 0.0
    %264 = vmatpush.xpose.msra.mxu0 0.0
    %265 = vmatpush.xpose.msra.mxu0 0.0
    %266 = vmatpush.xpose.msra.mxu0 0.0
    %267 = vmatpush.xpose.msra.mxu0 0.0
    %268 = vmatpush.xpose.msra.mxu0 0.0
    %269 = vmatpush.xpose.msra.mxu0 0.0
    %270 = vmatpush.xpose.msra.mxu0 0.0
    %271 = vmatpush.xpose.msra.mxu0 0.0
    %272 = vmatpush.xpose.msra.mxu0 0.0
    %273 = vmatpush.xpose.msra.mxu0 0.0
    %v274 = vand.u32 %v52, 4294901760
    %275 = vmatpush.xpose.msra.mxu0 %v274
    %v276 = vand.u32 %v40, 4294901760
    %277 = vmatmul.f32.gmra.mxu0 %v276
    %v278 = vpop.f32.mrf.mxu0
    %v279 = vadd.f32 %v245, %v278
    %v280 = vand.u32 %v43, 4294901760
    %281 = vmatmul.f32.gmra.mxu0 %v280
    %v282 = vpop.f32.mrf.mxu0
    %v283 = vadd.f32 %v249, %v282
    %v284 = vand.u32 %v46, 4294901760
    %285 = vmatmul.f32.gmra.mxu0 %v284
    %v286 = vpop.f32.mrf.mxu0
    %v287 = vadd.f32 %v253, %v286
    %v288 = vand.u32 %v49, 4294901760
    %289 = vmatmul.f32.gmra.mxu0 %v288
    %v290 = vpop.f32.mrf.mxu0
    %v291 = vadd.f32 %v257, %v290
    %292 = vdwg.mxu0
    %v294 = vsel %vm38, %v30, 0
    %v297 = vsel %vm38, %v31, 0
    %v300 = vsel %vm38, %v32, 0
    %v303 = vsel %vm38, %v33, 0
    %v306 = vsel %vm38, %v35, 0
    %308 = vmatpush.xpose.msra.mxu0 0.0
    %309 = vmatpush.xpose.msra.mxu0 0.0
    %310 = vmatpush.xpose.msra.mxu0 0.0
    %311 = vmatpush.xpose.msra.mxu0 0.0
    %312 = vmatpush.xpose.msra.mxu0 0.0
    %313 = vmatpush.xpose.msra.mxu0 0.0
    %314 = vmatpush.xpose.msra.mxu0 0.0
    %315 = vmatpush.xpose.msra.mxu0 0.0
    %316 = vmatpush.xpose.msra.mxu0 0.0
    %317 = vmatpush.xpose.msra.mxu0 0.0
    %318 = vmatpush.xpose.msra.mxu0 0.0
    %319 = vmatpush.xpose.msra.mxu0 0.0
    %320 = vmatpush.xpose.msra.mxu0 0.0
    %321 = vmatpush.xpose.msra.mxu0 0.0
    %322 = vmatpush.xpose.msra.mxu0 0.0
    %v323 = vand.u32 %v306, 4294901760
    %324 = vmatpush.xpose.msra.mxu0 %v323
    %v325 = vand.u32 %v294, 4294901760
    %v326 = vsub.f32 %v294, %v325
    %v327 = vand.u32 %v326, 4294901760
    %v328 = vsub.f32 %v326, %v327
    %v329 = vand.u32 %v328, 4294901760
    %330 = vmatmul.f32.gmra.mxu0 %v329
    %v331 = vpop.f32.mrf.mxu0
    %v332 = vadd.f32 0.0, %v331
    %v333 = vand.u32 %v297, 4294901760
    %v334 = vsub.f32 %v297, %v333
    %v335 = vand.u32 %v334, 4294901760
    %v336 = vsub.f32 %v334, %v335
    %v337 = vand.u32 %v336, 4294901760
    %338 = vmatmul.f32.gmra.mxu0 %v337
    %v339 = vpop.f32.mrf.mxu0
    %v340 = vadd.f32 0.0, %v339
    %v341 = vand.u32 %v300, 4294901760
    %v342 = vsub.f32 %v300, %v341
    %v343 = vand.u32 %v342, 4294901760
    %v344 = vsub.f32 %v342, %v343
    %v345 = vand.u32 %v344, 4294901760
    %346 = vmatmul.f32.gmra.mxu0 %v345
    %v347 = vpop.f32.mrf.mxu0
    %v348 = vadd.f32 0.0, %v347
    %v349 = vand.u32 %v303, 4294901760
    %v350 = vsub.f32 %v303, %v349
    %v351 = vand.u32 %v350, 4294901760
    %v352 = vsub.f32 %v350, %v351
    %v353 = vand.u32 %v352, 4294901760
    %354 = vmatmul.f32.gmra.mxu0 %v353
    %v355 = vpop.f32.mrf.mxu0
    %v356 = vadd.f32 0.0, %v355
    %357 = vdwg.mxu0
    %358 = vmatpush.xpose.msra.mxu0 0.0
    %359 = vmatpush.xpose.msra.mxu0 0.0
    %360 = vmatpush.xpose.msra.mxu0 0.0
    %361 = vmatpush.xpose.msra.mxu0 0.0
    %362 = vmatpush.xpose.msra.mxu0 0.0
    %363 = vmatpush.xpose.msra.mxu0 0.0
    %364 = vmatpush.xpose.msra.mxu0 0.0
    %365 = vmatpush.xpose.msra.mxu0 0.0
    %366 = vmatpush.xpose.msra.mxu0 0.0
    %367 = vmatpush.xpose.msra.mxu0 0.0
    %368 = vmatpush.xpose.msra.mxu0 0.0
    %369 = vmatpush.xpose.msra.mxu0 0.0
    %370 = vmatpush.xpose.msra.mxu0 0.0
    %371 = vmatpush.xpose.msra.mxu0 0.0
    %372 = vmatpush.xpose.msra.mxu0 0.0
    %v373 = vand.u32 %v306, 4294901760
    %v374 = vsub.f32 %v306, %v373
    %v375 = vand.u32 %v374, 4294901760
    %v376 = vsub.f32 %v374, %v375
    %v377 = vand.u32 %v376, 4294901760
    %378 = vmatpush.xpose.msra.mxu0 %v377
    %v379 = vand.u32 %v294, 4294901760
    %380 = vmatmul.f32.gmra.mxu0 %v379
    %v381 = vpop.f32.mrf.mxu0
    %v382 = vadd.f32 %v332, %v381
    %v383 = vand.u32 %v297, 4294901760
    %384 = vmatmul.f32.gmra.mxu0 %v383
    %v385 = vpop.f32.mrf.mxu0
    %v386 = vadd.f32 %v340, %v385
    %v387 = vand.u32 %v300, 4294901760
    %388 = vmatmul.f32.gmra.mxu0 %v387
    %v389 = vpop.f32.mrf.mxu0
    %v390 = vadd.f32 %v348, %v389
    %v391 = vand.u32 %v303, 4294901760
    %392 = vmatmul.f32.gmra.mxu0 %v391
    %v393 = vpop.f32.mrf.mxu0
    %v394 = vadd.f32 %v356, %v393
    %395 = vdwg.mxu0
    %396 = vmatpush.xpose.msra.mxu0 0.0
    %397 = vmatpush.xpose.msra.mxu0 0.0
    %398 = vmatpush.xpose.msra.mxu0 0.0
    %399 = vmatpush.xpose.msra.mxu0 0.0
    %400 = vmatpush.xpose.msra.mxu0 0.0
    %401 = vmatpush.xpose.msra.mxu0 0.0
    %402 = vmatpush.xpose.msra.mxu0 0.0
    %403 = vmatpush.xpose.msra.mxu0 0.0
    %404 = vmatpush.xpose.msra.mxu0 0.0
    %405 = vmatpush.xpose.msra.mxu0 0.0
    %406 = vmatpush.xpose.msra.mxu0 0.0
    %407 = vmatpush.xpose.msra.mxu0 0.0
    %408 = vmatpush.xpose.msra.mxu0 0.0
    %409 = vmatpush.xpose.msra.mxu0 0.0
    %410 = vmatpush.xpose.msra.mxu0 0.0
    %v411 = vand.u32 %v306, 4294901760
    %v412 = vsub.f32 %v306, %v411
    %413 = vmatpush.xpose.msra.mxu0 %v412
    %v414 = vand.u32 %v294, 4294901760
    %v415 = vsub.f32 %v294, %v414
    %416 = vmatmul.f32.gmra.mxu0 %v415
    %v417 = vpop.f32.mrf.mxu0
    %v418 = vadd.f32 %v382, %v417
    %v419 = vand.u32 %v297, 4294901760
    %v420 = vsub.f32 %v297, %v419
    %421 = vmatmul.f32.gmra.mxu0 %v420
    %v422 = vpop.f32.mrf.mxu0
    %v423 = vadd.f32 %v386, %v422
    %v424 = vand.u32 %v300, 4294901760
    %v425 = vsub.f32 %v300, %v424
    %426 = vmatmul.f32.gmra.mxu0 %v425
    %v427 = vpop.f32.mrf.mxu0
    %v428 = vadd.f32 %v390, %v427
    %v429 = vand.u32 %v303, 4294901760
    %v430 = vsub.f32 %v303, %v429
    %431 = vmatmul.f32.gmra.mxu0 %v430
    %v432 = vpop.f32.mrf.mxu0
    %v433 = vadd.f32 %v394, %v432
    %434 = vdwg.mxu0
    %435 = vmatpush.xpose.msra.mxu0 0.0
    %436 = vmatpush.xpose.msra.mxu0 0.0
    %437 = vmatpush.xpose.msra.mxu0 0.0
    %438 = vmatpush.xpose.msra.mxu0 0.0
    %439 = vmatpush.xpose.msra.mxu0 0.0
    %440 = vmatpush.xpose.msra.mxu0 0.0
    %441 = vmatpush.xpose.msra.mxu0 0.0
    %442 = vmatpush.xpose.msra.mxu0 0.0
    %443 = vmatpush.xpose.msra.mxu0 0.0
    %444 = vmatpush.xpose.msra.mxu0 0.0
    %445 = vmatpush.xpose.msra.mxu0 0.0
    %446 = vmatpush.xpose.msra.mxu0 0.0
    %447 = vmatpush.xpose.msra.mxu0 0.0
    %448 = vmatpush.xpose.msra.mxu0 0.0
    %449 = vmatpush.xpose.msra.mxu0 0.0
    %v450 = vand.u32 %v306, 4294901760
    %451 = vmatpush.xpose.msra.mxu0 %v450
    %v452 = vand.u32 %v294, 4294901760
    %v453 = vsub.f32 %v294, %v452
    %v454 = vand.u32 %v453, 4294901760
    %455 = vmatmul.f32.gmra.mxu0 %v454
    %v456 = vpop.f32.mrf.mxu0
    %v457 = vadd.f32 %v418, %v456
    %v458 = vand.u32 %v297, 4294901760
    %v459 = vsub.f32 %v297, %v458
    %v460 = vand.u32 %v459, 4294901760
    %461 = vmatmul.f32.gmra.mxu0 %v460
    %v462 = vpop.f32.mrf.mxu0
    %v463 = vadd.f32 %v423, %v462
    %v464 = vand.u32 %v300, 4294901760
    %v465 = vsub.f32 %v300, %v464
    %v466 = vand.u32 %v465, 4294901760
    %467 = vmatmul.f32.gmra.mxu0 %v466
    %v468 = vpop.f32.mrf.mxu0
    %v469 = vadd.f32 %v428, %v468
    %v470 = vand.u32 %v303, 4294901760
    %v471 = vsub.f32 %v303, %v470
    %v472 = vand.u32 %v471, 4294901760
    %473 = vmatmul.f32.gmra.mxu0 %v472
    %v474 = vpop.f32.mrf.mxu0
    %v475 = vadd.f32 %v433, %v474
    %476 = vdwg.mxu0
    %477 = vmatpush.xpose.msra.mxu0 0.0
    %478 = vmatpush.xpose.msra.mxu0 0.0
    %479 = vmatpush.xpose.msra.mxu0 0.0
    %480 = vmatpush.xpose.msra.mxu0 0.0
    %481 = vmatpush.xpose.msra.mxu0 0.0
    %482 = vmatpush.xpose.msra.mxu0 0.0
    %483 = vmatpush.xpose.msra.mxu0 0.0
    %484 = vmatpush.xpose.msra.mxu0 0.0
    %485 = vmatpush.xpose.msra.mxu0 0.0
    %486 = vmatpush.xpose.msra.mxu0 0.0
    %487 = vmatpush.xpose.msra.mxu0 0.0
    %488 = vmatpush.xpose.msra.mxu0 0.0
    %489 = vmatpush.xpose.msra.mxu0 0.0
    %490 = vmatpush.xpose.msra.mxu0 0.0
    %491 = vmatpush.xpose.msra.mxu0 0.0
    %v492 = vand.u32 %v306, 4294901760
    %v493 = vsub.f32 %v306, %v492
    %v494 = vand.u32 %v493, 4294901760
    %495 = vmatpush.xpose.msra.mxu0 %v494
    %v496 = vand.u32 %v294, 4294901760
    %497 = vmatmul.f32.gmra.mxu0 %v496
    %v498 = vpop.f32.mrf.mxu0
    %v499 = vadd.f32 %v457, %v498
    %v500 = vand.u32 %v297, 4294901760
    %501 = vmatmul.f32.gmra.mxu0 %v500
    %v502 = vpop.f32.mrf.mxu0
    %v503 = vadd.f32 %v463, %v502
    %v504 = vand.u32 %v300, 4294901760
    %505 = vmatmul.f32.gmra.mxu0 %v504
    %v506 = vpop.f32.mrf.mxu0
    %v507 = vadd.f32 %v469, %v506
    %v508 = vand.u32 %v303, 4294901760
    %509 = vmatmul.f32.gmra.mxu0 %v508
    %v510 = vpop.f32.mrf.mxu0
    %v511 = vadd.f32 %v475, %v510
    %512 = vdwg.mxu0
    %513 = vmatpush.xpose.msra.mxu0 0.0
    %514 = vmatpush.xpose.msra.mxu0 0.0
    %515 = vmatpush.xpose.msra.mxu0 0.0
    %516 = vmatpush.xpose.msra.mxu0 0.0
    %517 = vmatpush.xpose.msra.mxu0 0.0
    %518 = vmatpush.xpose.msra.mxu0 0.0
    %519 = vmatpush.xpose.msra.mxu0 0.0
    %520 = vmatpush.xpose.msra.mxu0 0.0
    %521 = vmatpush.xpose.msra.mxu0 0.0
    %522 = vmatpush.xpose.msra.mxu0 0.0
    %523 = vmatpush.xpose.msra.mxu0 0.0
    %524 = vmatpush.xpose.msra.mxu0 0.0
    %525 = vmatpush.xpose.msra.mxu0 0.0
    %526 = vmatpush.xpose.msra.mxu0 0.0
    %527 = vmatpush.xpose.msra.mxu0 0.0
    %v528 = vand.u32 %v306, 4294901760
    %529 = vmatpush.xpose.msra.mxu0 %v528
    %v530 = vand.u32 %v294, 4294901760
    %531 = vmatmul.f32.gmra.mxu0 %v530
    %v532 = vpop.f32.mrf.mxu0
    %v533 = vadd.f32 %v499, %v532
    %v534 = vand.u32 %v297, 4294901760
    %535 = vmatmul.f32.gmra.mxu0 %v534
    %v536 = vpop.f32.mrf.mxu0
    %v537 = vadd.f32 %v503, %v536
    %v538 = vand.u32 %v300, 4294901760
    %539 = vmatmul.f32.gmra.mxu0 %v538
    %v540 = vpop.f32.mrf.mxu0
    %v541 = vadd.f32 %v507, %v540
    %v542 = vand.u32 %v303, 4294901760
    %543 = vmatmul.f32.gmra.mxu0 %v542
    %v544 = vpop.f32.mrf.mxu0
    %v545 = vadd.f32 %v511, %v544
    %546 = vdwg.mxu0
    %v547 = vsel %vm38, %v279, -inf
    %548 = vmax.xlane.f32.xlu0 %v547
    %v549 = vpop.xlane.xlu0 %548
    %v550 = vsel %vm38, %v283, -inf
    %551 = vmax.xlane.f32.xlu0 %v550
    %v552 = vpop.xlane.xlu0 %551
    %v553 = vsel %vm38, %v287, -inf
    %554 = vmax.xlane.f32.xlu0 %v553
    %v555 = vpop.xlane.xlu0 %554
    %v556 = vsel %vm38, %v291, -inf
    %557 = vmax.xlane.f32.xlu0 %v556
    %v558 = vpop.xlane.xlu0 %557
    %v559 = vsel %vm38, %v533, -inf
    %560 = vmax.xlane.f32.xlu0 %v559
    %v561 = vpop.xlane.xlu0 %560
    %v562 = vsel %vm38, %v537, -inf
    %563 = vmax.xlane.f32.xlu0 %v562
    %v564 = vpop.xlane.xlu0 %563
    %v565 = vsel %vm38, %v541, -inf
    %566 = vmax.xlane.f32.xlu0 %v565
    %v567 = vpop.xlane.xlu0 %566
    %v568 = vsel %vm38, %v545, -inf
    %569 = vmax.xlane.f32.xlu0 %v568
    %v570 = vpop.xlane.xlu0 %569
    %v571 = vsub.f32 %v279, %v549
    %v572 = vsub.f32 %v283, %v552
    %v573 = vsub.f32 %v287, %v555
    %v574 = vsub.f32 %v291, %v558
    %v575 = vsub.f32 %v533, %v561
    %v576 = vsub.f32 %v537, %v564
    %v577 = vsub.f32 %v541, %v567
    %v578 = vsub.f32 %v545, %v570
    %v579 = vmul.f32 %v571, 1.442695
    %v580 = vpow.pop %v579
    %v581 = vmul.f32 %v572, 1.442695
    %v582 = vpow.pop %v581
    %v583 = vmul.f32 %v573, 1.442695
    %v584 = vpow.pop %v583
    %v585 = vmul.f32 %v574, 1.442695
    %v586 = vpow.pop %v585
    %v587 = vmul.f32 %v575, 1.442695
    %v588 = vpow.pop %v587
    %v589 = vmul.f32 %v576, 1.442695
    %v590 = vpow.pop %v589
    %v591 = vmul.f32 %v577, 1.442695
    %v592 = vpow.pop %v591
    %v593 = vmul.f32 %v578, 1.442695
    %v594 = vpow.pop %v593
    %v595 = vsel %vm38, %v580, 0.0
    %596 = vadd.xlane.f32.xlu0 %v595
    %v597 = vpop.xlane.xlu0 %596
    %v598 = vsel %vm38, %v582, 0.0
    %599 = vadd.xlane.f32.xlu0 %v598
    %v600 = vpop.xlane.xlu0 %599
    %v601 = vsel %vm38, %v584, 0.0
    %602 = vadd.xlane.f32.xlu0 %v601
    %v603 = vpop.xlane.xlu0 %602
    %v604 = vsel %vm38, %v586, 0.0
    %605 = vadd.xlane.f32.xlu0 %v604
    %v606 = vpop.xlane.xlu0 %605
    %v607 = vsel %vm38, %v588, 0.0
    %608 = vadd.xlane.f32.xlu0 %v607
    %v609 = vpop.xlane.xlu0 %608
    %v610 = vsel %vm38, %v590, 0.0
    %611 = vadd.xlane.f32.xlu0 %v610
    %v612 = vpop.xlane.xlu0 %611
    %v613 = vsel %vm38, %v592, 0.0
    %614 = vadd.xlane.f32.xlu0 %v613
    %v615 = vpop.xlane.xlu0 %614
    %v616 = vsel %vm38, %v594, 0.0
    %617 = vadd.xlane.f32.xlu0 %v616
    %v618 = vpop.xlane.xlu0 %617
    %v619 = vrcp.pop %v597
    %v620 = vmul.f32 %v597, %v619
    %v621 = vsub.f32 1.0, %v620
    %v622 = vmul.f32 %v619, %v621
    %v623 = vadd.f32 %v619, %v622
    %vm624 = vweird.f32 %v597
    %vm625 = vweird.f32 %v619
    %vm626 = vmor %vm624, %vm625
    %v627 = vsel %vm626, %v619, %v623
    %v628 = vand.u32 2147483647, %v597
    %vm629 = vcmp.eq.f32.partialorder %v628, 8.507059e+37
    %v630 = vand.u32 %v597, 2147483648
    %v631 = vor.u32 1.1754944e-38, %v630
    %v632 = vsel %vm629, %v631, %v627
    %v633 = vmul.f32 %v580, %v632
    %v634 = vrcp.pop %v600
    %v635 = vmul.f32 %v600, %v634
    %v636 = vsub.f32 1.0, %v635
    %v637 = vmul.f32 %v634, %v636
    %v638 = vadd.f32 %v634, %v637
    %vm639 = vweird.f32 %v600
    %vm640 = vweird.f32 %v634
    %vm641 = vmor %vm639, %vm640
    %v642 = vsel %vm641, %v634, %v638
    %v643 = vand.u32 2147483647, %v600
    %vm644 = vcmp.eq.f32.partialorder %v643, 8.507059e+37
    %v645 = vand.u32 %v600, 2147483648
    %v646 = vor.u32 1.1754944e-38, %v645
    %v647 = vsel %vm644, %v646, %v642
    %v648 = vmul.f32 %v582, %v647
    %v649 = vrcp.pop %v603
    %v650 = vmul.f32 %v603, %v649
    %v651 = vsub.f32 1.0, %v650
    %v652 = vmul.f32 %v649, %v651
    %v653 = vadd.f32 %v649, %v652
    %vm654 = vweird.f32 %v603
    %vm655 = vweird.f32 %v649
    %vm656 = vmor %vm654, %vm655
    %v657 = vsel %vm656, %v649, %v653
    %v658 = vand.u32 2147483647, %v603
    %vm659 = vcmp.eq.f32.partialorder %v658, 8.507059e+37
    %v660 = vand.u32 %v603, 2147483648
    %v661 = vor.u32 1.1754944e-38, %v660
    %v662 = vsel %vm659, %v661, %v657
    %v663 = vmul.f32 %v584, %v662
    %v664 = vrcp.pop %v606
    %v665 = vmul.f32 %v606, %v664
    %v666 = vsub.f32 1.0, %v665
    %v667 = vmul.f32 %v664, %v666
    %v668 = vadd.f32 %v664, %v667
    %vm669 = vweird.f32 %v606
    %vm670 = vweird.f32 %v664
    %vm671 = vmor %vm669, %vm670
    %v672 = vsel %vm671, %v664, %v668
    %v673 = vand.u32 2147483647, %v606
    %vm674 = vcmp.eq.f32.partialorder %v673, 8.507059e+37
    %v675 = vand.u32 %v606, 2147483648
    %v676 = vor.u32 1.1754944e-38, %v675
    %v677 = vsel %vm674, %v676, %v672
    %v678 = vmul.f32 %v586, %v677
    %v679 = vrcp.pop %v609
    %v680 = vmul.f32 %v609, %v679
    %v681 = vsub.f32 1.0, %v680
    %v682 = vmul.f32 %v679, %v681
    %v683 = vadd.f32 %v679, %v682
    %vm684 = vweird.f32 %v609
    %vm685 = vweird.f32 %v679
    %vm686 = vmor %vm684, %vm685
    %v687 = vsel %vm686, %v679, %v683
    %v688 = vand.u32 2147483647, %v609
    %vm689 = vcmp.eq.f32.partialorder %v688, 8.507059e+37
    %v690 = vand.u32 %v609, 2147483648
    %v691 = vor.u32 1.1754944e-38, %v690
    %v692 = vsel %vm689, %v691, %v687
    %v693 = vmul.f32 %v588, %v692
    %v694 = vrcp.pop %v612
    %v695 = vmul.f32 %v612, %v694
    %v696 = vsub.f32 1.0, %v695
    %v697 = vmul.f32 %v694, %v696
    %v698 = vadd.f32 %v694, %v697
    %vm699 = vweird.f32 %v612
    %vm700 = vweird.f32 %v694
    %vm701 = vmor %vm699, %vm700
    %v702 = vsel %vm701, %v694, %v698
    %v703 = vand.u32 2147483647, %v612
    %vm704 = vcmp.eq.f32.partialorder %v703, 8.507059e+37
    %v705 = vand.u32 %v612, 2147483648
    %v706 = vor.u32 1.1754944e-38, %v705
    %v707 = vsel %vm704, %v706, %v702
    %v708 = vmul.f32 %v590, %v707
    %v709 = vrcp.pop %v615
    %v710 = vmul.f32 %v615, %v709
    %v711 = vsub.f32 1.0, %v710
    %v712 = vmul.f32 %v709, %v711
    %v713 = vadd.f32 %v709, %v712
    %vm714 = vweird.f32 %v615
    %vm715 = vweird.f32 %v709
    %vm716 = vmor %vm714, %vm715
    %v717 = vsel %vm716, %v709, %v713
    %v718 = vand.u32 2147483647, %v615
    %vm719 = vcmp.eq.f32.partialorder %v718, 8.507059e+37
    %v720 = vand.u32 %v615, 2147483648
    %v721 = vor.u32 1.1754944e-38, %v720
    %v722 = vsel %vm719, %v721, %v717
    %v723 = vmul.f32 %v592, %v722
    %v724 = vrcp.pop %v618
    %v725 = vmul.f32 %v618, %v724
    %v726 = vsub.f32 1.0, %v725
    %v727 = vmul.f32 %v724, %v726
    %v728 = vadd.f32 %v724, %v727
    %vm729 = vweird.f32 %v618
    %vm730 = vweird.f32 %v724
    %vm731 = vmor %vm729, %vm730
    %v732 = vsel %vm731, %v724, %v728
    %v733 = vand.u32 2147483647, %v618
    %vm734 = vcmp.eq.f32.partialorder %v733, 8.507059e+37
    %v735 = vand.u32 %v618, 2147483648
    %v736 = vor.u32 1.1754944e-38, %v735
    %v737 = vsel %vm734, %v736, %v732
    %v738 = vmul.f32 %v594, %v737
    %739 = vst.msk [vmem:[#allocation4] sm:$0xff] %vm38, %v633
    %740 = vst.msk [vmem:[#allocation4 + $0x8] sm:$0xff] %vm38, %v648
    %741 = vst.msk [vmem:[#allocation4 + $0x10] sm:$0xff] %vm38, %v663
    %742 = vst.msk [vmem:[#allocation4 + $0x18] sm:$0xff] %vm38, %v678
    %743 = vst.msk [vmem:[#allocation4 + $0x20] sm:$0xff] %vm38, %v693
    %744 = vst.msk [vmem:[#allocation4 + $0x28] sm:$0xff] %vm38, %v708
    %745 = vst.msk [vmem:[#allocation4 + $0x30] sm:$0xff] %vm38, %v723
    %746 = vst.msk [vmem:[#allocation4 + $0x38] sm:$0xff] %vm38, %v738
    %v747 = vld [vmem:[%s1 + $0x8] sm:$0xff]
    %v748 = vld [vmem:[%s1 + $0x28] sm:$0xff]
    %v749 = vld [vmem:[%s2 + $0x8] sm:$0xff]
    %v750 = vld [vmem:[%s2 + $0x28] sm:$0xff]
    %v752 = vsel %vm38, %v747, 0
    %754 = vmatpush.xpose.msra.mxu0 0.0
    %755 = vmatpush.xpose.msra.mxu0 0.0
    %756 = vmatpush.xpose.msra.mxu0 0.0
    %757 = vmatpush.xpose.msra.mxu0 0.0
    %758 = vmatpush.xpose.msra.mxu0 0.0
    %759 = vmatpush.xpose.msra.mxu0 0.0
    %760 = vmatpush.xpose.msra.mxu0 0.0
    %761 = vmatpush.xpose.msra.mxu0 0.0
    %762 = vmatpush.xpose.msra.mxu0 0.0
    %763 = vmatpush.xpose.msra.mxu0 0.0
    %764 = vmatpush.xpose.msra.mxu0 0.0
    %765 = vmatpush.xpose.msra.mxu0 0.0
    %766 = vmatpush.xpose.msra.mxu0 0.0
    %767 = vmatpush.xpose.msra.mxu0 0.0
    %768 = vmatpush.xpose.msra.mxu0 0.0
    %v769 = vand.u32 %v752, 4294901760
    %770 = vmatpush.xpose.msra.mxu0 %v769
    %v771 = vand.u32 %v40, 4294901760
    %v772 = vsub.f32 %v40, %v771
    %v773 = vand.u32 %v772, 4294901760
    %v774 = vsub.f32 %v772, %v773
    %v775 = vand.u32 %v774, 4294901760
    %776 = vmatmul.f32.gmra.mxu0 %v775
    %v777 = vpop.f32.mrf.mxu0
    %v778 = vadd.f32 0.0, %v777
    %v779 = vand.u32 %v43, 4294901760
    %v780 = vsub.f32 %v43, %v779
    %v781 = vand.u32 %v780, 4294901760
    %v782 = vsub.f32 %v780, %v781
    %v783 = vand.u32 %v782, 4294901760
    %784 = vmatmul.f32.gmra.mxu0 %v783
    %v785 = vpop.f32.mrf.mxu0
    %v786 = vadd.f32 0.0, %v785
    %v787 = vand.u32 %v46, 4294901760
    %v788 = vsub.f32 %v46, %v787
    %v789 = vand.u32 %v788, 4294901760
    %v790 = vsub.f32 %v788, %v789
    %v791 = vand.u32 %v790, 4294901760
    %792 = vmatmul.f32.gmra.mxu0 %v791
    %v793 = vpop.f32.mrf.mxu0
    %v794 = vadd.f32 0.0, %v793
    %v795 = vand.u32 %v49, 4294901760
    %v796 = vsub.f32 %v49, %v795
    %v797 = vand.u32 %v796, 4294901760
    %v798 = vsub.f32 %v796, %v797
    %v799 = vand.u32 %v798, 4294901760
    %800 = vmatmul.f32.gmra.mxu0 %v799
    %v801 = vpop.f32.mrf.mxu0
    %v802 = vadd.f32 0.0, %v801
    %803 = vdwg.mxu0
    %804 = vmatpush.xpose.msra.mxu0 0.0
    %805 = vmatpush.xpose.msra.mxu0 0.0
    %806 = vmatpush.xpose.msra.mxu0 0.0
    %807 = vmatpush.xpose.msra.mxu0 0.0
    %808 = vmatpush.xpose.msra.mxu0 0.0
    %809 = vmatpush.xpose.msra.mxu0 0.0
    %810 = vmatpush.xpose.msra.mxu0 0.0
    %811 = vmatpush.xpose.msra.mxu0 0.0
    %812 = vmatpush.xpose.msra.mxu0 0.0
    %813 = vmatpush.xpose.msra.mxu0 0.0
    %814 = vmatpush.xpose.msra.mxu0 0.0
    %815 = vmatpush.xpose.msra.mxu0 0.0
    %816 = vmatpush.xpose.msra.mxu0 0.0
    %817 = vmatpush.xpose.msra.mxu0 0.0
    %818 = vmatpush.xpose.msra.mxu0 0.0
    %v819 = vand.u32 %v752, 4294901760
    %v820 = vsub.f32 %v752, %v819
    %v821 = vand.u32 %v820, 4294901760
    %v822 = vsub.f32 %v820, %v821
    %v823 = vand.u32 %v822, 4294901760
    %824 = vmatpush.xpose.msra.mxu0 %v823
    %v825 = vand.u32 %v40, 4294901760
    %826 = vmatmul.f32.gmra.mxu0 %v825
    %v827 = vpop.f32.mrf.mxu0
    %v828 = vadd.f32 %v778, %v827
    %v829 = vand.u32 %v43, 4294901760
    %830 = vmatmul.f32.gmra.mxu0 %v829
    %v831 = vpop.f32.mrf.mxu0
    %v832 = vadd.f32 %v786, %v831
    %v833 = vand.u32 %v46, 4294901760
    %834 = vmatmul.f32.gmra.mxu0 %v833
    %v835 = vpop.f32.mrf.mxu0
    %v836 = vadd.f32 %v794, %v835
    %v837 = vand.u32 %v49, 4294901760
    %838 = vmatmul.f32.gmra.mxu0 %v837
    %v839 = vpop.f32.mrf.mxu0
    %v840 = vadd.f32 %v802, %v839
    %841 = vdwg.mxu0
    %842 = vmatpush.xpose.msra.mxu0 0.0
    %843 = vmatpush.xpose.msra.mxu0 0.0
    %844 = vmatpush.xpose.msra.mxu0 0.0
    %845 = vmatpush.xpose.msra.mxu0 0.0
    %846 = vmatpush.xpose.msra.mxu0 0.0
    %847 = vmatpush.xpose.msra.mxu0 0.0
    %848 = vmatpush.xpose.msra.mxu0 0.0
    %849 = vmatpush.xpose.msra.mxu0 0.0
    %850 = vmatpush.xpose.msra.mxu0 0.0
    %851 = vmatpush.xpose.msra.mxu0 0.0
    %852 = vmatpush.xpose.msra.mxu0 0.0
    %853 = vmatpush.xpose.msra.mxu0 0.0
    %854 = vmatpush.xpose.msra.mxu0 0.0
    %855 = vmatpush.xpose.msra.mxu0 0.0
    %856 = vmatpush.xpose.msra.mxu0 0.0
    %v857 = vand.u32 %v752, 4294901760
    %v858 = vsub.f32 %v752, %v857
    %859 = vmatpush.xpose.msra.mxu0 %v858
    %v860 = vand.u32 %v40, 4294901760
    %v861 = vsub.f32 %v40, %v860
    %862 = vmatmul.f32.gmra.mxu0 %v861
    %v863 = vpop.f32.mrf.mxu0
    %v864 = vadd.f32 %v828, %v863
    %v865 = vand.u32 %v43, 4294901760
    %v866 = vsub.f32 %v43, %v865
    %867 = vmatmul.f32.gmra.mxu0 %v866
    %v868 = vpop.f32.mrf.mxu0
    %v869 = vadd.f32 %v832, %v868
    %v870 = vand.u32 %v46, 4294901760
    %v871 = vsub.f32 %v46, %v870
    %872 = vmatmul.f32.gmra.mxu0 %v871
    %v873 = vpop.f32.mrf.mxu0
    %v874 = vadd.f32 %v836, %v873
    %v875 = vand.u32 %v49, 4294901760
    %v876 = vsub.f32 %v49, %v875
    %877 = vmatmul.f32.gmra.mxu0 %v876
    %v878 = vpop.f32.mrf.mxu0
    %v879 = vadd.f32 %v840, %v878
    %880 = vdwg.mxu0
    %881 = vmatpush.xpose.msra.mxu0 0.0
    %882 = vmatpush.xpose.msra.mxu0 0.0
    %883 = vmatpush.xpose.msra.mxu0 0.0
    %884 = vmatpush.xpose.msra.mxu0 0.0
    %885 = vmatpush.xpose.msra.mxu0 0.0
    %886 = vmatpush.xpose.msra.mxu0 0.0
    %887 = vmatpush.xpose.msra.mxu0 0.0
    %888 = vmatpush.xpose.msra.mxu0 0.0
    %889 = vmatpush.xpose.msra.mxu0 0.0
    %890 = vmatpush.xpose.msra.mxu0 0.0
    %891 = vmatpush.xpose.msra.mxu0 0.0
    %892 = vmatpush.xpose.msra.mxu0 0.0
    %893 = vmatpush.xpose.msra.mxu0 0.0
    %894 = vmatpush.xpose.msra.mxu0 0.0
    %895 = vmatpush.xpose.msra.mxu0 0.0
    %v896 = vand.u32 %v752, 4294901760
    %897 = vmatpush.xpose.msra.mxu0 %v896
    %v898 = vand.u32 %v40, 4294901760
    %v899 = vsub.f32 %v40, %v898
    %v900 = vand.u32 %v899, 4294901760
    %901 = vmatmul.f32.gmra.mxu0 %v900
    %v902 = vpop.f32.mrf.mxu0
    %v903 = vadd.f32 %v864, %v902
    %v904 = vand.u32 %v43, 4294901760
    %v905 = vsub.f32 %v43, %v904
    %v906 = vand.u32 %v905, 4294901760
    %907 = vmatmul.f32.gmra.mxu0 %v906
    %v908 = vpop.f32.mrf.mxu0
    %v909 = vadd.f32 %v869, %v908
    %v910 = vand.u32 %v46, 4294901760
    %v911 = vsub.f32 %v46, %v910
    %v912 = vand.u32 %v911, 4294901760
    %913 = vmatmul.f32.gmra.mxu0 %v912
    %v914 = vpop.f32.mrf.mxu0
    %v915 = vadd.f32 %v874, %v914
    %v916 = vand.u32 %v49, 4294901760
    %v917 = vsub.f32 %v49, %v916
    %v918 = vand.u32 %v917, 4294901760
    %919 = vmatmul.f32.gmra.mxu0 %v918
    %v920 = vpop.f32.mrf.mxu0
    %v921 = vadd.f32 %v879, %v920
    %922 = vdwg.mxu0
    %923 = vmatpush.xpose.msra.mxu0 0.0
    %924 = vmatpush.xpose.msra.mxu0 0.0
    %925 = vmatpush.xpose.msra.mxu0 0.0
    %926 = vmatpush.xpose.msra.mxu0 0.0
    %927 = vmatpush.xpose.msra.mxu0 0.0
    %928 = vmatpush.xpose.msra.mxu0 0.0
    %929 = vmatpush.xpose.msra.mxu0 0.0
    %930 = vmatpush.xpose.msra.mxu0 0.0
    %931 = vmatpush.xpose.msra.mxu0 0.0
    %932 = vmatpush.xpose.msra.mxu0 0.0
    %933 = vmatpush.xpose.msra.mxu0 0.0
    %934 = vmatpush.xpose.msra.mxu0 0.0
    %935 = vmatpush.xpose.msra.mxu0 0.0
    %936 = vmatpush.xpose.msra.mxu0 0.0
    %937 = vmatpush.xpose.msra.mxu0 0.0
    %v938 = vand.u32 %v752, 4294901760
    %v939 = vsub.f32 %v752, %v938
    %v940 = vand.u32 %v939, 4294901760
    %941 = vmatpush.xpose.msra.mxu0 %v940
    %v942 = vand.u32 %v40, 4294901760
    %943 = vmatmul.f32.gmra.mxu0 %v942
    %v944 = vpop.f32.mrf.mxu0
    %v945 = vadd.f32 %v903, %v944
    %v946 = vand.u32 %v43, 4294901760
    %947 = vmatmul.f32.gmra.mxu0 %v946
    %v948 = vpop.f32.mrf.mxu0
    %v949 = vadd.f32 %v909, %v948
    %v950 = vand.u32 %v46, 4294901760
    %951 = vmatmul.f32.gmra.mxu0 %v950
    %v952 = vpop.f32.mrf.mxu0
    %v953 = vadd.f32 %v915, %v952
    %v954 = vand.u32 %v49, 4294901760
    %955 = vmatmul.f32.gmra.mxu0 %v954
    %v956 = vpop.f32.mrf.mxu0
    %v957 = vadd.f32 %v921, %v956
    %958 = vdwg.mxu0
    %959 = vmatpush.xpose.msra.mxu0 0.0
    %960 = vmatpush.xpose.msra.mxu0 0.0
    %961 = vmatpush.xpose.msra.mxu0 0.0
    %962 = vmatpush.xpose.msra.mxu0 0.0
    %963 = vmatpush.xpose.msra.mxu0 0.0
    %964 = vmatpush.xpose.msra.mxu0 0.0
    %965 = vmatpush.xpose.msra.mxu0 0.0
    %966 = vmatpush.xpose.msra.mxu0 0.0
    %967 = vmatpush.xpose.msra.mxu0 0.0
    %968 = vmatpush.xpose.msra.mxu0 0.0
    %969 = vmatpush.xpose.msra.mxu0 0.0
    %970 = vmatpush.xpose.msra.mxu0 0.0
    %971 = vmatpush.xpose.msra.mxu0 0.0
    %972 = vmatpush.xpose.msra.mxu0 0.0
    %973 = vmatpush.xpose.msra.mxu0 0.0
    %v974 = vand.u32 %v752, 4294901760
    %975 = vmatpush.xpose.msra.mxu0 %v974
    %v976 = vand.u32 %v40, 4294901760
    %977 = vmatmul.f32.gmra.mxu0 %v976
    %v978 = vpop.f32.mrf.mxu0
    %v979 = vadd.f32 %v945, %v978
    %v980 = vand.u32 %v43, 4294901760
    %981 = vmatmul.f32.gmra.mxu0 %v980
    %v982 = vpop.f32.mrf.mxu0
    %v983 = vadd.f32 %v949, %v982
    %v984 = vand.u32 %v46, 4294901760
    %985 = vmatmul.f32.gmra.mxu0 %v984
    %v986 = vpop.f32.mrf.mxu0
    %v987 = vadd.f32 %v953, %v986
    %v988 = vand.u32 %v49, 4294901760
    %989 = vmatmul.f32.gmra.mxu0 %v988
    %v990 = vpop.f32.mrf.mxu0
    %v991 = vadd.f32 %v957, %v990
    %992 = vdwg.mxu0
    %v994 = vsel %vm38, %v748, 0
    %996 = vmatpush.xpose.msra.mxu0 0.0
    %997 = vmatpush.xpose.msra.mxu0 0.0
    %998 = vmatpush.xpose.msra.mxu0 0.0
    %999 = vmatpush.xpose.msra.mxu0 0.0
    %1000 = vmatpush.xpose.msra.mxu0 0.0
    %1001 = vmatpush.xpose.msra.mxu0 0.0
    %1002 = vmatpush.xpose.msra.mxu0 0.0
    %1003 = vmatpush.xpose.msra.mxu0 0.0
    %1004 = vmatpush.xpose.msra.mxu0 0.0
    %1005 = vmatpush.xpose.msra.mxu0 0.0
    %1006 = vmatpush.xpose.msra.mxu0 0.0
    %1007 = vmatpush.xpose.msra.mxu0 0.0
    %1008 = vmatpush.xpose.msra.mxu0 0.0
    %1009 = vmatpush.xpose.msra.mxu0 0.0
    %1010 = vmatpush.xpose.msra.mxu0 0.0
    %v1011 = vand.u32 %v994, 4294901760
    %1012 = vmatpush.xpose.msra.mxu0 %v1011
    %v1013 = vand.u32 %v294, 4294901760
    %v1014 = vsub.f32 %v294, %v1013
    %v1015 = vand.u32 %v1014, 4294901760
    %v1016 = vsub.f32 %v1014, %v1015
    %v1017 = vand.u32 %v1016, 4294901760
    %1018 = vmatmul.f32.gmra.mxu0 %v1017
    %v1019 = vpop.f32.mrf.mxu0
    %v1020 = vadd.f32 0.0, %v1019
    %v1021 = vand.u32 %v297, 4294901760
    %v1022 = vsub.f32 %v297, %v1021
    %v1023 = vand.u32 %v1022, 4294901760
    %v1024 = vsub.f32 %v1022, %v1023
    %v1025 = vand.u32 %v1024, 4294901760
    %1026 = vmatmul.f32.gmra.mxu0 %v1025
    %v1027 = vpop.f32.mrf.mxu0
    %v1028 = vadd.f32 0.0, %v1027
    %v1029 = vand.u32 %v300, 4294901760
    %v1030 = vsub.f32 %v300, %v1029
    %v1031 = vand.u32 %v1030, 4294901760
    %v1032 = vsub.f32 %v1030, %v1031
    %v1033 = vand.u32 %v1032, 4294901760
    %1034 = vmatmul.f32.gmra.mxu0 %v1033
    %v1035 = vpop.f32.mrf.mxu0
    %v1036 = vadd.f32 0.0, %v1035
    %v1037 = vand.u32 %v303, 4294901760
    %v1038 = vsub.f32 %v303, %v1037
    %v1039 = vand.u32 %v1038, 4294901760
    %v1040 = vsub.f32 %v1038, %v1039
    %v1041 = vand.u32 %v1040, 4294901760
    %1042 = vmatmul.f32.gmra.mxu0 %v1041
    %v1043 = vpop.f32.mrf.mxu0
    %v1044 = vadd.f32 0.0, %v1043
    %1045 = vdwg.mxu0
    %1046 = vmatpush.xpose.msra.mxu0 0.0
    %1047 = vmatpush.xpose.msra.mxu0 0.0
    %1048 = vmatpush.xpose.msra.mxu0 0.0
    %1049 = vmatpush.xpose.msra.mxu0 0.0
    %1050 = vmatpush.xpose.msra.mxu0 0.0
    %1051 = vmatpush.xpose.msra.mxu0 0.0
    %1052 = vmatpush.xpose.msra.mxu0 0.0
    %1053 = vmatpush.xpose.msra.mxu0 0.0
    %1054 = vmatpush.xpose.msra.mxu0 0.0
    %1055 = vmatpush.xpose.msra.mxu0 0.0
    %1056 = vmatpush.xpose.msra.mxu0 0.0
    %1057 = vmatpush.xpose.msra.mxu0 0.0
    %1058 = vmatpush.xpose.msra.mxu0 0.0
    %1059 = vmatpush.xpose.msra.mxu0 0.0
    %1060 = vmatpush.xpose.msra.mxu0 0.0
    %v1061 = vand.u32 %v994, 4294901760
    %v1062 = vsub.f32 %v994, %v1061
    %v1063 = vand.u32 %v1062, 4294901760
    %v1064 = vsub.f32 %v1062, %v1063
    %v1065 = vand.u32 %v1064, 4294901760
    %1066 = vmatpush.xpose.msra.mxu0 %v1065
    %v1067 = vand.u32 %v294, 4294901760
    %1068 = vmatmul.f32.gmra.mxu0 %v1067
    %v1069 = vpop.f32.mrf.mxu0
    %v1070 = vadd.f32 %v1020, %v1069
    %v1071 = vand.u32 %v297, 4294901760
    %1072 = vmatmul.f32.gmra.mxu0 %v1071
    %v1073 = vpop.f32.mrf.mxu0
    %v1074 = vadd.f32 %v1028, %v1073
    %v1075 = vand.u32 %v300, 4294901760
    %1076 = vmatmul.f32.gmra.mxu0 %v1075
    %v1077 = vpop.f32.mrf.mxu0
    %v1078 = vadd.f32 %v1036, %v1077
    %v1079 = vand.u32 %v303, 4294901760
    %1080 = vmatmul.f32.gmra.mxu0 %v1079
    %v1081 = vpop.f32.mrf.mxu0
    %v1082 = vadd.f32 %v1044, %v1081
    %1083 = vdwg.mxu0
    %1084 = vmatpush.xpose.msra.mxu0 0.0
    %1085 = vmatpush.xpose.msra.mxu0 0.0
    %1086 = vmatpush.xpose.msra.mxu0 0.0
    %1087 = vmatpush.xpose.msra.mxu0 0.0
    %1088 = vmatpush.xpose.msra.mxu0 0.0
    %1089 = vmatpush.xpose.msra.mxu0 0.0
    %1090 = vmatpush.xpose.msra.mxu0 0.0
    %1091 = vmatpush.xpose.msra.mxu0 0.0
    %1092 = vmatpush.xpose.msra.mxu0 0.0
    %1093 = vmatpush.xpose.msra.mxu0 0.0
    %1094 = vmatpush.xpose.msra.mxu0 0.0
    %1095 = vmatpush.xpose.msra.mxu0 0.0
    %1096 = vmatpush.xpose.msra.mxu0 0.0
    %1097 = vmatpush.xpose.msra.mxu0 0.0
    %1098 = vmatpush.xpose.msra.mxu0 0.0
    %v1099 = vand.u32 %v994, 4294901760
    %v1100 = vsub.f32 %v994, %v1099
    %1101 = vmatpush.xpose.msra.mxu0 %v1100
    %v1102 = vand.u32 %v294, 4294901760
    %v1103 = vsub.f32 %v294, %v1102
    %1104 = vmatmul.f32.gmra.mxu0 %v1103
    %v1105 = vpop.f32.mrf.mxu0
    %v1106 = vadd.f32 %v1070, %v1105
    %v1107 = vand.u32 %v297, 4294901760
    %v1108 = vsub.f32 %v297, %v1107
    %1109 = vmatmul.f32.gmra.mxu0 %v1108
    %v1110 = vpop.f32.mrf.mxu0
    %v1111 = vadd.f32 %v1074, %v1110
    %v1112 = vand.u32 %v300, 4294901760
    %v1113 = vsub.f32 %v300, %v1112
    %1114 = vmatmul.f32.gmra.mxu0 %v1113
    %v1115 = vpop.f32.mrf.mxu0
    %v1116 = vadd.f32 %v1078, %v1115
    %v1117 = vand.u32 %v303, 4294901760
    %v1118 = vsub.f32 %v303, %v1117
    %1119 = vmatmul.f32.gmra.mxu0 %v1118
    %v1120 = vpop.f32.mrf.mxu0
    %v1121 = vadd.f32 %v1082, %v1120
    %1122 = vdwg.mxu0
    %1123 = vmatpush.xpose.msra.mxu0 0.0
    %1124 = vmatpush.xpose.msra.mxu0 0.0
    %1125 = vmatpush.xpose.msra.mxu0 0.0
    %1126 = vmatpush.xpose.msra.mxu0 0.0
    %1127 = vmatpush.xpose.msra.mxu0 0.0
    %1128 = vmatpush.xpose.msra.mxu0 0.0
    %1129 = vmatpush.xpose.msra.mxu0 0.0
    %1130 = vmatpush.xpose.msra.mxu0 0.0
    %1131 = vmatpush.xpose.msra.mxu0 0.0
    %1132 = vmatpush.xpose.msra.mxu0 0.0
    %1133 = vmatpush.xpose.msra.mxu0 0.0
    %1134 = vmatpush.xpose.msra.mxu0 0.0
    %1135 = vmatpush.xpose.msra.mxu0 0.0
    %1136 = vmatpush.xpose.msra.mxu0 0.0
    %1137 = vmatpush.xpose.msra.mxu0 0.0
    %v1138 = vand.u32 %v994, 4294901760
    %1139 = vmatpush.xpose.msra.mxu0 %v1138
    %v1140 = vand.u32 %v294, 4294901760
    %v1141 = vsub.f32 %v294, %v1140
    %v1142 = vand.u32 %v1141, 4294901760
    %1143 = vmatmul.f32.gmra.mxu0 %v1142
    %v1144 = vpop.f32.mrf.mxu0
    %v1145 = vadd.f32 %v1106, %v1144
    %v1146 = vand.u32 %v297, 4294901760
    %v1147 = vsub.f32 %v297, %v1146
    %v1148 = vand.u32 %v1147, 4294901760
    %1149 = vmatmul.f32.gmra.mxu0 %v1148
    %v1150 = vpop.f32.mrf.mxu0
    %v1151 = vadd.f32 %v1111, %v1150
    %v1152 = vand.u32 %v300, 4294901760
    %v1153 = vsub.f32 %v300, %v1152
    %v1154 = vand.u32 %v1153, 4294901760
    %1155 = vmatmul.f32.gmra.mxu0 %v1154
    %v1156 = vpop.f32.mrf.mxu0
    %v1157 = vadd.f32 %v1116, %v1156
    %v1158 = vand.u32 %v303, 4294901760
    %v1159 = vsub.f32 %v303, %v1158
    %v1160 = vand.u32 %v1159, 4294901760
    %1161 = vmatmul.f32.gmra.mxu0 %v1160
    %v1162 = vpop.f32.mrf.mxu0
    %v1163 = vadd.f32 %v1121, %v1162
    %1164 = vdwg.mxu0
    %1165 = vmatpush.xpose.msra.mxu0 0.0
    %1166 = vmatpush.xpose.msra.mxu0 0.0
    %1167 = vmatpush.xpose.msra.mxu0 0.0
    %1168 = vmatpush.xpose.msra.mxu0 0.0
    %1169 = vmatpush.xpose.msra.mxu0 0.0
    %1170 = vmatpush.xpose.msra.mxu0 0.0
    %1171 = vmatpush.xpose.msra.mxu0 0.0
    %1172 = vmatpush.xpose.msra.mxu0 0.0
    %1173 = vmatpush.xpose.msra.mxu0 0.0
    %1174 = vmatpush.xpose.msra.mxu0 0.0
    %1175 = vmatpush.xpose.msra.mxu0 0.0
    %1176 = vmatpush.xpose.msra.mxu0 0.0
    %1177 = vmatpush.xpose.msra.mxu0 0.0
    %1178 = vmatpush.xpose.msra.mxu0 0.0
    %1179 = vmatpush.xpose.msra.mxu0 0.0
    %v1180 = vand.u32 %v994, 4294901760
    %v1181 = vsub.f32 %v994, %v1180
    %v1182 = vand.u32 %v1181, 4294901760
    %1183 = vmatpush.xpose.msra.mxu0 %v1182
    %v1184 = vand.u32 %v294, 4294901760
    %1185 = vmatmul.f32.gmra.mxu0 %v1184
    %v1186 = vpop.f32.mrf.mxu0
    %v1187 = vadd.f32 %v1145, %v1186
    %v1188 = vand.u32 %v297, 4294901760
    %1189 = vmatmul.f32.gmra.mxu0 %v1188
    %v1190 = vpop.f32.mrf.mxu0
    %v1191 = vadd.f32 %v1151, %v1190
    %v1192 = vand.u32 %v300, 4294901760
    %1193 = vmatmul.f32.gmra.mxu0 %v1192
    %v1194 = vpop.f32.mrf.mxu0
    %v1195 = vadd.f32 %v1157, %v1194
    %v1196 = vand.u32 %v303, 4294901760
    %1197 = vmatmul.f32.gmra.mxu0 %v1196
    %v1198 = vpop.f32.mrf.mxu0
    %v1199 = vadd.f32 %v1163, %v1198
    %1200 = vdwg.mxu0
    %1201 = vmatpush.xpose.msra.mxu0 0.0
    %1202 = vmatpush.xpose.msra.mxu0 0.0
    %1203 = vmatpush.xpose.msra.mxu0 0.0
    %1204 = vmatpush.xpose.msra.mxu0 0.0
    %1205 = vmatpush.xpose.msra.mxu0 0.0
    %1206 = vmatpush.xpose.msra.mxu0 0.0
    %1207 = vmatpush.xpose.msra.mxu0 0.0
    %1208 = vmatpush.xpose.msra.mxu0 0.0
    %1209 = vmatpush.xpose.msra.mxu0 0.0
    %1210 = vmatpush.xpose.msra.mxu0 0.0
    %1211 = vmatpush.xpose.msra.mxu0 0.0
    %1212 = vmatpush.xpose.msra.mxu0 0.0
    %1213 = vmatpush.xpose.msra.mxu0 0.0
    %1214 = vmatpush.xpose.msra.mxu0 0.0
    %1215 = vmatpush.xpose.msra.mxu0 0.0
    %v1216 = vand.u32 %v994, 4294901760
    %1217 = vmatpush.xpose.msra.mxu0 %v1216
    %v1218 = vand.u32 %v294, 4294901760
    %1219 = vmatmul.f32.gmra.mxu0 %v1218
    %v1220 = vpop.f32.mrf.mxu0
    %v1221 = vadd.f32 %v1187, %v1220
    %v1222 = vand.u32 %v297, 4294901760
    %1223 = vmatmul.f32.gmra.mxu0 %v1222
    %v1224 = vpop.f32.mrf.mxu0
    %v1225 = vadd.f32 %v1191, %v1224
    %v1226 = vand.u32 %v300, 4294901760
    %1227 = vmatmul.f32.gmra.mxu0 %v1226
    %v1228 = vpop.f32.mrf.mxu0
    %v1229 = vadd.f32 %v1195, %v1228
    %v1230 = vand.u32 %v303, 4294901760
    %1231 = vmatmul.f32.gmra.mxu0 %v1230
    %v1232 = vpop.f32.mrf.mxu0
    %v1233 = vadd.f32 %v1199, %v1232
    %1234 = vdwg.mxu0
    %v1235 = vsel %vm38, %v979, -inf
    %1236 = vmax.xlane.f32.xlu0 %v1235
    %v1237 = vpop.xlane.xlu0 %1236
    %v1238 = vsel %vm38, %v983, -inf
    %1239 = vmax.xlane.f32.xlu0 %v1238
    %v1240 = vpop.xlane.xlu0 %1239
    %v1241 = vsel %vm38, %v987, -inf
    %1242 = vmax.xlane.f32.xlu0 %v1241
    %v1243 = vpop.xlane.xlu0 %1242
    %v1244 = vsel %vm38, %v991, -inf
    %1245 = vmax.xlane.f32.xlu0 %v1244
    %v1246 = vpop.xlane.xlu0 %1245
    %v1247 = vsel %vm38, %v1221, -inf
    %1248 = vmax.xlane.f32.xlu0 %v1247
    %v1249 = vpop.xlane.xlu0 %1248
    %v1250 = vsel %vm38, %v1225, -inf
    %1251 = vmax.xlane.f32.xlu0 %v1250
    %v1252 = vpop.xlane.xlu0 %1251
    %v1253 = vsel %vm38, %v1229, -inf
    %1254 = vmax.xlane.f32.xlu0 %v1253
    %v1255 = vpop.xlane.xlu0 %1254
    %v1256 = vsel %vm38, %v1233, -inf
    %1257 = vmax.xlane.f32.xlu0 %v1256
    %v1258 = vpop.xlane.xlu0 %1257
    %v1259 = vsub.f32 %v979, %v1237
    %v1260 = vsub.f32 %v983, %v1240
    %v1261 = vsub.f32 %v987, %v1243
    %v1262 = vsub.f32 %v991, %v1246
    %v1263 = vsub.f32 %v1221, %v1249
    %v1264 = vsub.f32 %v1225, %v1252
    %v1265 = vsub.f32 %v1229, %v1255
    %v1266 = vsub.f32 %v1233, %v1258
    %v1267 = vmul.f32 %v1259, 1.442695
    %v1268 = vpow.pop %v1267
    %v1269 = vmul.f32 %v1260, 1.442695
    %v1270 = vpow.pop %v1269
    %v1271 = vmul.f32 %v1261, 1.442695
    %v1272 = vpow.pop %v1271
    %v1273 = vmul.f32 %v1262, 1.442695
    %v1274 = vpow.pop %v1273
    %v1275 = vmul.f32 %v1263, 1.442695
    %v1276 = vpow.pop %v1275
    %v1277 = vmul.f32 %v1264, 1.442695
    %v1278 = vpow.pop %v1277
    %v1279 = vmul.f32 %v1265, 1.442695
    %v1280 = vpow.pop %v1279
    %v1281 = vmul.f32 %v1266, 1.442695
    %v1282 = vpow.pop %v1281
    %v1283 = vsel %vm38, %v1268, 0.0
    %1284 = vadd.xlane.f32.xlu0 %v1283
    %v1285 = vpop.xlane.xlu0 %1284
    %v1286 = vsel %vm38, %v1270, 0.0
    %1287 = vadd.xlane.f32.xlu0 %v1286
    %v1288 = vpop.xlane.xlu0 %1287
    %v1289 = vsel %vm38, %v1272, 0.0
    %1290 = vadd.xlane.f32.xlu0 %v1289
    %v1291 = vpop.xlane.xlu0 %1290
    %v1292 = vsel %vm38, %v1274, 0.0
    %1293 = vadd.xlane.f32.xlu0 %v1292
    %v1294 = vpop.xlane.xlu0 %1293
    %v1295 = vsel %vm38, %v1276, 0.0
    %1296 = vadd.xlane.f32.xlu0 %v1295
    %v1297 = vpop.xlane.xlu0 %1296
    %v1298 = vsel %vm38, %v1278, 0.0
    %1299 = vadd.xlane.f32.xlu0 %v1298
    %v1300 = vpop.xlane.xlu0 %1299
    %v1301 = vsel %vm38, %v1280, 0.0
    %1302 = vadd.xlane.f32.xlu0 %v1301
    %v1303 = vpop.xlane.xlu0 %1302
    %v1304 = vsel %vm38, %v1282, 0.0
    %1305 = vadd.xlane.f32.xlu0 %v1304
    %v1306 = vpop.xlane.xlu0 %1305
    %v1307 = vrcp.pop %v1285
    %v1308 = vmul.f32 %v1285, %v1307
    %v1309 = vsub.f32 1.0, %v1308
    %v1310 = vmul.f32 %v1307, %v1309
    %v1311 = vadd.f32 %v1307, %v1310
    %vm1312 = vweird.f32 %v1285
    %vm1313 = vweird.f32 %v1307
    %vm1314 = vmor %vm1312, %vm1313
    %v1315 = vsel %vm1314, %v1307, %v1311
    %v1316 = vand.u32 2147483647, %v1285
    %vm1317 = vcmp.eq.f32.partialorder %v1316, 8.507059e+37
    %v1318 = vand.u32 %v1285, 2147483648
    %v1319 = vor.u32 1.1754944e-38, %v1318
    %v1320 = vsel %vm1317, %v1319, %v1315
    %v1321 = vmul.f32 %v1268, %v1320
    %v1322 = vrcp.pop %v1288
    %v1323 = vmul.f32 %v1288, %v1322
    %v1324 = vsub.f32 1.0, %v1323
    %v1325 = vmul.f32 %v1322, %v1324
    %v1326 = vadd.f32 %v1322, %v1325
    %vm1327 = vweird.f32 %v1288
    %vm1328 = vweird.f32 %v1322
    %vm1329 = vmor %vm1327, %vm1328
    %v1330 = vsel %vm1329, %v1322, %v1326
    %v1331 = vand.u32 2147483647, %v1288
    %vm1332 = vcmp.eq.f32.partialorder %v1331, 8.507059e+37
    %v1333 = vand.u32 %v1288, 2147483648
    %v1334 = vor.u32 1.1754944e-38, %v1333
    %v1335 = vsel %vm1332, %v1334, %v1330
    %v1336 = vmul.f32 %v1270, %v1335
    %v1337 = vrcp.pop %v1291
    %v1338 = vmul.f32 %v1291, %v1337
    %v1339 = vsub.f32 1.0, %v1338
    %v1340 = vmul.f32 %v1337, %v1339
    %v1341 = vadd.f32 %v1337, %v1340
    %vm1342 = vweird.f32 %v1291
    %vm1343 = vweird.f32 %v1337
    %vm1344 = vmor %vm1342, %vm1343
    %v1345 = vsel %vm1344, %v1337, %v1341
    %v1346 = vand.u32 2147483647, %v1291
    %vm1347 = vcmp.eq.f32.partialorder %v1346, 8.507059e+37
    %v1348 = vand.u32 %v1291, 2147483648
    %v1349 = vor.u32 1.1754944e-38, %v1348
    %v1350 = vsel %vm1347, %v1349, %v1345
    %v1351 = vmul.f32 %v1272, %v1350
    %v1352 = vrcp.pop %v1294
    %v1353 = vmul.f32 %v1294, %v1352
    %v1354 = vsub.f32 1.0, %v1353
    %v1355 = vmul.f32 %v1352, %v1354
    %v1356 = vadd.f32 %v1352, %v1355
    %vm1357 = vweird.f32 %v1294
    %vm1358 = vweird.f32 %v1352
    %vm1359 = vmor %vm1357, %vm1358
    %v1360 = vsel %vm1359, %v1352, %v1356
    %v1361 = vand.u32 2147483647, %v1294
    %vm1362 = vcmp.eq.f32.partialorder %v1361, 8.507059e+37
    %v1363 = vand.u32 %v1294, 2147483648
    %v1364 = vor.u32 1.1754944e-38, %v1363
    %v1365 = vsel %vm1362, %v1364, %v1360
    %v1366 = vmul.f32 %v1274, %v1365
    %v1367 = vrcp.pop %v1297
    %v1368 = vmul.f32 %v1297, %v1367
    %v1369 = vsub.f32 1.0, %v1368
    %v1370 = vmul.f32 %v1367, %v1369
    %v1371 = vadd.f32 %v1367, %v1370
    %vm1372 = vweird.f32 %v1297
    %vm1373 = vweird.f32 %v1367
    %vm1374 = vmor %vm1372, %vm1373
    %v1375 = vsel %vm1374, %v1367, %v1371
    %v1376 = vand.u32 2147483647, %v1297
    %vm1377 = vcmp.eq.f32.partialorder %v1376, 8.507059e+37
    %v1378 = vand.u32 %v1297, 2147483648
    %v1379 = vor.u32 1.1754944e-38, %v1378
    %v1380 = vsel %vm1377, %v1379, %v1375
    %v1381 = vmul.f32 %v1276, %v1380
    %v1382 = vrcp.pop %v1300
    %v1383 = vmul.f32 %v1300, %v1382
    %v1384 = vsub.f32 1.0, %v1383
    %v1385 = vmul.f32 %v1382, %v1384
    %v1386 = vadd.f32 %v1382, %v1385
    %vm1387 = vweird.f32 %v1300
    %vm1388 = vweird.f32 %v1382
    %vm1389 = vmor %vm1387, %vm1388
    %v1390 = vsel %vm1389, %v1382, %v1386
    %v1391 = vand.u32 2147483647, %v1300
    %vm1392 = vcmp.eq.f32.partialorder %v1391, 8.507059e+37
    %v1393 = vand.u32 %v1300, 2147483648
    %v1394 = vor.u32 1.1754944e-38, %v1393
    %v1395 = vsel %vm1392, %v1394, %v1390
    %v1396 = vmul.f32 %v1278, %v1395
    %v1397 = vrcp.pop %v1303
    %v1398 = vmul.f32 %v1303, %v1397
    %v1399 = vsub.f32 1.0, %v1398
    %v1400 = vmul.f32 %v1397, %v1399
    %v1401 = vadd.f32 %v1397, %v1400
    %vm1402 = vweird.f32 %v1303
    %vm1403 = vweird.f32 %v1397
    %vm1404 = vmor %vm1402, %vm1403
    %v1405 = vsel %vm1404, %v1397, %v1401
    %v1406 = vand.u32 2147483647, %v1303
    %vm1407 = vcmp.eq.f32.partialorder %v1406, 8.507059e+37
    %v1408 = vand.u32 %v1303, 2147483648
    %v1409 = vor.u32 1.1754944e-38, %v1408
    %v1410 = vsel %vm1407, %v1409, %v1405
    %v1411 = vmul.f32 %v1280, %v1410
    %v1412 = vrcp.pop %v1306
    %v1413 = vmul.f32 %v1306, %v1412
    %v1414 = vsub.f32 1.0, %v1413
    %v1415 = vmul.f32 %v1412, %v1414
    %v1416 = vadd.f32 %v1412, %v1415
    %vm1417 = vweird.f32 %v1306
    %vm1418 = vweird.f32 %v1412
    %vm1419 = vmor %vm1417, %vm1418
    %v1420 = vsel %vm1419, %v1412, %v1416
    %v1421 = vand.u32 2147483647, %v1306
    %vm1422 = vcmp.eq.f32.partialorder %v1421, 8.507059e+37
    %v1423 = vand.u32 %v1306, 2147483648
    %v1424 = vor.u32 1.1754944e-38, %v1423
    %v1425 = vsel %vm1422, %v1424, %v1420
    %v1426 = vmul.f32 %v1282, %v1425
    %1435 = vrot.lane.b32.xlu0 %v1321, 8
    %v1436 = vpop.permute.xlu0 %1435
    %1437 = vrot.lane.b32.xlu0 %v1336, 8
    %v1438 = vpop.permute.xlu0 %1437
    %1439 = vrot.lane.b32.xlu0 %v1351, 8
    %v1440 = vpop.permute.xlu0 %1439
    %1441 = vrot.lane.b32.xlu0 %v1366, 8
    %v1442 = vpop.permute.xlu0 %1441
    %1443 = vrot.lane.b32.xlu0 %v1381, 8
    %v1444 = vpop.permute.xlu0 %1443
    %1445 = vrot.lane.b32.xlu0 %v1396, 8
    %v1446 = vpop.permute.xlu0 %1445
    %1447 = vrot.lane.b32.xlu0 %v1411, 8
    %v1448 = vpop.permute.xlu0 %1447
    %1449 = vrot.lane.b32.xlu0 %v1426, 8
    %v1450 = vpop.permute.xlu0 %1449
    %vm1459 = vcmask 130112
    %1460 = vst.msk [vmem:[#allocation4] sm:$0xff] %vm1459, %v1436
    %1461 = vst.msk [vmem:[#allocation4 + $0x8] sm:$0xff] %vm1459, %v1438
    %1462 = vst.msk [vmem:[#allocation4 + $0x10] sm:$0xff] %vm1459, %v1440
    %1463 = vst.msk [vmem:[#allocation4 + $0x18] sm:$0xff] %vm1459, %v1442
    %1464 = vst.msk [vmem:[#allocation4 + $0x20] sm:$0xff] %vm1459, %v1444
    %1465 = vst.msk [vmem:[#allocation4 + $0x28] sm:$0xff] %vm1459, %v1446
    %1466 = vst.msk [vmem:[#allocation4 + $0x30] sm:$0xff] %vm1459, %v1448
    %1467 = vst.msk [vmem:[#allocation4 + $0x38] sm:$0xff] %vm1459, %v1450
    %v1468 = vsel %vm38, %v1321, 0
    %v1470 = vsel %vm38, %v1336, 0
    %v1472 = vsel %vm38, %v1351, 0
    %v1474 = vsel %vm38, %v1366, 0
    %1476 = vmatpush.msra.mxu0 0.0
    %1477 = vmatpush.msra.mxu0 0.0
    %1478 = vmatpush.msra.mxu0 0.0
    %1479 = vmatpush.msra.mxu0 0.0
    %1480 = vmatpush.msra.mxu0 0.0
    %1481 = vmatpush.msra.mxu0 0.0
    %1482 = vmatpush.msra.mxu0 0.0
    %1483 = vmatpush.msra.mxu0 0.0
    %1484 = vmatpush.msra.mxu0 0.0
    %1485 = vmatpush.msra.mxu0 0.0
    %1486 = vmatpush.msra.mxu0 0.0
    %1487 = vmatpush.msra.mxu0 0.0
    %1488 = vmatpush.msra.mxu0 0.0
    %1489 = vmatpush.msra.mxu0 0.0
    %1490 = vmatpush.msra.mxu0 0.0
    %v1491 = vand.u32 %v749, 4294901760
    %1492 = vmatpush.msra.mxu0 %v1491
    %v1493 = vand.u32 %v1468, 4294901760
    %v1494 = vsub.f32 %v1468, %v1493
    %v1495 = vand.u32 %v1494, 4294901760
    %v1496 = vsub.f32 %v1494, %v1495
    %v1497 = vand.u32 %v1496, 4294901760
    %1498 = vmatmul.f32.gmra.mxu0 %v1497
    %v1499 = vpop.f32.mrf.mxu0
    %v1500 = vadd.f32 0.0, %v1499
    %v1501 = vand.u32 %v1470, 4294901760
    %v1502 = vsub.f32 %v1470, %v1501
    %v1503 = vand.u32 %v1502, 4294901760
    %v1504 = vsub.f32 %v1502, %v1503
    %v1505 = vand.u32 %v1504, 4294901760
    %1506 = vmatmul.f32.gmra.mxu0 %v1505
    %v1507 = vpop.f32.mrf.mxu0
    %v1508 = vadd.f32 0.0, %v1507
    %v1509 = vand.u32 %v1472, 4294901760
    %v1510 = vsub.f32 %v1472, %v1509
    %v1511 = vand.u32 %v1510, 4294901760
    %v1512 = vsub.f32 %v1510, %v1511
    %v1513 = vand.u32 %v1512, 4294901760
    %1514 = vmatmul.f32.gmra.mxu0 %v1513
    %v1515 = vpop.f32.mrf.mxu0
    %v1516 = vadd.f32 0.0, %v1515
    %v1517 = vand.u32 %v1474, 4294901760
    %v1518 = vsub.f32 %v1474, %v1517
    %v1519 = vand.u32 %v1518, 4294901760
    %v1520 = vsub.f32 %v1518, %v1519
    %v1521 = vand.u32 %v1520, 4294901760
    %1522 = vmatmul.f32.gmra.mxu0 %v1521
    %v1523 = vpop.f32.mrf.mxu0
    %v1524 = vadd.f32 0.0, %v1523
    %1525 = vdwg.mxu0
    %1526 = vmatpush.msra.mxu0 0.0
    %1527 = vmatpush.msra.mxu0 0.0
    %1528 = vmatpush.msra.mxu0 0.0
    %1529 = vmatpush.msra.mxu0 0.0
    %1530 = vmatpush.msra.mxu0 0.0
    %1531 = vmatpush.msra.mxu0 0.0
    %1532 = vmatpush.msra.mxu0 0.0
    %1533 = vmatpush.msra.mxu0 0.0
    %1534 = vmatpush.msra.mxu0 0.0
    %1535 = vmatpush.msra.mxu0 0.0
    %1536 = vmatpush.msra.mxu0 0.0
    %1537 = vmatpush.msra.mxu0 0.0
    %1538 = vmatpush.msra.mxu0 0.0
    %1539 = vmatpush.msra.mxu0 0.0
    %1540 = vmatpush.msra.mxu0 0.0
    %v1541 = vand.u32 %v749, 4294901760
    %v1542 = vsub.f32 %v749, %v1541
    %v1543 = vand.u32 %v1542, 4294901760
    %v1544 = vsub.f32 %v1542, %v1543
    %v1545 = vand.u32 %v1544, 4294901760
    %1546 = vmatpush.msra.mxu0 %v1545
    %v1547 = vand.u32 %v1468, 4294901760
    %1548 = vmatmul.f32.gmra.mxu0 %v1547
    %v1549 = vpop.f32.mrf.mxu0
    %v1550 = vadd.f32 %v1500, %v1549
    %v1551 = vand.u32 %v1470, 4294901760
    %1552 = vmatmul.f32.gmra.mxu0 %v1551
    %v1553 = vpop.f32.mrf.mxu0
    %v1554 = vadd.f32 %v1508, %v1553
    %v1555 = vand.u32 %v1472, 4294901760
    %1556 = vmatmul.f32.gmra.mxu0 %v1555
    %v1557 = vpop.f32.mrf.mxu0
    %v1558 = vadd.f32 %v1516, %v1557
    %v1559 = vand.u32 %v1474, 4294901760
    %1560 = vmatmul.f32.gmra.mxu0 %v1559
    %v1561 = vpop.f32.mrf.mxu0
    %v1562 = vadd.f32 %v1524, %v1561
    %1563 = vdwg.mxu0
    %1564 = vmatpush.msra.mxu0 0.0
    %1565 = vmatpush.msra.mxu0 0.0
    %1566 = vmatpush.msra.mxu0 0.0
    %1567 = vmatpush.msra.mxu0 0.0
    %1568 = vmatpush.msra.mxu0 0.0
    %1569 = vmatpush.msra.mxu0 0.0
    %1570 = vmatpush.msra.mxu0 0.0
    %1571 = vmatpush.msra.mxu0 0.0
    %1572 = vmatpush.msra.mxu0 0.0
    %1573 = vmatpush.msra.mxu0 0.0
    %1574 = vmatpush.msra.mxu0 0.0
    %1575 = vmatpush.msra.mxu0 0.0
    %1576 = vmatpush.msra.mxu0 0.0
    %1577 = vmatpush.msra.mxu0 0.0
    %1578 = vmatpush.msra.mxu0 0.0
    %v1579 = vand.u32 %v749, 4294901760
    %v1580 = vsub.f32 %v749, %v1579
    %1581 = vmatpush.msra.mxu0 %v1580
    %v1582 = vand.u32 %v1468, 4294901760
    %v1583 = vsub.f32 %v1468, %v1582
    %1584 = vmatmul.f32.gmra.mxu0 %v1583
    %v1585 = vpop.f32.mrf.mxu0
    %v1586 = vadd.f32 %v1550, %v1585
    %v1587 = vand.u32 %v1470, 4294901760
    %v1588 = vsub.f32 %v1470, %v1587
    %1589 = vmatmul.f32.gmra.mxu0 %v1588
    %v1590 = vpop.f32.mrf.mxu0
    %v1591 = vadd.f32 %v1554, %v1590
    %v1592 = vand.u32 %v1472, 4294901760
    %v1593 = vsub.f32 %v1472, %v1592
    %1594 = vmatmul.f32.gmra.mxu0 %v1593
    %v1595 = vpop.f32.mrf.mxu0
    %v1596 = vadd.f32 %v1558, %v1595
    %v1597 = vand.u32 %v1474, 4294901760
    %v1598 = vsub.f32 %v1474, %v1597
    %1599 = vmatmul.f32.gmra.mxu0 %v1598
    %v1600 = vpop.f32.mrf.mxu0
    %v1601 = vadd.f32 %v1562, %v1600
    %1602 = vdwg.mxu0
    %1603 = vmatpush.msra.mxu0 0.0
    %1604 = vmatpush.msra.mxu0 0.0
    %1605 = vmatpush.msra.mxu0 0.0
    %1606 = vmatpush.msra.mxu0 0.0
    %1607 = vmatpush.msra.mxu0 0.0
    %1608 = vmatpush.msra.mxu0 0.0
    %1609 = vmatpush.msra.mxu0 0.0
    %1610 = vmatpush.msra.mxu0 0.0
    %1611 = vmatpush.msra.mxu0 0.0
    %1612 = vmatpush.msra.mxu0 0.0
    %1613 = vmatpush.msra.mxu0 0.0
    %1614 = vmatpush.msra.mxu0 0.0
    %1615 = vmatpush.msra.mxu0 0.0
    %1616 = vmatpush.msra.mxu0 0.0
    %1617 = vmatpush.msra.mxu0 0.0
    %v1618 = vand.u32 %v749, 4294901760
    %1619 = vmatpush.msra.mxu0 %v1618
    %v1620 = vand.u32 %v1468, 4294901760
    %v1621 = vsub.f32 %v1468, %v1620
    %v1622 = vand.u32 %v1621, 4294901760
    %1623 = vmatmul.f32.gmra.mxu0 %v1622
    %v1624 = vpop.f32.mrf.mxu0
    %v1625 = vadd.f32 %v1586, %v1624
    %v1626 = vand.u32 %v1470, 4294901760
    %v1627 = vsub.f32 %v1470, %v1626
    %v1628 = vand.u32 %v1627, 4294901760
    %1629 = vmatmul.f32.gmra.mxu0 %v1628
    %v1630 = vpop.f32.mrf.mxu0
    %v1631 = vadd.f32 %v1591, %v1630
    %v1632 = vand.u32 %v1472, 4294901760
    %v1633 = vsub.f32 %v1472, %v1632
    %v1634 = vand.u32 %v1633, 4294901760
    %1635 = vmatmul.f32.gmra.mxu0 %v1634
    %v1636 = vpop.f32.mrf.mxu0
    %v1637 = vadd.f32 %v1596, %v1636
    %v1638 = vand.u32 %v1474, 4294901760
    %v1639 = vsub.f32 %v1474, %v1638
    %v1640 = vand.u32 %v1639, 4294901760
    %1641 = vmatmul.f32.gmra.mxu0 %v1640
    %v1642 = vpop.f32.mrf.mxu0
    %v1643 = vadd.f32 %v1601, %v1642
    %1644 = vdwg.mxu0
    %1645 = vmatpush.msra.mxu0 0.0
    %1646 = vmatpush.msra.mxu0 0.0
    %1647 = vmatpush.msra.mxu0 0.0
    %1648 = vmatpush.msra.mxu0 0.0
    %1649 = vmatpush.msra.mxu0 0.0
    %1650 = vmatpush.msra.mxu0 0.0
    %1651 = vmatpush.msra.mxu0 0.0
    %1652 = vmatpush.msra.mxu0 0.0
    %1653 = vmatpush.msra.mxu0 0.0
    %1654 = vmatpush.msra.mxu0 0.0
    %1655 = vmatpush.msra.mxu0 0.0
    %1656 = vmatpush.msra.mxu0 0.0
    %1657 = vmatpush.msra.mxu0 0.0
    %1658 = vmatpush.msra.mxu0 0.0
    %1659 = vmatpush.msra.mxu0 0.0
    %v1660 = vand.u32 %v749, 4294901760
    %v1661 = vsub.f32 %v749, %v1660
    %v1662 = vand.u32 %v1661, 4294901760
    %1663 = vmatpush.msra.mxu0 %v1662
    %v1664 = vand.u32 %v1468, 4294901760
    %1665 = vmatmul.f32.gmra.mxu0 %v1664
    %v1666 = vpop.f32.mrf.mxu0
    %v1667 = vadd.f32 %v1625, %v1666
    %v1668 = vand.u32 %v1470, 4294901760
    %1669 = vmatmul.f32.gmra.mxu0 %v1668
    %v1670 = vpop.f32.mrf.mxu0
    %v1671 = vadd.f32 %v1631, %v1670
    %v1672 = vand.u32 %v1472, 4294901760
    %1673 = vmatmul.f32.gmra.mxu0 %v1672
    %v1674 = vpop.f32.mrf.mxu0
    %v1675 = vadd.f32 %v1637, %v1674
    %v1676 = vand.u32 %v1474, 4294901760
    %1677 = vmatmul.f32.gmra.mxu0 %v1676
    %v1678 = vpop.f32.mrf.mxu0
    %v1679 = vadd.f32 %v1643, %v1678
    %1680 = vdwg.mxu0
    %1681 = vmatpush.msra.mxu0 0.0
    %1682 = vmatpush.msra.mxu0 0.0
    %1683 = vmatpush.msra.mxu0 0.0
    %1684 = vmatpush.msra.mxu0 0.0
    %1685 = vmatpush.msra.mxu0 0.0
    %1686 = vmatpush.msra.mxu0 0.0
    %1687 = vmatpush.msra.mxu0 0.0
    %1688 = vmatpush.msra.mxu0 0.0
    %1689 = vmatpush.msra.mxu0 0.0
    %1690 = vmatpush.msra.mxu0 0.0
    %1691 = vmatpush.msra.mxu0 0.0
    %1692 = vmatpush.msra.mxu0 0.0
    %1693 = vmatpush.msra.mxu0 0.0
    %1694 = vmatpush.msra.mxu0 0.0
    %1695 = vmatpush.msra.mxu0 0.0
    %v1696 = vand.u32 %v749, 4294901760
    %1697 = vmatpush.msra.mxu0 %v1696
    %v1698 = vand.u32 %v1468, 4294901760
    %1699 = vmatmul.f32.gmra.mxu0 %v1698
    %v1700 = vpop.f32.mrf.mxu0
    %v1701 = vadd.f32 %v1667, %v1700
    %v1702 = vand.u32 %v1470, 4294901760
    %1703 = vmatmul.f32.gmra.mxu0 %v1702
    %v1704 = vpop.f32.mrf.mxu0
    %v1705 = vadd.f32 %v1671, %v1704
    %v1706 = vand.u32 %v1472, 4294901760
    %1707 = vmatmul.f32.gmra.mxu0 %v1706
    %v1708 = vpop.f32.mrf.mxu0
    %v1709 = vadd.f32 %v1675, %v1708
    %v1710 = vand.u32 %v1474, 4294901760
    %1711 = vmatmul.f32.gmra.mxu0 %v1710
    %v1712 = vpop.f32.mrf.mxu0
    %v1713 = vadd.f32 %v1679, %v1712
    %1714 = vdwg.mxu0
    %v1715 = vsel %vm38, %v1381, 0
    %v1717 = vsel %vm38, %v1396, 0
    %v1719 = vsel %vm38, %v1411, 0
    %v1721 = vsel %vm38, %v1426, 0
    %1723 = vmatpush.msra.mxu0 0.0
    %1724 = vmatpush.msra.mxu0 0.0
    %1725 = vmatpush.msra.mxu0 0.0
    %1726 = vmatpush.msra.mxu0 0.0
    %1727 = vmatpush.msra.mxu0 0.0
    %1728 = vmatpush.msra.mxu0 0.0
    %1729 = vmatpush.msra.mxu0 0.0
    %1730 = vmatpush.msra.mxu0 0.0
    %1731 = vmatpush.msra.mxu0 0.0
    %1732 = vmatpush.msra.mxu0 0.0
    %1733 = vmatpush.msra.mxu0 0.0
    %1734 = vmatpush.msra.mxu0 0.0
    %1735 = vmatpush.msra.mxu0 0.0
    %1736 = vmatpush.msra.mxu0 0.0
    %1737 = vmatpush.msra.mxu0 0.0
    %v1738 = vand.u32 %v750, 4294901760
    %1739 = vmatpush.msra.mxu0 %v1738
    %v1740 = vand.u32 %v1715, 4294901760
    %v1741 = vsub.f32 %v1715, %v1740
    %v1742 = vand.u32 %v1741, 4294901760
    %v1743 = vsub.f32 %v1741, %v1742
    %v1744 = vand.u32 %v1743, 4294901760
    %1745 = vmatmul.f32.gmra.mxu0 %v1744
    %v1746 = vpop.f32.mrf.mxu0
    %v1747 = vadd.f32 0.0, %v1746
    %v1748 = vand.u32 %v1717, 4294901760
    %v1749 = vsub.f32 %v1717, %v1748
    %v1750 = vand.u32 %v1749, 4294901760
    %v1751 = vsub.f32 %v1749, %v1750
    %v1752 = vand.u32 %v1751, 4294901760
    %1753 = vmatmul.f32.gmra.mxu0 %v1752
    %v1754 = vpop.f32.mrf.mxu0
    %v1755 = vadd.f32 0.0, %v1754
    %v1756 = vand.u32 %v1719, 4294901760
    %v1757 = vsub.f32 %v1719, %v1756
    %v1758 = vand.u32 %v1757, 4294901760
    %v1759 = vsub.f32 %v1757, %v1758
    %v1760 = vand.u32 %v1759, 4294901760
    %1761 = vmatmul.f32.gmra.mxu0 %v1760
    %v1762 = vpop.f32.mrf.mxu0
    %v1763 = vadd.f32 0.0, %v1762
    %v1764 = vand.u32 %v1721, 4294901760
    %v1765 = vsub.f32 %v1721, %v1764
    %v1766 = vand.u32 %v1765, 4294901760
    %v1767 = vsub.f32 %v1765, %v1766
    %v1768 = vand.u32 %v1767, 4294901760
    %1769 = vmatmul.f32.gmra.mxu0 %v1768
    %v1770 = vpop.f32.mrf.mxu0
    %v1771 = vadd.f32 0.0, %v1770
    %1772 = vdwg.mxu0
    %1773 = vmatpush.msra.mxu0 0.0
    %1774 = vmatpush.msra.mxu0 0.0
    %1775 = vmatpush.msra.mxu0 0.0
    %1776 = vmatpush.msra.mxu0 0.0
    %1777 = vmatpush.msra.mxu0 0.0
    %1778 = vmatpush.msra.mxu0 0.0
    %1779 = vmatpush.msra.mxu0 0.0
    %1780 = vmatpush.msra.mxu0 0.0
    %1781 = vmatpush.msra.mxu0 0.0
    %1782 = vmatpush.msra.mxu0 0.0
    %1783 = vmatpush.msra.mxu0 0.0
    %1784 = vmatpush.msra.mxu0 0.0
    %1785 = vmatpush.msra.mxu0 0.0
    %1786 = vmatpush.msra.mxu0 0.0
    %1787 = vmatpush.msra.mxu0 0.0
    %v1788 = vand.u32 %v750, 4294901760
    %v1789 = vsub.f32 %v750, %v1788
    %v1790 = vand.u32 %v1789, 4294901760
    %v1791 = vsub.f32 %v1789, %v1790
    %v1792 = vand.u32 %v1791, 4294901760
    %1793 = vmatpush.msra.mxu0 %v1792
    %v1794 = vand.u32 %v1715, 4294901760
    %1795 = vmatmul.f32.gmra.mxu0 %v1794
    %v1796 = vpop.f32.mrf.mxu0
    %v1797 = vadd.f32 %v1747, %v1796
    %v1798 = vand.u32 %v1717, 4294901760
    %1799 = vmatmul.f32.gmra.mxu0 %v1798
    %v1800 = vpop.f32.mrf.mxu0
    %v1801 = vadd.f32 %v1755, %v1800
    %v1802 = vand.u32 %v1719, 4294901760
    %1803 = vmatmul.f32.gmra.mxu0 %v1802
    %v1804 = vpop.f32.mrf.mxu0
    %v1805 = vadd.f32 %v1763, %v1804
    %v1806 = vand.u32 %v1721, 4294901760
    %1807 = vmatmul.f32.gmra.mxu0 %v1806
    %v1808 = vpop.f32.mrf.mxu0
    %v1809 = vadd.f32 %v1771, %v1808
    %1810 = vdwg.mxu0
    %1811 = vmatpush.msra.mxu0 0.0
    %1812 = vmatpush.msra.mxu0 0.0
    %1813 = vmatpush.msra.mxu0 0.0
    %1814 = vmatpush.msra.mxu0 0.0
    %1815 = vmatpush.msra.mxu0 0.0
    %1816 = vmatpush.msra.mxu0 0.0
    %1817 = vmatpush.msra.mxu0 0.0
    %1818 = vmatpush.msra.mxu0 0.0
    %1819 = vmatpush.msra.mxu0 0.0
    %1820 = vmatpush.msra.mxu0 0.0
    %1821 = vmatpush.msra.mxu0 0.0
    %1822 = vmatpush.msra.mxu0 0.0
    %1823 = vmatpush.msra.mxu0 0.0
    %1824 = vmatpush.msra.mxu0 0.0
    %1825 = vmatpush.msra.mxu0 0.0
    %v1826 = vand.u32 %v750, 4294901760
    %v1827 = vsub.f32 %v750, %v1826
    %1828 = vmatpush.msra.mxu0 %v1827
    %v1829 = vand.u32 %v1715, 4294901760
    %v1830 = vsub.f32 %v1715, %v1829
    %1831 = vmatmul.f32.gmra.mxu0 %v1830
    %v1832 = vpop.f32.mrf.mxu0
    %v1833 = vadd.f32 %v1797, %v1832
    %v1834 = vand.u32 %v1717, 4294901760
    %v1835 = vsub.f32 %v1717, %v1834
    %1836 = vmatmul.f32.gmra.mxu0 %v1835
    %v1837 = vpop.f32.mrf.mxu0
    %v1838 = vadd.f32 %v1801, %v1837
    %v1839 = vand.u32 %v1719, 4294901760
    %v1840 = vsub.f32 %v1719, %v1839
    %1841 = vmatmul.f32.gmra.mxu0 %v1840
    %v1842 = vpop.f32.mrf.mxu0
    %v1843 = vadd.f32 %v1805, %v1842
    %v1844 = vand.u32 %v1721, 4294901760
    %v1845 = vsub.f32 %v1721, %v1844
    %1846 = vmatmul.f32.gmra.mxu0 %v1845
    %v1847 = vpop.f32.mrf.mxu0
    %v1848 = vadd.f32 %v1809, %v1847
    %1849 = vdwg.mxu0
    %1850 = vmatpush.msra.mxu0 0.0
    %1851 = vmatpush.msra.mxu0 0.0
    %1852 = vmatpush.msra.mxu0 0.0
    %1853 = vmatpush.msra.mxu0 0.0
    %1854 = vmatpush.msra.mxu0 0.0
    %1855 = vmatpush.msra.mxu0 0.0
    %1856 = vmatpush.msra.mxu0 0.0
    %1857 = vmatpush.msra.mxu0 0.0
    %1858 = vmatpush.msra.mxu0 0.0
    %1859 = vmatpush.msra.mxu0 0.0
    %1860 = vmatpush.msra.mxu0 0.0
    %1861 = vmatpush.msra.mxu0 0.0
    %1862 = vmatpush.msra.mxu0 0.0
    %1863 = vmatpush.msra.mxu0 0.0
    %1864 = vmatpush.msra.mxu0 0.0
    %v1865 = vand.u32 %v750, 4294901760
    %1866 = vmatpush.msra.mxu0 %v1865
    %v1867 = vand.u32 %v1715, 4294901760
    %v1868 = vsub.f32 %v1715, %v1867
    %v1869 = vand.u32 %v1868, 4294901760
    %1870 = vmatmul.f32.gmra.mxu0 %v1869
    %v1871 = vpop.f32.mrf.mxu0
    %v1872 = vadd.f32 %v1833, %v1871
    %v1873 = vand.u32 %v1717, 4294901760
    %v1874 = vsub.f32 %v1717, %v1873
    %v1875 = vand.u32 %v1874, 4294901760
    %1876 = vmatmul.f32.gmra.mxu0 %v1875
    %v1877 = vpop.f32.mrf.mxu0
    %v1878 = vadd.f32 %v1838, %v1877
    %v1879 = vand.u32 %v1719, 4294901760
    %v1880 = vsub.f32 %v1719, %v1879
    %v1881 = vand.u32 %v1880, 4294901760
    %1882 = vmatmul.f32.gmra.mxu0 %v1881
    %v1883 = vpop.f32.mrf.mxu0
    %v1884 = vadd.f32 %v1843, %v1883
    %v1885 = vand.u32 %v1721, 4294901760
    %v1886 = vsub.f32 %v1721, %v1885
    %v1887 = vand.u32 %v1886, 4294901760
    %1888 = vmatmul.f32.gmra.mxu0 %v1887
    %v1889 = vpop.f32.mrf.mxu0
    %v1890 = vadd.f32 %v1848, %v1889
    %1891 = vdwg.mxu0
    %1892 = vmatpush.msra.mxu0 0.0
    %1893 = vmatpush.msra.mxu0 0.0
    %1894 = vmatpush.msra.mxu0 0.0
    %1895 = vmatpush.msra.mxu0 0.0
    %1896 = vmatpush.msra.mxu0 0.0
    %1897 = vmatpush.msra.mxu0 0.0
    %1898 = vmatpush.msra.mxu0 0.0
    %1899 = vmatpush.msra.mxu0 0.0
    %1900 = vmatpush.msra.mxu0 0.0
    %1901 = vmatpush.msra.mxu0 0.0
    %1902 = vmatpush.msra.mxu0 0.0
    %1903 = vmatpush.msra.mxu0 0.0
    %1904 = vmatpush.msra.mxu0 0.0
    %1905 = vmatpush.msra.mxu0 0.0
    %1906 = vmatpush.msra.mxu0 0.0
    %v1907 = vand.u32 %v750, 4294901760
    %v1908 = vsub.f32 %v750, %v1907
    %v1909 = vand.u32 %v1908, 4294901760
    %1910 = vmatpush.msra.mxu0 %v1909
    %v1911 = vand.u32 %v1715, 4294901760
    %1912 = vmatmul.f32.gmra.mxu0 %v1911
    %v1913 = vpop.f32.mrf.mxu0
    %v1914 = vadd.f32 %v1872, %v1913
    %v1915 = vand.u32 %v1717, 4294901760
    %1916 = vmatmul.f32.gmra.mxu0 %v1915
    %v1917 = vpop.f32.mrf.mxu0
    %v1918 = vadd.f32 %v1878, %v1917
    %v1919 = vand.u32 %v1719, 4294901760
    %1920 = vmatmul.f32.gmra.mxu0 %v1919
    %v1921 = vpop.f32.mrf.mxu0
    %v1922 = vadd.f32 %v1884, %v1921
    %v1923 = vand.u32 %v1721, 4294901760
    %1924 = vmatmul.f32.gmra.mxu0 %v1923
    %v1925 = vpop.f32.mrf.mxu0
    %v1926 = vadd.f32 %v1890, %v1925
    %1927 = vdwg.mxu0
    %1928 = vmatpush.msra.mxu0 0.0
    %1929 = vmatpush.msra.mxu0 0.0
    %1930 = vmatpush.msra.mxu0 0.0
    %1931 = vmatpush.msra.mxu0 0.0
    %1932 = vmatpush.msra.mxu0 0.0
    %1933 = vmatpush.msra.mxu0 0.0
    %1934 = vmatpush.msra.mxu0 0.0
    %1935 = vmatpush.msra.mxu0 0.0
    %1936 = vmatpush.msra.mxu0 0.0
    %1937 = vmatpush.msra.mxu0 0.0
    %1938 = vmatpush.msra.mxu0 0.0
    %1939 = vmatpush.msra.mxu0 0.0
    %1940 = vmatpush.msra.mxu0 0.0
    %1941 = vmatpush.msra.mxu0 0.0
    %1942 = vmatpush.msra.mxu0 0.0
    %v1943 = vand.u32 %v750, 4294901760
    %1944 = vmatpush.msra.mxu0 %v1943
    %v1945 = vand.u32 %v1715, 4294901760
    %1946 = vmatmul.f32.gmra.mxu0 %v1945
    %v1947 = vpop.f32.mrf.mxu0
    %v1948 = vadd.f32 %v1914, %v1947
    %v1949 = vand.u32 %v1717, 4294901760
    %1950 = vmatmul.f32.gmra.mxu0 %v1949
    %v1951 = vpop.f32.mrf.mxu0
    %v1952 = vadd.f32 %v1918, %v1951
    %v1953 = vand.u32 %v1719, 4294901760
    %1954 = vmatmul.f32.gmra.mxu0 %v1953
    %v1955 = vpop.f32.mrf.mxu0
    %v1956 = vadd.f32 %v1922, %v1955
    %v1957 = vand.u32 %v1721, 4294901760
    %1958 = vmatmul.f32.gmra.mxu0 %v1957
    %v1959 = vpop.f32.mrf.mxu0
    %v1960 = vadd.f32 %v1926, %v1959
    %1961 = vdwg.mxu0
    %v1963 = vsel %vm38, %v633, 0
    %v1966 = vsel %vm38, %v648, 0
    %v1969 = vsel %vm38, %v663, 0
    %v1972 = vsel %vm38, %v678, 0
    %1974 = vmatpush.msra.mxu0 0.0
    %1975 = vmatpush.msra.mxu0 0.0
    %1976 = vmatpush.msra.mxu0 0.0
    %1977 = vmatpush.msra.mxu0 0.0
    %1978 = vmatpush.msra.mxu0 0.0
    %1979 = vmatpush.msra.mxu0 0.0
    %1980 = vmatpush.msra.mxu0 0.0
    %1981 = vmatpush.msra.mxu0 0.0
    %1982 = vmatpush.msra.mxu0 0.0
    %1983 = vmatpush.msra.mxu0 0.0
    %1984 = vmatpush.msra.mxu0 0.0
    %1985 = vmatpush.msra.mxu0 0.0
    %1986 = vmatpush.msra.mxu0 0.0
    %1987 = vmatpush.msra.mxu0 0.0
    %1988 = vmatpush.msra.mxu0 0.0
    %v1989 = vand.u32 %v36, 4294901760
    %1990 = vmatpush.msra.mxu0 %v1989
    %v1991 = vand.u32 %v1963, 4294901760
    %v1992 = vsub.f32 %v1963, %v1991
    %v1993 = vand.u32 %v1992, 4294901760
    %v1994 = vsub.f32 %v1992, %v1993
    %v1995 = vand.u32 %v1994, 4294901760
    %1996 = vmatmul.f32.gmra.mxu0 %v1995
    %v1997 = vpop.f32.mrf.mxu0
    %v1998 = vadd.f32 %v1701, %v1997
    %v1999 = vand.u32 %v1966, 4294901760
    %v2000 = vsub.f32 %v1966, %v1999
    %v2001 = vand.u32 %v2000, 4294901760
    %v2002 = vsub.f32 %v2000, %v2001
    %v2003 = vand.u32 %v2002, 4294901760
    %2004 = vmatmul.f32.gmra.mxu0 %v2003
    %v2005 = vpop.f32.mrf.mxu0
    %v2006 = vadd.f32 %v1705, %v2005
    %v2007 = vand.u32 %v1969, 4294901760
    %v2008 = vsub.f32 %v1969, %v2007
    %v2009 = vand.u32 %v2008, 4294901760
    %v2010 = vsub.f32 %v2008, %v2009
    %v2011 = vand.u32 %v2010, 4294901760
    %2012 = vmatmul.f32.gmra.mxu0 %v2011
    %v2013 = vpop.f32.mrf.mxu0
    %v2014 = vadd.f32 %v1709, %v2013
    %v2015 = vand.u32 %v1972, 4294901760
    %v2016 = vsub.f32 %v1972, %v2015
    %v2017 = vand.u32 %v2016, 4294901760
    %v2018 = vsub.f32 %v2016, %v2017
    %v2019 = vand.u32 %v2018, 4294901760
    %2020 = vmatmul.f32.gmra.mxu0 %v2019
    %v2021 = vpop.f32.mrf.mxu0
    %v2022 = vadd.f32 %v1713, %v2021
    %2023 = vdwg.mxu0
    %2024 = vmatpush.msra.mxu0 0.0
    %2025 = vmatpush.msra.mxu0 0.0
    %2026 = vmatpush.msra.mxu0 0.0
    %2027 = vmatpush.msra.mxu0 0.0
    %2028 = vmatpush.msra.mxu0 0.0
    %2029 = vmatpush.msra.mxu0 0.0
    %2030 = vmatpush.msra.mxu0 0.0
    %2031 = vmatpush.msra.mxu0 0.0
    %2032 = vmatpush.msra.mxu0 0.0
    %2033 = vmatpush.msra.mxu0 0.0
    %2034 = vmatpush.msra.mxu0 0.0
    %2035 = vmatpush.msra.mxu0 0.0
    %2036 = vmatpush.msra.mxu0 0.0
    %2037 = vmatpush.msra.mxu0 0.0
    %2038 = vmatpush.msra.mxu0 0.0
    %v2039 = vand.u32 %v36, 4294901760
    %v2040 = vsub.f32 %v36, %v2039
    %v2041 = vand.u32 %v2040, 4294901760
    %v2042 = vsub.f32 %v2040, %v2041
    %v2043 = vand.u32 %v2042, 4294901760
    %2044 = vmatpush.msra.mxu0 %v2043
    %v2045 = vand.u32 %v1963, 4294901760
    %2046 = vmatmul.f32.gmra.mxu0 %v2045
    %v2047 = vpop.f32.mrf.mxu0
    %v2048 = vadd.f32 %v1998, %v2047
    %v2049 = vand.u32 %v1966, 4294901760
    %2050 = vmatmul.f32.gmra.mxu0 %v2049
    %v2051 = vpop.f32.mrf.mxu0
    %v2052 = vadd.f32 %v2006, %v2051
    %v2053 = vand.u32 %v1969, 4294901760
    %2054 = vmatmul.f32.gmra.mxu0 %v2053
    %v2055 = vpop.f32.mrf.mxu0
    %v2056 = vadd.f32 %v2014, %v2055
    %v2057 = vand.u32 %v1972, 4294901760
    %2058 = vmatmul.f32.gmra.mxu0 %v2057
    %v2059 = vpop.f32.mrf.mxu0
    %v2060 = vadd.f32 %v2022, %v2059
    %2061 = vdwg.mxu0
    %2062 = vmatpush.msra.mxu0 0.0
    %2063 = vmatpush.msra.mxu0 0.0
    %2064 = vmatpush.msra.mxu0 0.0
    %2065 = vmatpush.msra.mxu0 0.0
    %2066 = vmatpush.msra.mxu0 0.0
    %2067 = vmatpush.msra.mxu0 0.0
    %2068 = vmatpush.msra.mxu0 0.0
    %2069 = vmatpush.msra.mxu0 0.0
    %2070 = vmatpush.msra.mxu0 0.0
    %2071 = vmatpush.msra.mxu0 0.0
    %2072 = vmatpush.msra.mxu0 0.0
    %2073 = vmatpush.msra.mxu0 0.0
    %2074 = vmatpush.msra.mxu0 0.0
    %2075 = vmatpush.msra.mxu0 0.0
    %2076 = vmatpush.msra.mxu0 0.0
    %v2077 = vand.u32 %v36, 4294901760
    %v2078 = vsub.f32 %v36, %v2077
    %2079 = vmatpush.msra.mxu0 %v2078
    %v2080 = vand.u32 %v1963, 4294901760
    %v2081 = vsub.f32 %v1963, %v2080
    %2082 = vmatmul.f32.gmra.mxu0 %v2081
    %v2083 = vpop.f32.mrf.mxu0
    %v2084 = vadd.f32 %v2048, %v2083
    %v2085 = vand.u32 %v1966, 4294901760
    %v2086 = vsub.f32 %v1966, %v2085
    %2087 = vmatmul.f32.gmra.mxu0 %v2086
    %v2088 = vpop.f32.mrf.mxu0
    %v2089 = vadd.f32 %v2052, %v2088
    %v2090 = vand.u32 %v1969, 4294901760
    %v2091 = vsub.f32 %v1969, %v2090
    %2092 = vmatmul.f32.gmra.mxu0 %v2091
    %v2093 = vpop.f32.mrf.mxu0
    %v2094 = vadd.f32 %v2056, %v2093
    %v2095 = vand.u32 %v1972, 4294901760
    %v2096 = vsub.f32 %v1972, %v2095
    %2097 = vmatmul.f32.gmra.mxu0 %v2096
    %v2098 = vpop.f32.mrf.mxu0
    %v2099 = vadd.f32 %v2060, %v2098
    %2100 = vdwg.mxu0
    %2101 = vmatpush.msra.mxu0 0.0
    %2102 = vmatpush.msra.mxu0 0.0
    %2103 = vmatpush.msra.mxu0 0.0
    %2104 = vmatpush.msra.mxu0 0.0
    %2105 = vmatpush.msra.mxu0 0.0
    %2106 = vmatpush.msra.mxu0 0.0
    %2107 = vmatpush.msra.mxu0 0.0
    %2108 = vmatpush.msra.mxu0 0.0
    %2109 = vmatpush.msra.mxu0 0.0
    %2110 = vmatpush.msra.mxu0 0.0
    %2111 = vmatpush.msra.mxu0 0.0
    %2112 = vmatpush.msra.mxu0 0.0
    %2113 = vmatpush.msra.mxu0 0.0
    %2114 = vmatpush.msra.mxu0 0.0
    %2115 = vmatpush.msra.mxu0 0.0
    %v2116 = vand.u32 %v36, 4294901760
    %2117 = vmatpush.msra.mxu0 %v2116
    %v2118 = vand.u32 %v1963, 4294901760
    %v2119 = vsub.f32 %v1963, %v2118
    %v2120 = vand.u32 %v2119, 4294901760
    %2121 = vmatmul.f32.gmra.mxu0 %v2120
    %v2122 = vpop.f32.mrf.mxu0
    %v2123 = vadd.f32 %v2084, %v2122
    %v2124 = vand.u32 %v1966, 4294901760
    %v2125 = vsub.f32 %v1966, %v2124
    %v2126 = vand.u32 %v2125, 4294901760
    %2127 = vmatmul.f32.gmra.mxu0 %v2126
    %v2128 = vpop.f32.mrf.mxu0
    %v2129 = vadd.f32 %v2089, %v2128
    %v2130 = vand.u32 %v1969, 4294901760
    %v2131 = vsub.f32 %v1969, %v2130
    %v2132 = vand.u32 %v2131, 4294901760
    %2133 = vmatmul.f32.gmra.mxu0 %v2132
    %v2134 = vpop.f32.mrf.mxu0
    %v2135 = vadd.f32 %v2094, %v2134
    %v2136 = vand.u32 %v1972, 4294901760
    %v2137 = vsub.f32 %v1972, %v2136
    %v2138 = vand.u32 %v2137, 4294901760
    %2139 = vmatmul.f32.gmra.mxu0 %v2138
    %v2140 = vpop.f32.mrf.mxu0
    %v2141 = vadd.f32 %v2099, %v2140
    %2142 = vdwg.mxu0
    %2143 = vmatpush.msra.mxu0 0.0
    %2144 = vmatpush.msra.mxu0 0.0
    %2145 = vmatpush.msra.mxu0 0.0
    %2146 = vmatpush.msra.mxu0 0.0
    %2147 = vmatpush.msra.mxu0 0.0
    %2148 = vmatpush.msra.mxu0 0.0
    %2149 = vmatpush.msra.mxu0 0.0
    %2150 = vmatpush.msra.mxu0 0.0
    %2151 = vmatpush.msra.mxu0 0.0
    %2152 = vmatpush.msra.mxu0 0.0
    %2153 = vmatpush.msra.mxu0 0.0
    %2154 = vmatpush.msra.mxu0 0.0
    %2155 = vmatpush.msra.mxu0 0.0
    %2156 = vmatpush.msra.mxu0 0.0
    %2157 = vmatpush.msra.mxu0 0.0
    %v2158 = vand.u32 %v36, 4294901760
    %v2159 = vsub.f32 %v36, %v2158
    %v2160 = vand.u32 %v2159, 4294901760
    %2161 = vmatpush.msra.mxu0 %v2160
    %v2162 = vand.u32 %v1963, 4294901760
    %2163 = vmatmul.f32.gmra.mxu0 %v2162
    %v2164 = vpop.f32.mrf.mxu0
    %v2165 = vadd.f32 %v2123, %v2164
    %v2166 = vand.u32 %v1966, 4294901760
    %2167 = vmatmul.f32.gmra.mxu0 %v2166
    %v2168 = vpop.f32.mrf.mxu0
    %v2169 = vadd.f32 %v2129, %v2168
    %v2170 = vand.u32 %v1969, 4294901760
    %2171 = vmatmul.f32.gmra.mxu0 %v2170
    %v2172 = vpop.f32.mrf.mxu0
    %v2173 = vadd.f32 %v2135, %v2172
    %v2174 = vand.u32 %v1972, 4294901760
    %2175 = vmatmul.f32.gmra.mxu0 %v2174
    %v2176 = vpop.f32.mrf.mxu0
    %v2177 = vadd.f32 %v2141, %v2176
    %2178 = vdwg.mxu0
    %2179 = vmatpush.msra.mxu0 0.0
    %2180 = vmatpush.msra.mxu0 0.0
    %2181 = vmatpush.msra.mxu0 0.0
    %2182 = vmatpush.msra.mxu0 0.0
    %2183 = vmatpush.msra.mxu0 0.0
    %2184 = vmatpush.msra.mxu0 0.0
    %2185 = vmatpush.msra.mxu0 0.0
    %2186 = vmatpush.msra.mxu0 0.0
    %2187 = vmatpush.msra.mxu0 0.0
    %2188 = vmatpush.msra.mxu0 0.0
    %2189 = vmatpush.msra.mxu0 0.0
    %2190 = vmatpush.msra.mxu0 0.0
    %2191 = vmatpush.msra.mxu0 0.0
    %2192 = vmatpush.msra.mxu0 0.0
    %2193 = vmatpush.msra.mxu0 0.0
    %v2194 = vand.u32 %v36, 4294901760
    %2195 = vmatpush.msra.mxu0 %v2194
    %v2196 = vand.u32 %v1963, 4294901760
    %2197 = vmatmul.f32.gmra.mxu0 %v2196
    %v2198 = vpop.f32.mrf.mxu0
    %v2199 = vadd.f32 %v2165, %v2198
    %v2200 = vand.u32 %v1966, 4294901760
    %2201 = vmatmul.f32.gmra.mxu0 %v2200
    %v2202 = vpop.f32.mrf.mxu0
    %v2203 = vadd.f32 %v2169, %v2202
    %v2204 = vand.u32 %v1969, 4294901760
    %2205 = vmatmul.f32.gmra.mxu0 %v2204
    %v2206 = vpop.f32.mrf.mxu0
    %v2207 = vadd.f32 %v2173, %v2206
    %v2208 = vand.u32 %v1972, 4294901760
    %2209 = vmatmul.f32.gmra.mxu0 %v2208
    %v2210 = vpop.f32.mrf.mxu0
    %v2211 = vadd.f32 %v2177, %v2210
    %2212 = vdwg.mxu0
    %v2214 = vsel %vm38, %v693, 0
    %v2217 = vsel %vm38, %v708, 0
    %v2220 = vsel %vm38, %v723, 0
    %v2223 = vsel %vm38, %v738, 0
    %2225 = vmatpush.msra.mxu0 0.0
    %2226 = vmatpush.msra.mxu0 0.0
    %2227 = vmatpush.msra.mxu0 0.0
    %2228 = vmatpush.msra.mxu0 0.0
    %2229 = vmatpush.msra.mxu0 0.0
    %2230 = vmatpush.msra.mxu0 0.0
    %2231 = vmatpush.msra.mxu0 0.0
    %2232 = vmatpush.msra.mxu0 0.0
    %2233 = vmatpush.msra.mxu0 0.0
    %2234 = vmatpush.msra.mxu0 0.0
    %2235 = vmatpush.msra.mxu0 0.0
    %2236 = vmatpush.msra.mxu0 0.0
    %2237 = vmatpush.msra.mxu0 0.0
    %2238 = vmatpush.msra.mxu0 0.0
    %2239 = vmatpush.msra.mxu0 0.0
    %v2240 = vand.u32 %v37, 4294901760
    %2241 = vmatpush.msra.mxu0 %v2240
    %v2242 = vand.u32 %v2214, 4294901760
    %v2243 = vsub.f32 %v2214, %v2242
    %v2244 = vand.u32 %v2243, 4294901760
    %v2245 = vsub.f32 %v2243, %v2244
    %v2246 = vand.u32 %v2245, 4294901760
    %2247 = vmatmul.f32.gmra.mxu0 %v2246
    %v2248 = vpop.f32.mrf.mxu0
    %v2249 = vadd.f32 %v1948, %v2248
    %v2250 = vand.u32 %v2217, 4294901760
    %v2251 = vsub.f32 %v2217, %v2250
    %v2252 = vand.u32 %v2251, 4294901760
    %v2253 = vsub.f32 %v2251, %v2252
    %v2254 = vand.u32 %v2253, 4294901760
    %2255 = vmatmul.f32.gmra.mxu0 %v2254
    %v2256 = vpop.f32.mrf.mxu0
    %v2257 = vadd.f32 %v1952, %v2256
    %v2258 = vand.u32 %v2220, 4294901760
    %v2259 = vsub.f32 %v2220, %v2258
    %v2260 = vand.u32 %v2259, 4294901760
    %v2261 = vsub.f32 %v2259, %v2260
    %v2262 = vand.u32 %v2261, 4294901760
    %2263 = vmatmul.f32.gmra.mxu0 %v2262
    %v2264 = vpop.f32.mrf.mxu0
    %v2265 = vadd.f32 %v1956, %v2264
    %v2266 = vand.u32 %v2223, 4294901760
    %v2267 = vsub.f32 %v2223, %v2266
    %v2268 = vand.u32 %v2267, 4294901760
    %v2269 = vsub.f32 %v2267, %v2268
    %v2270 = vand.u32 %v2269, 4294901760
    %2271 = vmatmul.f32.gmra.mxu0 %v2270
    %v2272 = vpop.f32.mrf.mxu0
    %v2273 = vadd.f32 %v1960, %v2272
    %2274 = vdwg.mxu0
    %2275 = vmatpush.msra.mxu0 0.0
    %2276 = vmatpush.msra.mxu0 0.0
    %2277 = vmatpush.msra.mxu0 0.0
    %2278 = vmatpush.msra.mxu0 0.0
    %2279 = vmatpush.msra.mxu0 0.0
    %2280 = vmatpush.msra.mxu0 0.0
    %2281 = vmatpush.msra.mxu0 0.0
    %2282 = vmatpush.msra.mxu0 0.0
    %2283 = vmatpush.msra.mxu0 0.0
    %2284 = vmatpush.msra.mxu0 0.0
    %2285 = vmatpush.msra.mxu0 0.0
    %2286 = vmatpush.msra.mxu0 0.0
    %2287 = vmatpush.msra.mxu0 0.0
    %2288 = vmatpush.msra.mxu0 0.0
    %2289 = vmatpush.msra.mxu0 0.0
    %v2290 = vand.u32 %v37, 4294901760
    %v2291 = vsub.f32 %v37, %v2290
    %v2292 = vand.u32 %v2291, 4294901760
    %v2293 = vsub.f32 %v2291, %v2292
    %v2294 = vand.u32 %v2293, 4294901760
    %2295 = vmatpush.msra.mxu0 %v2294
    %v2296 = vand.u32 %v2214, 4294901760
    %2297 = vmatmul.f32.gmra.mxu0 %v2296
    %v2298 = vpop.f32.mrf.mxu0
    %v2299 = vadd.f32 %v2249, %v2298
    %v2300 = vand.u32 %v2217, 4294901760
    %2301 = vmatmul.f32.gmra.mxu0 %v2300
    %v2302 = vpop.f32.mrf.mxu0
    %v2303 = vadd.f32 %v2257, %v2302
    %v2304 = vand.u32 %v2220, 4294901760
    %2305 = vmatmul.f32.gmra.mxu0 %v2304
    %v2306 = vpop.f32.mrf.mxu0
    %v2307 = vadd.f32 %v2265, %v2306
    %v2308 = vand.u32 %v2223, 4294901760
    %2309 = vmatmul.f32.gmra.mxu0 %v2308
    %v2310 = vpop.f32.mrf.mxu0
    %v2311 = vadd.f32 %v2273, %v2310
    %2312 = vdwg.mxu0
    %2313 = vmatpush.msra.mxu0 0.0
    %2314 = vmatpush.msra.mxu0 0.0
    %2315 = vmatpush.msra.mxu0 0.0
    %2316 = vmatpush.msra.mxu0 0.0
    %2317 = vmatpush.msra.mxu0 0.0
    %2318 = vmatpush.msra.mxu0 0.0
    %2319 = vmatpush.msra.mxu0 0.0
    %2320 = vmatpush.msra.mxu0 0.0
    %2321 = vmatpush.msra.mxu0 0.0
    %2322 = vmatpush.msra.mxu0 0.0
    %2323 = vmatpush.msra.mxu0 0.0
    %2324 = vmatpush.msra.mxu0 0.0
    %2325 = vmatpush.msra.mxu0 0.0
    %2326 = vmatpush.msra.mxu0 0.0
    %2327 = vmatpush.msra.mxu0 0.0
    %v2328 = vand.u32 %v37, 4294901760
    %v2329 = vsub.f32 %v37, %v2328
    %2330 = vmatpush.msra.mxu0 %v2329
    %v2331 = vand.u32 %v2214, 4294901760
    %v2332 = vsub.f32 %v2214, %v2331
    %2333 = vmatmul.f32.gmra.mxu0 %v2332
    %v2334 = vpop.f32.mrf.mxu0
    %v2335 = vadd.f32 %v2299, %v2334
    %v2336 = vand.u32 %v2217, 4294901760
    %v2337 = vsub.f32 %v2217, %v2336
    %2338 = vmatmul.f32.gmra.mxu0 %v2337
    %v2339 = vpop.f32.mrf.mxu0
    %v2340 = vadd.f32 %v2303, %v2339
    %v2341 = vand.u32 %v2220, 4294901760
    %v2342 = vsub.f32 %v2220, %v2341
    %2343 = vmatmul.f32.gmra.mxu0 %v2342
    %v2344 = vpop.f32.mrf.mxu0
    %v2345 = vadd.f32 %v2307, %v2344
    %v2346 = vand.u32 %v2223, 4294901760
    %v2347 = vsub.f32 %v2223, %v2346
    %2348 = vmatmul.f32.gmra.mxu0 %v2347
    %v2349 = vpop.f32.mrf.mxu0
    %v2350 = vadd.f32 %v2311, %v2349
    %2351 = vdwg.mxu0
    %2352 = vmatpush.msra.mxu0 0.0
    %2353 = vmatpush.msra.mxu0 0.0
    %2354 = vmatpush.msra.mxu0 0.0
    %2355 = vmatpush.msra.mxu0 0.0
    %2356 = vmatpush.msra.mxu0 0.0
    %2357 = vmatpush.msra.mxu0 0.0
    %2358 = vmatpush.msra.mxu0 0.0
    %2359 = vmatpush.msra.mxu0 0.0
    %2360 = vmatpush.msra.mxu0 0.0
    %2361 = vmatpush.msra.mxu0 0.0
    %2362 = vmatpush.msra.mxu0 0.0
    %2363 = vmatpush.msra.mxu0 0.0
    %2364 = vmatpush.msra.mxu0 0.0
    %2365 = vmatpush.msra.mxu0 0.0
    %2366 = vmatpush.msra.mxu0 0.0
    %v2367 = vand.u32 %v37, 4294901760
    %2368 = vmatpush.msra.mxu0 %v2367
    %v2369 = vand.u32 %v2214, 4294901760
    %v2370 = vsub.f32 %v2214, %v2369
    %v2371 = vand.u32 %v2370, 4294901760
    %2372 = vmatmul.f32.gmra.mxu0 %v2371
    %v2373 = vpop.f32.mrf.mxu0
    %v2374 = vadd.f32 %v2335, %v2373
    %v2375 = vand.u32 %v2217, 4294901760
    %v2376 = vsub.f32 %v2217, %v2375
    %v2377 = vand.u32 %v2376, 4294901760
    %2378 = vmatmul.f32.gmra.mxu0 %v2377
    %v2379 = vpop.f32.mrf.mxu0
    %v2380 = vadd.f32 %v2340, %v2379
    %v2381 = vand.u32 %v2220, 4294901760
    %v2382 = vsub.f32 %v2220, %v2381
    %v2383 = vand.u32 %v2382, 4294901760
    %2384 = vmatmul.f32.gmra.mxu0 %v2383
    %v2385 = vpop.f32.mrf.mxu0
    %v2386 = vadd.f32 %v2345, %v2385
    %v2387 = vand.u32 %v2223, 4294901760
    %v2388 = vsub.f32 %v2223, %v2387
    %v2389 = vand.u32 %v2388, 4294901760
    %2390 = vmatmul.f32.gmra.mxu0 %v2389
    %v2391 = vpop.f32.mrf.mxu0
    %v2392 = vadd.f32 %v2350, %v2391
    %2393 = vdwg.mxu0
    %2394 = vmatpush.msra.mxu0 0.0
    %2395 = vmatpush.msra.mxu0 0.0
    %2396 = vmatpush.msra.mxu0 0.0
    %2397 = vmatpush.msra.mxu0 0.0
    %2398 = vmatpush.msra.mxu0 0.0
    %2399 = vmatpush.msra.mxu0 0.0
    %2400 = vmatpush.msra.mxu0 0.0
    %2401 = vmatpush.msra.mxu0 0.0
    %2402 = vmatpush.msra.mxu0 0.0
    %2403 = vmatpush.msra.mxu0 0.0
    %2404 = vmatpush.msra.mxu0 0.0
    %2405 = vmatpush.msra.mxu0 0.0
    %2406 = vmatpush.msra.mxu0 0.0
    %2407 = vmatpush.msra.mxu0 0.0
    %2408 = vmatpush.msra.mxu0 0.0
    %v2409 = vand.u32 %v37, 4294901760
    %v2410 = vsub.f32 %v37, %v2409
    %v2411 = vand.u32 %v2410, 4294901760
    %2412 = vmatpush.msra.mxu0 %v2411
    %v2413 = vand.u32 %v2214, 4294901760
    %2414 = vmatmul.f32.gmra.mxu0 %v2413
    %v2415 = vpop.f32.mrf.mxu0
    %v2416 = vadd.f32 %v2374, %v2415
    %v2417 = vand.u32 %v2217, 4294901760
    %2418 = vmatmul.f32.gmra.mxu0 %v2417
    %v2419 = vpop.f32.mrf.mxu0
    %v2420 = vadd.f32 %v2380, %v2419
    %v2421 = vand.u32 %v2220, 4294901760
    %2422 = vmatmul.f32.gmra.mxu0 %v2421
    %v2423 = vpop.f32.mrf.mxu0
    %v2424 = vadd.f32 %v2386, %v2423
    %v2425 = vand.u32 %v2223, 4294901760
    %2426 = vmatmul.f32.gmra.mxu0 %v2425
    %v2427 = vpop.f32.mrf.mxu0
    %v2428 = vadd.f32 %v2392, %v2427
    %2429 = vdwg.mxu0
    %2430 = vmatpush.msra.mxu0 0.0
    %2431 = vmatpush.msra.mxu0 0.0
    %2432 = vmatpush.msra.mxu0 0.0
    %2433 = vmatpush.msra.mxu0 0.0
    %2434 = vmatpush.msra.mxu0 0.0
    %2435 = vmatpush.msra.mxu0 0.0
    %2436 = vmatpush.msra.mxu0 0.0
    %2437 = vmatpush.msra.mxu0 0.0
    %2438 = vmatpush.msra.mxu0 0.0
    %2439 = vmatpush.msra.mxu0 0.0
    %2440 = vmatpush.msra.mxu0 0.0
    %2441 = vmatpush.msra.mxu0 0.0
    %2442 = vmatpush.msra.mxu0 0.0
    %2443 = vmatpush.msra.mxu0 0.0
    %2444 = vmatpush.msra.mxu0 0.0
    %v2445 = vand.u32 %v37, 4294901760
    %2446 = vmatpush.msra.mxu0 %v2445
    %v2447 = vand.u32 %v2214, 4294901760
    %2448 = vmatmul.f32.gmra.mxu0 %v2447
    %v2449 = vpop.f32.mrf.mxu0
    %v2450 = vadd.f32 %v2416, %v2449
    %v2451 = vand.u32 %v2217, 4294901760
    %2452 = vmatmul.f32.gmra.mxu0 %v2451
    %v2453 = vpop.f32.mrf.mxu0
    %v2454 = vadd.f32 %v2420, %v2453
    %v2455 = vand.u32 %v2220, 4294901760
    %2456 = vmatmul.f32.gmra.mxu0 %v2455
    %v2457 = vpop.f32.mrf.mxu0
    %v2458 = vadd.f32 %v2424, %v2457
    %v2459 = vand.u32 %v2223, 4294901760
    %2460 = vmatmul.f32.gmra.mxu0 %v2459
    %v2461 = vpop.f32.mrf.mxu0
    %v2462 = vadd.f32 %v2428, %v2461
    %2463 = vdwg.mxu0
    %v2464 = vld [vmem:[%s1 + $0x10] sm:$0xff]
    %v2465 = vld [vmem:[%s1 + $0x30] sm:$0xff]
    %v2466 = vld [vmem:[%s2 + $0x10] sm:$0xff]
    %v2467 = vld [vmem:[%s2 + $0x30] sm:$0xff]
    %v2469 = vsel %vm38, %v2464, 0
    %2471 = vmatpush.xpose.msra.mxu0 0.0
    %2472 = vmatpush.xpose.msra.mxu0 0.0
    %2473 = vmatpush.xpose.msra.mxu0 0.0
    %2474 = vmatpush.xpose.msra.mxu0 0.0
    %2475 = vmatpush.xpose.msra.mxu0 0.0
    %2476 = vmatpush.xpose.msra.mxu0 0.0
    %2477 = vmatpush.xpose.msra.mxu0 0.0
    %2478 = vmatpush.xpose.msra.mxu0 0.0
    %2479 = vmatpush.xpose.msra.mxu0 0.0
    %2480 = vmatpush.xpose.msra.mxu0 0.0
    %2481 = vmatpush.xpose.msra.mxu0 0.0
    %2482 = vmatpush.xpose.msra.mxu0 0.0
    %2483 = vmatpush.xpose.msra.mxu0 0.0
    %2484 = vmatpush.xpose.msra.mxu0 0.0
    %2485 = vmatpush.xpose.msra.mxu0 0.0
    %v2486 = vand.u32 %v2469, 4294901760
    %2487 = vmatpush.xpose.msra.mxu0 %v2486
    %v2488 = vand.u32 %v40, 4294901760
    %v2489 = vsub.f32 %v40, %v2488
    %v2490 = vand.u32 %v2489, 4294901760
    %v2491 = vsub.f32 %v2489, %v2490
    %v2492 = vand.u32 %v2491, 4294901760
    %2493 = vmatmul.f32.gmra.mxu0 %v2492
    %v2494 = vpop.f32.mrf.mxu0
    %v2495 = vadd.f32 0.0, %v2494
    %v2496 = vand.u32 %v43, 4294901760
    %v2497 = vsub.f32 %v43, %v2496
    %v2498 = vand.u32 %v2497, 4294901760
    %v2499 = vsub.f32 %v2497, %v2498
    %v2500 = vand.u32 %v2499, 4294901760
    %2501 = vmatmul.f32.gmra.mxu0 %v2500
    %v2502 = vpop.f32.mrf.mxu0
    %v2503 = vadd.f32 0.0, %v2502
    %v2504 = vand.u32 %v46, 4294901760
    %v2505 = vsub.f32 %v46, %v2504
    %v2506 = vand.u32 %v2505, 4294901760
    %v2507 = vsub.f32 %v2505, %v2506
    %v2508 = vand.u32 %v2507, 4294901760
    %2509 = vmatmul.f32.gmra.mxu0 %v2508
    %v2510 = vpop.f32.mrf.mxu0
    %v2511 = vadd.f32 0.0, %v2510
    %v2512 = vand.u32 %v49, 4294901760
    %v2513 = vsub.f32 %v49, %v2512
    %v2514 = vand.u32 %v2513, 4294901760
    %v2515 = vsub.f32 %v2513, %v2514
    %v2516 = vand.u32 %v2515, 4294901760
    %2517 = vmatmul.f32.gmra.mxu0 %v2516
    %v2518 = vpop.f32.mrf.mxu0
    %v2519 = vadd.f32 0.0, %v2518
    %2520 = vdwg.mxu0
    %2521 = vmatpush.xpose.msra.mxu0 0.0
    %2522 = vmatpush.xpose.msra.mxu0 0.0
    %2523 = vmatpush.xpose.msra.mxu0 0.0
    %2524 = vmatpush.xpose.msra.mxu0 0.0
    %2525 = vmatpush.xpose.msra.mxu0 0.0
    %2526 = vmatpush.xpose.msra.mxu0 0.0
    %2527 = vmatpush.xpose.msra.mxu0 0.0
    %2528 = vmatpush.xpose.msra.mxu0 0.0
    %2529 = vmatpush.xpose.msra.mxu0 0.0
    %2530 = vmatpush.xpose.msra.mxu0 0.0
    %2531 = vmatpush.xpose.msra.mxu0 0.0
    %2532 = vmatpush.xpose.msra.mxu0 0.0
    %2533 = vmatpush.xpose.msra.mxu0 0.0
    %2534 = vmatpush.xpose.msra.mxu0 0.0
    %2535 = vmatpush.xpose.msra.mxu0 0.0
    %v2536 = vand.u32 %v2469, 4294901760
    %v2537 = vsub.f32 %v2469, %v2536
    %v2538 = vand.u32 %v2537, 4294901760
    %v2539 = vsub.f32 %v2537, %v2538
    %v2540 = vand.u32 %v2539, 4294901760
    %2541 = vmatpush.xpose.msra.mxu0 %v2540
    %v2542 = vand.u32 %v40, 4294901760
    %2543 = vmatmul.f32.gmra.mxu0 %v2542
    %v2544 = vpop.f32.mrf.mxu0
    %v2545 = vadd.f32 %v2495, %v2544
    %v2546 = vand.u32 %v43, 4294901760
    %2547 = vmatmul.f32.gmra.mxu0 %v2546
    %v2548 = vpop.f32.mrf.mxu0
    %v2549 = vadd.f32 %v2503, %v2548
    %v2550 = vand.u32 %v46, 4294901760
    %2551 = vmatmul.f32.gmra.mxu0 %v2550
    %v2552 = vpop.f32.mrf.mxu0
    %v2553 = vadd.f32 %v2511, %v2552
    %v2554 = vand.u32 %v49, 4294901760
    %2555 = vmatmul.f32.gmra.mxu0 %v2554
    %v2556 = vpop.f32.mrf.mxu0
    %v2557 = vadd.f32 %v2519, %v2556
    %2558 = vdwg.mxu0
    %2559 = vmatpush.xpose.msra.mxu0 0.0
    %2560 = vmatpush.xpose.msra.mxu0 0.0
    %2561 = vmatpush.xpose.msra.mxu0 0.0
    %2562 = vmatpush.xpose.msra.mxu0 0.0
    %2563 = vmatpush.xpose.msra.mxu0 0.0
    %2564 = vmatpush.xpose.msra.mxu0 0.0
    %2565 = vmatpush.xpose.msra.mxu0 0.0
    %2566 = vmatpush.xpose.msra.mxu0 0.0
    %2567 = vmatpush.xpose.msra.mxu0 0.0
    %2568 = vmatpush.xpose.msra.mxu0 0.0
    %2569 = vmatpush.xpose.msra.mxu0 0.0
    %2570 = vmatpush.xpose.msra.mxu0 0.0
    %2571 = vmatpush.xpose.msra.mxu0 0.0
    %2572 = vmatpush.xpose.msra.mxu0 0.0
    %2573 = vmatpush.xpose.msra.mxu0 0.0
    %v2574 = vand.u32 %v2469, 4294901760
    %v2575 = vsub.f32 %v2469, %v2574
    %2576 = vmatpush.xpose.msra.mxu0 %v2575
    %v2577 = vand.u32 %v40, 4294901760
    %v2578 = vsub.f32 %v40, %v2577
    %2579 = vmatmul.f32.gmra.mxu0 %v2578
    %v2580 = vpop.f32.mrf.mxu0
    %v2581 = vadd.f32 %v2545, %v2580
    %v2582 = vand.u32 %v43, 4294901760
    %v2583 = vsub.f32 %v43, %v2582
    %2584 = vmatmul.f32.gmra.mxu0 %v2583
    %v2585 = vpop.f32.mrf.mxu0
    %v2586 = vadd.f32 %v2549, %v2585
    %v2587 = vand.u32 %v46, 4294901760
    %v2588 = vsub.f32 %v46, %v2587
    %2589 = vmatmul.f32.gmra.mxu0 %v2588
    %v2590 = vpop.f32.mrf.mxu0
    %v2591 = vadd.f32 %v2553, %v2590
    %v2592 = vand.u32 %v49, 4294901760
    %v2593 = vsub.f32 %v49, %v2592
    %2594 = vmatmul.f32.gmra.mxu0 %v2593
    %v2595 = vpop.f32.mrf.mxu0
    %v2596 = vadd.f32 %v2557, %v2595
    %2597 = vdwg.mxu0
    %2598 = vmatpush.xpose.msra.mxu0 0.0
    %2599 = vmatpush.xpose.msra.mxu0 0.0
    %2600 = vmatpush.xpose.msra.mxu0 0.0
    %2601 = vmatpush.xpose.msra.mxu0 0.0
    %2602 = vmatpush.xpose.msra.mxu0 0.0
    %2603 = vmatpush.xpose.msra.mxu0 0.0
    %2604 = vmatpush.xpose.msra.mxu0 0.0
    %2605 = vmatpush.xpose.msra.mxu0 0.0
    %2606 = vmatpush.xpose.msra.mxu0 0.0
    %2607 = vmatpush.xpose.msra.mxu0 0.0
    %2608 = vmatpush.xpose.msra.mxu0 0.0
    %2609 = vmatpush.xpose.msra.mxu0 0.0
    %2610 = vmatpush.xpose.msra.mxu0 0.0
    %2611 = vmatpush.xpose.msra.mxu0 0.0
    %2612 = vmatpush.xpose.msra.mxu0 0.0
    %v2613 = vand.u32 %v2469, 4294901760
    %2614 = vmatpush.xpose.msra.mxu0 %v2613
    %v2615 = vand.u32 %v40, 4294901760
    %v2616 = vsub.f32 %v40, %v2615
    %v2617 = vand.u32 %v2616, 4294901760
    %2618 = vmatmul.f32.gmra.mxu0 %v2617
    %v2619 = vpop.f32.mrf.mxu0
    %v2620 = vadd.f32 %v2581, %v2619
    %v2621 = vand.u32 %v43, 4294901760
    %v2622 = vsub.f32 %v43, %v2621
    %v2623 = vand.u32 %v2622, 4294901760
    %2624 = vmatmul.f32.gmra.mxu0 %v2623
    %v2625 = vpop.f32.mrf.mxu0
    %v2626 = vadd.f32 %v2586, %v2625
    %v2627 = vand.u32 %v46, 4294901760
    %v2628 = vsub.f32 %v46, %v2627
    %v2629 = vand.u32 %v2628, 4294901760
    %2630 = vmatmul.f32.gmra.mxu0 %v2629
    %v2631 = vpop.f32.mrf.mxu0
    %v2632 = vadd.f32 %v2591, %v2631
    %v2633 = vand.u32 %v49, 4294901760
    %v2634 = vsub.f32 %v49, %v2633
    %v2635 = vand.u32 %v2634, 4294901760
    %2636 = vmatmul.f32.gmra.mxu0 %v2635
    %v2637 = vpop.f32.mrf.mxu0
    %v2638 = vadd.f32 %v2596, %v2637
    %2639 = vdwg.mxu0
    %2640 = vmatpush.xpose.msra.mxu0 0.0
    %2641 = vmatpush.xpose.msra.mxu0 0.0
    %2642 = vmatpush.xpose.msra.mxu0 0.0
    %2643 = vmatpush.xpose.msra.mxu0 0.0
    %2644 = vmatpush.xpose.msra.mxu0 0.0
    %2645 = vmatpush.xpose.msra.mxu0 0.0
    %2646 = vmatpush.xpose.msra.mxu0 0.0
    %2647 = vmatpush.xpose.msra.mxu0 0.0
    %2648 = vmatpush.xpose.msra.mxu0 0.0
    %2649 = vmatpush.xpose.msra.mxu0 0.0
    %2650 = vmatpush.xpose.msra.mxu0 0.0
    %2651 = vmatpush.xpose.msra.mxu0 0.0
    %2652 = vmatpush.xpose.msra.mxu0 0.0
    %2653 = vmatpush.xpose.msra.mxu0 0.0
    %2654 = vmatpush.xpose.msra.mxu0 0.0
    %v2655 = vand.u32 %v2469, 4294901760
    %v2656 = vsub.f32 %v2469, %v2655
    %v2657 = vand.u32 %v2656, 4294901760
    %2658 = vmatpush.xpose.msra.mxu0 %v2657
    %v2659 = vand.u32 %v40, 4294901760
    %2660 = vmatmul.f32.gmra.mxu0 %v2659
    %v2661 = vpop.f32.mrf.mxu0
    %v2662 = vadd.f32 %v2620, %v2661
    %v2663 = vand.u32 %v43, 4294901760
    %2664 = vmatmul.f32.gmra.mxu0 %v2663
    %v2665 = vpop.f32.mrf.mxu0
    %v2666 = vadd.f32 %v2626, %v2665
    %v2667 = vand.u32 %v46, 4294901760
    %2668 = vmatmul.f32.gmra.mxu0 %v2667
    %v2669 = vpop.f32.mrf.mxu0
    %v2670 = vadd.f32 %v2632, %v2669
    %v2671 = vand.u32 %v49, 4294901760
    %2672 = vmatmul.f32.gmra.mxu0 %v2671
    %v2673 = vpop.f32.mrf.mxu0
    %v2674 = vadd.f32 %v2638, %v2673
    %2675 = vdwg.mxu0
    %2676 = vmatpush.xpose.msra.mxu0 0.0
    %2677 = vmatpush.xpose.msra.mxu0 0.0
    %2678 = vmatpush.xpose.msra.mxu0 0.0
    %2679 = vmatpush.xpose.msra.mxu0 0.0
    %2680 = vmatpush.xpose.msra.mxu0 0.0
    %2681 = vmatpush.xpose.msra.mxu0 0.0
    %2682 = vmatpush.xpose.msra.mxu0 0.0
    %2683 = vmatpush.xpose.msra.mxu0 0.0
    %2684 = vmatpush.xpose.msra.mxu0 0.0
    %2685 = vmatpush.xpose.msra.mxu0 0.0
    %2686 = vmatpush.xpose.msra.mxu0 0.0
    %2687 = vmatpush.xpose.msra.mxu0 0.0
    %2688 = vmatpush.xpose.msra.mxu0 0.0
    %2689 = vmatpush.xpose.msra.mxu0 0.0
    %2690 = vmatpush.xpose.msra.mxu0 0.0
    %v2691 = vand.u32 %v2469, 4294901760
    %2692 = vmatpush.xpose.msra.mxu0 %v2691
    %v2693 = vand.u32 %v40, 4294901760
    %2694 = vmatmul.f32.gmra.mxu0 %v2693
    %v2695 = vpop.f32.mrf.mxu0
    %v2696 = vadd.f32 %v2662, %v2695
    %v2697 = vand.u32 %v43, 4294901760
    %2698 = vmatmul.f32.gmra.mxu0 %v2697
    %v2699 = vpop.f32.mrf.mxu0
    %v2700 = vadd.f32 %v2666, %v2699
    %v2701 = vand.u32 %v46, 4294901760
    %2702 = vmatmul.f32.gmra.mxu0 %v2701
    %v2703 = vpop.f32.mrf.mxu0
    %v2704 = vadd.f32 %v2670, %v2703
    %v2705 = vand.u32 %v49, 4294901760
    %2706 = vmatmul.f32.gmra.mxu0 %v2705
    %v2707 = vpop.f32.mrf.mxu0
    %v2708 = vadd.f32 %v2674, %v2707
    %2709 = vdwg.mxu0
    %v2711 = vsel %vm38, %v2465, 0
    %2713 = vmatpush.xpose.msra.mxu0 0.0
    %2714 = vmatpush.xpose.msra.mxu0 0.0
    %2715 = vmatpush.xpose.msra.mxu0 0.0
    %2716 = vmatpush.xpose.msra.mxu0 0.0
    %2717 = vmatpush.xpose.msra.mxu0 0.0
    %2718 = vmatpush.xpose.msra.mxu0 0.0
    %2719 = vmatpush.xpose.msra.mxu0 0.0
    %2720 = vmatpush.xpose.msra.mxu0 0.0
    %2721 = vmatpush.xpose.msra.mxu0 0.0
    %2722 = vmatpush.xpose.msra.mxu0 0.0
    %2723 = vmatpush.xpose.msra.mxu0 0.0
    %2724 = vmatpush.xpose.msra.mxu0 0.0
    %2725 = vmatpush.xpose.msra.mxu0 0.0
    %2726 = vmatpush.xpose.msra.mxu0 0.0
    %2727 = vmatpush.xpose.msra.mxu0 0.0
    %v2728 = vand.u32 %v2711, 4294901760
    %2729 = vmatpush.xpose.msra.mxu0 %v2728
    %v2730 = vand.u32 %v294, 4294901760
    %v2731 = vsub.f32 %v294, %v2730
    %v2732 = vand.u32 %v2731, 4294901760
    %v2733 = vsub.f32 %v2731, %v2732
    %v2734 = vand.u32 %v2733, 4294901760
    %2735 = vmatmul.f32.gmra.mxu0 %v2734
    %v2736 = vpop.f32.mrf.mxu0
    %v2737 = vadd.f32 0.0, %v2736
    %v2738 = vand.u32 %v297, 4294901760
    %v2739 = vsub.f32 %v297, %v2738
    %v2740 = vand.u32 %v2739, 4294901760
    %v2741 = vsub.f32 %v2739, %v2740
    %v2742 = vand.u32 %v2741, 4294901760
    %2743 = vmatmul.f32.gmra.mxu0 %v2742
    %v2744 = vpop.f32.mrf.mxu0
    %v2745 = vadd.f32 0.0, %v2744
    %v2746 = vand.u32 %v300, 4294901760
    %v2747 = vsub.f32 %v300, %v2746
    %v2748 = vand.u32 %v2747, 4294901760
    %v2749 = vsub.f32 %v2747, %v2748
    %v2750 = vand.u32 %v2749, 4294901760
    %2751 = vmatmul.f32.gmra.mxu0 %v2750
    %v2752 = vpop.f32.mrf.mxu0
    %v2753 = vadd.f32 0.0, %v2752
    %v2754 = vand.u32 %v303, 4294901760
    %v2755 = vsub.f32 %v303, %v2754
    %v2756 = vand.u32 %v2755, 4294901760
    %v2757 = vsub.f32 %v2755, %v2756
    %v2758 = vand.u32 %v2757, 4294901760
    %2759 = vmatmul.f32.gmra.mxu0 %v2758
    %v2760 = vpop.f32.mrf.mxu0
    %v2761 = vadd.f32 0.0, %v2760
    %2762 = vdwg.mxu0
    %2763 = vmatpush.xpose.msra.mxu0 0.0
    %2764 = vmatpush.xpose.msra.mxu0 0.0
    %2765 = vmatpush.xpose.msra.mxu0 0.0
    %2766 = vmatpush.xpose.msra.mxu0 0.0
    %2767 = vmatpush.xpose.msra.mxu0 0.0
    %2768 = vmatpush.xpose.msra.mxu0 0.0
    %2769 = vmatpush.xpose.msra.mxu0 0.0
    %2770 = vmatpush.xpose.msra.mxu0 0.0
    %2771 = vmatpush.xpose.msra.mxu0 0.0
    %2772 = vmatpush.xpose.msra.mxu0 0.0
    %2773 = vmatpush.xpose.msra.mxu0 0.0
    %2774 = vmatpush.xpose.msra.mxu0 0.0
    %2775 = vmatpush.xpose.msra.mxu0 0.0
    %2776 = vmatpush.xpose.msra.mxu0 0.0
    %2777 = vmatpush.xpose.msra.mxu0 0.0
    %v2778 = vand.u32 %v2711, 4294901760
    %v2779 = vsub.f32 %v2711, %v2778
    %v2780 = vand.u32 %v2779, 4294901760
    %v2781 = vsub.f32 %v2779, %v2780
    %v2782 = vand.u32 %v2781, 4294901760
    %2783 = vmatpush.xpose.msra.mxu0 %v2782
    %v2784 = vand.u32 %v294, 4294901760
    %2785 = vmatmul.f32.gmra.mxu0 %v2784
    %v2786 = vpop.f32.mrf.mxu0
    %v2787 = vadd.f32 %v2737, %v2786
    %v2788 = vand.u32 %v297, 4294901760
    %2789 = vmatmul.f32.gmra.mxu0 %v2788
    %v2790 = vpop.f32.mrf.mxu0
    %v2791 = vadd.f32 %v2745, %v2790
    %v2792 = vand.u32 %v300, 4294901760
    %2793 = vmatmul.f32.gmra.mxu0 %v2792
    %v2794 = vpop.f32.mrf.mxu0
    %v2795 = vadd.f32 %v2753, %v2794
    %v2796 = vand.u32 %v303, 4294901760
    %2797 = vmatmul.f32.gmra.mxu0 %v2796
    %v2798 = vpop.f32.mrf.mxu0
    %v2799 = vadd.f32 %v2761, %v2798
    %2800 = vdwg.mxu0
    %2801 = vmatpush.xpose.msra.mxu0 0.0
    %2802 = vmatpush.xpose.msra.mxu0 0.0
    %2803 = vmatpush.xpose.msra.mxu0 0.0
    %2804 = vmatpush.xpose.msra.mxu0 0.0
    %2805 = vmatpush.xpose.msra.mxu0 0.0
    %2806 = vmatpush.xpose.msra.mxu0 0.0
    %2807 = vmatpush.xpose.msra.mxu0 0.0
    %2808 = vmatpush.xpose.msra.mxu0 0.0
    %2809 = vmatpush.xpose.msra.mxu0 0.0
    %2810 = vmatpush.xpose.msra.mxu0 0.0
    %2811 = vmatpush.xpose.msra.mxu0 0.0
    %2812 = vmatpush.xpose.msra.mxu0 0.0
    %2813 = vmatpush.xpose.msra.mxu0 0.0
    %2814 = vmatpush.xpose.msra.mxu0 0.0
    %2815 = vmatpush.xpose.msra.mxu0 0.0
    %v2816 = vand.u32 %v2711, 4294901760
    %v2817 = vsub.f32 %v2711, %v2816
    %2818 = vmatpush.xpose.msra.mxu0 %v2817
    %v2819 = vand.u32 %v294, 4294901760
    %v2820 = vsub.f32 %v294, %v2819
    %2821 = vmatmul.f32.gmra.mxu0 %v2820
    %v2822 = vpop.f32.mrf.mxu0
    %v2823 = vadd.f32 %v2787, %v2822
    %v2824 = vand.u32 %v297, 4294901760
    %v2825 = vsub.f32 %v297, %v2824
    %2826 = vmatmul.f32.gmra.mxu0 %v2825
    %v2827 = vpop.f32.mrf.mxu0
    %v2828 = vadd.f32 %v2791, %v2827
    %v2829 = vand.u32 %v300, 4294901760
    %v2830 = vsub.f32 %v300, %v2829
    %2831 = vmatmul.f32.gmra.mxu0 %v2830
    %v2832 = vpop.f32.mrf.mxu0
    %v2833 = vadd.f32 %v2795, %v2832
    %v2834 = vand.u32 %v303, 4294901760
    %v2835 = vsub.f32 %v303, %v2834
    %2836 = vmatmul.f32.gmra.mxu0 %v2835
    %v2837 = vpop.f32.mrf.mxu0
    %v2838 = vadd.f32 %v2799, %v2837
    %2839 = vdwg.mxu0
    %2840 = vmatpush.xpose.msra.mxu0 0.0
    %2841 = vmatpush.xpose.msra.mxu0 0.0
    %2842 = vmatpush.xpose.msra.mxu0 0.0
    %2843 = vmatpush.xpose.msra.mxu0 0.0
    %2844 = vmatpush.xpose.msra.mxu0 0.0
    %2845 = vmatpush.xpose.msra.mxu0 0.0
    %2846 = vmatpush.xpose.msra.mxu0 0.0
    %2847 = vmatpush.xpose.msra.mxu0 0.0
    %2848 = vmatpush.xpose.msra.mxu0 0.0
    %2849 = vmatpush.xpose.msra.mxu0 0.0
    %2850 = vmatpush.xpose.msra.mxu0 0.0
    %2851 = vmatpush.xpose.msra.mxu0 0.0
    %2852 = vmatpush.xpose.msra.mxu0 0.0
    %2853 = vmatpush.xpose.msra.mxu0 0.0
    %2854 = vmatpush.xpose.msra.mxu0 0.0
    %v2855 = vand.u32 %v2711, 4294901760
    %2856 = vmatpush.xpose.msra.mxu0 %v2855
    %v2857 = vand.u32 %v294, 4294901760
    %v2858 = vsub.f32 %v294, %v2857
    %v2859 = vand.u32 %v2858, 4294901760
    %2860 = vmatmul.f32.gmra.mxu0 %v2859
    %v2861 = vpop.f32.mrf.mxu0
    %v2862 = vadd.f32 %v2823, %v2861
    %v2863 = vand.u32 %v297, 4294901760
    %v2864 = vsub.f32 %v297, %v2863
    %v2865 = vand.u32 %v2864, 4294901760
    %2866 = vmatmul.f32.gmra.mxu0 %v2865
    %v2867 = vpop.f32.mrf.mxu0
    %v2868 = vadd.f32 %v2828, %v2867
    %v2869 = vand.u32 %v300, 4294901760
    %v2870 = vsub.f32 %v300, %v2869
    %v2871 = vand.u32 %v2870, 4294901760
    %2872 = vmatmul.f32.gmra.mxu0 %v2871
    %v2873 = vpop.f32.mrf.mxu0
    %v2874 = vadd.f32 %v2833, %v2873
    %v2875 = vand.u32 %v303, 4294901760
    %v2876 = vsub.f32 %v303, %v2875
    %v2877 = vand.u32 %v2876, 4294901760
    %2878 = vmatmul.f32.gmra.mxu0 %v2877
    %v2879 = vpop.f32.mrf.mxu0
    %v2880 = vadd.f32 %v2838, %v2879
    %2881 = vdwg.mxu0
    %2882 = vmatpush.xpose.msra.mxu0 0.0
    %2883 = vmatpush.xpose.msra.mxu0 0.0
    %2884 = vmatpush.xpose.msra.mxu0 0.0
    %2885 = vmatpush.xpose.msra.mxu0 0.0
    %2886 = vmatpush.xpose.msra.mxu0 0.0
    %2887 = vmatpush.xpose.msra.mxu0 0.0
    %2888 = vmatpush.xpose.msra.mxu0 0.0
    %2889 = vmatpush.xpose.msra.mxu0 0.0
    %2890 = vmatpush.xpose.msra.mxu0 0.0
    %2891 = vmatpush.xpose.msra.mxu0 0.0
    %2892 = vmatpush.xpose.msra.mxu0 0.0
    %2893 = vmatpush.xpose.msra.mxu0 0.0
    %2894 = vmatpush.xpose.msra.mxu0 0.0
    %2895 = vmatpush.xpose.msra.mxu0 0.0
    %2896 = vmatpush.xpose.msra.mxu0 0.0
    %v2897 = vand.u32 %v2711, 4294901760
    %v2898 = vsub.f32 %v2711, %v2897
    %v2899 = vand.u32 %v2898, 4294901760
    %2900 = vmatpush.xpose.msra.mxu0 %v2899
    %v2901 = vand.u32 %v294, 4294901760
    %2902 = vmatmul.f32.gmra.mxu0 %v2901
    %v2903 = vpop.f32.mrf.mxu0
    %v2904 = vadd.f32 %v2862, %v2903
    %v2905 = vand.u32 %v297, 4294901760
    %2906 = vmatmul.f32.gmra.mxu0 %v2905
    %v2907 = vpop.f32.mrf.mxu0
    %v2908 = vadd.f32 %v2868, %v2907
    %v2909 = vand.u32 %v300, 4294901760
    %2910 = vmatmul.f32.gmra.mxu0 %v2909
    %v2911 = vpop.f32.mrf.mxu0
    %v2912 = vadd.f32 %v2874, %v2911
    %v2913 = vand.u32 %v303, 4294901760
    %2914 = vmatmul.f32.gmra.mxu0 %v2913
    %v2915 = vpop.f32.mrf.mxu0
    %v2916 = vadd.f32 %v2880, %v2915
    %2917 = vdwg.mxu0
    %2918 = vmatpush.xpose.msra.mxu0 0.0
    %2919 = vmatpush.xpose.msra.mxu0 0.0
    %2920 = vmatpush.xpose.msra.mxu0 0.0
    %2921 = vmatpush.xpose.msra.mxu0 0.0
    %2922 = vmatpush.xpose.msra.mxu0 0.0
    %2923 = vmatpush.xpose.msra.mxu0 0.0
    %2924 = vmatpush.xpose.msra.mxu0 0.0
    %2925 = vmatpush.xpose.msra.mxu0 0.0
    %2926 = vmatpush.xpose.msra.mxu0 0.0
    %2927 = vmatpush.xpose.msra.mxu0 0.0
    %2928 = vmatpush.xpose.msra.mxu0 0.0
    %2929 = vmatpush.xpose.msra.mxu0 0.0
    %2930 = vmatpush.xpose.msra.mxu0 0.0
    %2931 = vmatpush.xpose.msra.mxu0 0.0
    %2932 = vmatpush.xpose.msra.mxu0 0.0
    %v2933 = vand.u32 %v2711, 4294901760
    %2934 = vmatpush.xpose.msra.mxu0 %v2933
    %v2935 = vand.u32 %v294, 4294901760
    %2936 = vmatmul.f32.gmra.mxu0 %v2935
    %v2937 = vpop.f32.mrf.mxu0
    %v2938 = vadd.f32 %v2904, %v2937
    %v2939 = vand.u32 %v297, 4294901760
    %2940 = vmatmul.f32.gmra.mxu0 %v2939
    %v2941 = vpop.f32.mrf.mxu0
    %v2942 = vadd.f32 %v2908, %v2941
    %v2943 = vand.u32 %v300, 4294901760
    %2944 = vmatmul.f32.gmra.mxu0 %v2943
    %v2945 = vpop.f32.mrf.mxu0
    %v2946 = vadd.f32 %v2912, %v2945
    %v2947 = vand.u32 %v303, 4294901760
    %2948 = vmatmul.f32.gmra.mxu0 %v2947
    %v2949 = vpop.f32.mrf.mxu0
    %v2950 = vadd.f32 %v2916, %v2949
    %2951 = vdwg.mxu0
    %v2952 = vsel %vm38, %v2696, -inf
    %2953 = vmax.xlane.f32.xlu0 %v2952
    %v2954 = vpop.xlane.xlu0 %2953
    %v2955 = vsel %vm38, %v2700, -inf
    %2956 = vmax.xlane.f32.xlu0 %v2955
    %v2957 = vpop.xlane.xlu0 %2956
    %v2958 = vsel %vm38, %v2704, -inf
    %2959 = vmax.xlane.f32.xlu0 %v2958
    %v2960 = vpop.xlane.xlu0 %2959
    %v2961 = vsel %vm38, %v2708, -inf
    %2962 = vmax.xlane.f32.xlu0 %v2961
    %v2963 = vpop.xlane.xlu0 %2962
    %v2964 = vsel %vm38, %v2938, -inf
    %2965 = vmax.xlane.f32.xlu0 %v2964
    %v2966 = vpop.xlane.xlu0 %2965
    %v2967 = vsel %vm38, %v2942, -inf
    %2968 = vmax.xlane.f32.xlu0 %v2967
    %v2969 = vpop.xlane.xlu0 %2968
    %v2970 = vsel %vm38, %v2946, -inf
    %2971 = vmax.xlane.f32.xlu0 %v2970
    %v2972 = vpop.xlane.xlu0 %2971
    %v2973 = vsel %vm38, %v2950, -inf
    %2974 = vmax.xlane.f32.xlu0 %v2973
    %v2975 = vpop.xlane.xlu0 %2974
    %v2976 = vsub.f32 %v2696, %v2954
    %v2977 = vsub.f32 %v2700, %v2957
    %v2978 = vsub.f32 %v2704, %v2960
    %v2979 = vsub.f32 %v2708, %v2963
    %v2980 = vsub.f32 %v2938, %v2966
    %v2981 = vsub.f32 %v2942, %v2969
    %v2982 = vsub.f32 %v2946, %v2972
    %v2983 = vsub.f32 %v2950, %v2975
    %v2984 = vmul.f32 %v2976, 1.442695
    %v2985 = vpow.pop %v2984
    %v2986 = vmul.f32 %v2977, 1.442695
    %v2987 = vpow.pop %v2986
    %v2988 = vmul.f32 %v2978, 1.442695
    %v2989 = vpow.pop %v2988
    %v2990 = vmul.f32 %v2979, 1.442695
    %v2991 = vpow.pop %v2990
    %v2992 = vmul.f32 %v2980, 1.442695
    %v2993 = vpow.pop %v2992
    %v2994 = vmul.f32 %v2981, 1.442695
    %v2995 = vpow.pop %v2994
    %v2996 = vmul.f32 %v2982, 1.442695
    %v2997 = vpow.pop %v2996
    %v2998 = vmul.f32 %v2983, 1.442695
    %v2999 = vpow.pop %v2998
    %v3000 = vsel %vm38, %v2985, 0.0
    %3001 = vadd.xlane.f32.xlu0 %v3000
    %v3002 = vpop.xlane.xlu0 %3001
    %v3003 = vsel %vm38, %v2987, 0.0
    %3004 = vadd.xlane.f32.xlu0 %v3003
    %v3005 = vpop.xlane.xlu0 %3004
    %v3006 = vsel %vm38, %v2989, 0.0
    %3007 = vadd.xlane.f32.xlu0 %v3006
    %v3008 = vpop.xlane.xlu0 %3007
    %v3009 = vsel %vm38, %v2991, 0.0
    %3010 = vadd.xlane.f32.xlu0 %v3009
    %v3011 = vpop.xlane.xlu0 %3010
    %v3012 = vsel %vm38, %v2993, 0.0
    %3013 = vadd.xlane.f32.xlu0 %v3012
    %v3014 = vpop.xlane.xlu0 %3013
    %v3015 = vsel %vm38, %v2995, 0.0
    %3016 = vadd.xlane.f32.xlu0 %v3015
    %v3017 = vpop.xlane.xlu0 %3016
    %v3018 = vsel %vm38, %v2997, 0.0
    %3019 = vadd.xlane.f32.xlu0 %v3018
    %v3020 = vpop.xlane.xlu0 %3019
    %v3021 = vsel %vm38, %v2999, 0.0
    %3022 = vadd.xlane.f32.xlu0 %v3021
    %v3023 = vpop.xlane.xlu0 %3022
    %v3024 = vrcp.pop %v3002
    %v3025 = vmul.f32 %v3002, %v3024
    %v3026 = vsub.f32 1.0, %v3025
    %v3027 = vmul.f32 %v3024, %v3026
    %v3028 = vadd.f32 %v3024, %v3027
    %vm3029 = vweird.f32 %v3002
    %vm3030 = vweird.f32 %v3024
    %vm3031 = vmor %vm3029, %vm3030
    %v3032 = vsel %vm3031, %v3024, %v3028
    %v3033 = vand.u32 2147483647, %v3002
    %vm3034 = vcmp.eq.f32.partialorder %v3033, 8.507059e+37
    %v3035 = vand.u32 %v3002, 2147483648
    %v3036 = vor.u32 1.1754944e-38, %v3035
    %v3037 = vsel %vm3034, %v3036, %v3032
    %v3038 = vmul.f32 %v2985, %v3037
    %v3039 = vrcp.pop %v3005
    %v3040 = vmul.f32 %v3005, %v3039
    %v3041 = vsub.f32 1.0, %v3040
    %v3042 = vmul.f32 %v3039, %v3041
    %v3043 = vadd.f32 %v3039, %v3042
    %vm3044 = vweird.f32 %v3005
    %vm3045 = vweird.f32 %v3039
    %vm3046 = vmor %vm3044, %vm3045
    %v3047 = vsel %vm3046, %v3039, %v3043
    %v3048 = vand.u32 2147483647, %v3005
    %vm3049 = vcmp.eq.f32.partialorder %v3048, 8.507059e+37
    %v3050 = vand.u32 %v3005, 2147483648
    %v3051 = vor.u32 1.1754944e-38, %v3050
    %v3052 = vsel %vm3049, %v3051, %v3047
    %v3053 = vmul.f32 %v2987, %v3052
    %v3054 = vrcp.pop %v3008
    %v3055 = vmul.f32 %v3008, %v3054
    %v3056 = vsub.f32 1.0, %v3055
    %v3057 = vmul.f32 %v3054, %v3056
    %v3058 = vadd.f32 %v3054, %v3057
    %vm3059 = vweird.f32 %v3008
    %vm3060 = vweird.f32 %v3054
    %vm3061 = vmor %vm3059, %vm3060
    %v3062 = vsel %vm3061, %v3054, %v3058
    %v3063 = vand.u32 2147483647, %v3008
    %vm3064 = vcmp.eq.f32.partialorder %v3063, 8.507059e+37
    %v3065 = vand.u32 %v3008, 2147483648
    %v3066 = vor.u32 1.1754944e-38, %v3065
    %v3067 = vsel %vm3064, %v3066, %v3062
    %v3068 = vmul.f32 %v2989, %v3067
    %v3069 = vrcp.pop %v3011
    %v3070 = vmul.f32 %v3011, %v3069
    %v3071 = vsub.f32 1.0, %v3070
    %v3072 = vmul.f32 %v3069, %v3071
    %v3073 = vadd.f32 %v3069, %v3072
    %vm3074 = vweird.f32 %v3011
    %vm3075 = vweird.f32 %v3069
    %vm3076 = vmor %vm3074, %vm3075
    %v3077 = vsel %vm3076, %v3069, %v3073
    %v3078 = vand.u32 2147483647, %v3011
    %vm3079 = vcmp.eq.f32.partialorder %v3078, 8.507059e+37
    %v3080 = vand.u32 %v3011, 2147483648
    %v3081 = vor.u32 1.1754944e-38, %v3080
    %v3082 = vsel %vm3079, %v3081, %v3077
    %v3083 = vmul.f32 %v2991, %v3082
    %v3084 = vrcp.pop %v3014
    %v3085 = vmul.f32 %v3014, %v3084
    %v3086 = vsub.f32 1.0, %v3085
    %v3087 = vmul.f32 %v3084, %v3086
    %v3088 = vadd.f32 %v3084, %v3087
    %vm3089 = vweird.f32 %v3014
    %vm3090 = vweird.f32 %v3084
    %vm3091 = vmor %vm3089, %vm3090
    %v3092 = vsel %vm3091, %v3084, %v3088
    %v3093 = vand.u32 2147483647, %v3014
    %vm3094 = vcmp.eq.f32.partialorder %v3093, 8.507059e+37
    %v3095 = vand.u32 %v3014, 2147483648
    %v3096 = vor.u32 1.1754944e-38, %v3095
    %v3097 = vsel %vm3094, %v3096, %v3092
    %v3098 = vmul.f32 %v2993, %v3097
    %v3099 = vrcp.pop %v3017
    %v3100 = vmul.f32 %v3017, %v3099
    %v3101 = vsub.f32 1.0, %v3100
    %v3102 = vmul.f32 %v3099, %v3101
    %v3103 = vadd.f32 %v3099, %v3102
    %vm3104 = vweird.f32 %v3017
    %vm3105 = vweird.f32 %v3099
    %vm3106 = vmor %vm3104, %vm3105
    %v3107 = vsel %vm3106, %v3099, %v3103
    %v3108 = vand.u32 2147483647, %v3017
    %vm3109 = vcmp.eq.f32.partialorder %v3108, 8.507059e+37
    %v3110 = vand.u32 %v3017, 2147483648
    %v3111 = vor.u32 1.1754944e-38, %v3110
    %v3112 = vsel %vm3109, %v3111, %v3107
    %v3113 = vmul.f32 %v2995, %v3112
    %v3114 = vrcp.pop %v3020
    %v3115 = vmul.f32 %v3020, %v3114
    %v3116 = vsub.f32 1.0, %v3115
    %v3117 = vmul.f32 %v3114, %v3116
    %v3118 = vadd.f32 %v3114, %v3117
    %vm3119 = vweird.f32 %v3020
    %vm3120 = vweird.f32 %v3114
    %vm3121 = vmor %vm3119, %vm3120
    %v3122 = vsel %vm3121, %v3114, %v3118
    %v3123 = vand.u32 2147483647, %v3020
    %vm3124 = vcmp.eq.f32.partialorder %v3123, 8.507059e+37
    %v3125 = vand.u32 %v3020, 2147483648
    %v3126 = vor.u32 1.1754944e-38, %v3125
    %v3127 = vsel %vm3124, %v3126, %v3122
    %v3128 = vmul.f32 %v2997, %v3127
    %v3129 = vrcp.pop %v3023
    %v3130 = vmul.f32 %v3023, %v3129
    %v3131 = vsub.f32 1.0, %v3130
    %v3132 = vmul.f32 %v3129, %v3131
    %v3133 = vadd.f32 %v3129, %v3132
    %vm3134 = vweird.f32 %v3023
    %vm3135 = vweird.f32 %v3129
    %vm3136 = vmor %vm3134, %vm3135
    %v3137 = vsel %vm3136, %v3129, %v3133
    %v3138 = vand.u32 2147483647, %v3023
    %vm3139 = vcmp.eq.f32.partialorder %v3138, 8.507059e+37
    %v3140 = vand.u32 %v3023, 2147483648
    %v3141 = vor.u32 1.1754944e-38, %v3140
    %v3142 = vsel %vm3139, %v3141, %v3137
    %v3143 = vmul.f32 %v2999, %v3142
    %3152 = vrot.lane.b32.xlu0 %v3038, 16
    %v3153 = vpop.permute.xlu0 %3152
    %3154 = vrot.lane.b32.xlu0 %v3053, 16
    %v3155 = vpop.permute.xlu0 %3154
    %3156 = vrot.lane.b32.xlu0 %v3068, 16
    %v3157 = vpop.permute.xlu0 %3156
    %3158 = vrot.lane.b32.xlu0 %v3083, 16
    %v3159 = vpop.permute.xlu0 %3158
    %3160 = vrot.lane.b32.xlu0 %v3098, 16
    %v3161 = vpop.permute.xlu0 %3160
    %3162 = vrot.lane.b32.xlu0 %v3113, 16
    %v3163 = vpop.permute.xlu0 %3162
    %3164 = vrot.lane.b32.xlu0 %v3128, 16
    %v3165 = vpop.permute.xlu0 %3164
    %3166 = vrot.lane.b32.xlu0 %v3143, 16
    %v3167 = vpop.permute.xlu0 %3166
    %vm3176 = vcmask 195712
    %3177 = vst.msk [vmem:[#allocation4] sm:$0xff] %vm3176, %v3153
    %3178 = vst.msk [vmem:[#allocation4 + $0x8] sm:$0xff] %vm3176, %v3155
    %3179 = vst.msk [vmem:[#allocation4 + $0x10] sm:$0xff] %vm3176, %v3157
    %3180 = vst.msk [vmem:[#allocation4 + $0x18] sm:$0xff] %vm3176, %v3159
    %3181 = vst.msk [vmem:[#allocation4 + $0x20] sm:$0xff] %vm3176, %v3161
    %3182 = vst.msk [vmem:[#allocation4 + $0x28] sm:$0xff] %vm3176, %v3163
    %3183 = vst.msk [vmem:[#allocation4 + $0x30] sm:$0xff] %vm3176, %v3165
    %3184 = vst.msk [vmem:[#allocation4 + $0x38] sm:$0xff] %vm3176, %v3167
    %v3185 = vsel %vm38, %v3038, 0
    %v3187 = vsel %vm38, %v3053, 0
    %v3189 = vsel %vm38, %v3068, 0
    %v3191 = vsel %vm38, %v3083, 0
    %3193 = vmatpush.msra.mxu0 0.0
    %3194 = vmatpush.msra.mxu0 0.0
    %3195 = vmatpush.msra.mxu0 0.0
    %3196 = vmatpush.msra.mxu0 0.0
    %3197 = vmatpush.msra.mxu0 0.0
    %3198 = vmatpush.msra.mxu0 0.0
    %3199 = vmatpush.msra.mxu0 0.0
    %3200 = vmatpush.msra.mxu0 0.0
    %3201 = vmatpush.msra.mxu0 0.0
    %3202 = vmatpush.msra.mxu0 0.0
    %3203 = vmatpush.msra.mxu0 0.0
    %3204 = vmatpush.msra.mxu0 0.0
    %3205 = vmatpush.msra.mxu0 0.0
    %3206 = vmatpush.msra.mxu0 0.0
    %3207 = vmatpush.msra.mxu0 0.0
    %v3208 = vand.u32 %v2466, 4294901760
    %3209 = vmatpush.msra.mxu0 %v3208
    %v3210 = vand.u32 %v3185, 4294901760
    %v3211 = vsub.f32 %v3185, %v3210
    %v3212 = vand.u32 %v3211, 4294901760
    %v3213 = vsub.f32 %v3211, %v3212
    %v3214 = vand.u32 %v3213, 4294901760
    %3215 = vmatmul.f32.gmra.mxu0 %v3214
    %v3216 = vpop.f32.mrf.mxu0
    %v3217 = vadd.f32 0.0, %v3216
    %v3218 = vand.u32 %v3187, 4294901760
    %v3219 = vsub.f32 %v3187, %v3218
    %v3220 = vand.u32 %v3219, 4294901760
    %v3221 = vsub.f32 %v3219, %v3220
    %v3222 = vand.u32 %v3221, 4294901760
    %3223 = vmatmul.f32.gmra.mxu0 %v3222
    %v3224 = vpop.f32.mrf.mxu0
    %v3225 = vadd.f32 0.0, %v3224
    %v3226 = vand.u32 %v3189, 4294901760
    %v3227 = vsub.f32 %v3189, %v3226
    %v3228 = vand.u32 %v3227, 4294901760
    %v3229 = vsub.f32 %v3227, %v3228
    %v3230 = vand.u32 %v3229, 4294901760
    %3231 = vmatmul.f32.gmra.mxu0 %v3230
    %v3232 = vpop.f32.mrf.mxu0
    %v3233 = vadd.f32 0.0, %v3232
    %v3234 = vand.u32 %v3191, 4294901760
    %v3235 = vsub.f32 %v3191, %v3234
    %v3236 = vand.u32 %v3235, 4294901760
    %v3237 = vsub.f32 %v3235, %v3236
    %v3238 = vand.u32 %v3237, 4294901760
    %3239 = vmatmul.f32.gmra.mxu0 %v3238
    %v3240 = vpop.f32.mrf.mxu0
    %v3241 = vadd.f32 0.0, %v3240
    %3242 = vdwg.mxu0
    %3243 = vmatpush.msra.mxu0 0.0
    %3244 = vmatpush.msra.mxu0 0.0
    %3245 = vmatpush.msra.mxu0 0.0
    %3246 = vmatpush.msra.mxu0 0.0
    %3247 = vmatpush.msra.mxu0 0.0
    %3248 = vmatpush.msra.mxu0 0.0
    %3249 = vmatpush.msra.mxu0 0.0
    %3250 = vmatpush.msra.mxu0 0.0
    %3251 = vmatpush.msra.mxu0 0.0
    %3252 = vmatpush.msra.mxu0 0.0
    %3253 = vmatpush.msra.mxu0 0.0
    %3254 = vmatpush.msra.mxu0 0.0
    %3255 = vmatpush.msra.mxu0 0.0
    %3256 = vmatpush.msra.mxu0 0.0
    %3257 = vmatpush.msra.mxu0 0.0
    %v3258 = vand.u32 %v2466, 4294901760
    %v3259 = vsub.f32 %v2466, %v3258
    %v3260 = vand.u32 %v3259, 4294901760
    %v3261 = vsub.f32 %v3259, %v3260
    %v3262 = vand.u32 %v3261, 4294901760
    %3263 = vmatpush.msra.mxu0 %v3262
    %v3264 = vand.u32 %v3185, 4294901760
    %3265 = vmatmul.f32.gmra.mxu0 %v3264
    %v3266 = vpop.f32.mrf.mxu0
    %v3267 = vadd.f32 %v3217, %v3266
    %v3268 = vand.u32 %v3187, 4294901760
    %3269 = vmatmul.f32.gmra.mxu0 %v3268
    %v3270 = vpop.f32.mrf.mxu0
    %v3271 = vadd.f32 %v3225, %v3270
    %v3272 = vand.u32 %v3189, 4294901760
    %3273 = vmatmul.f32.gmra.mxu0 %v3272
    %v3274 = vpop.f32.mrf.mxu0
    %v3275 = vadd.f32 %v3233, %v3274
    %v3276 = vand.u32 %v3191, 4294901760
    %3277 = vmatmul.f32.gmra.mxu0 %v3276
    %v3278 = vpop.f32.mrf.mxu0
    %v3279 = vadd.f32 %v3241, %v3278
    %3280 = vdwg.mxu0
    %3281 = vmatpush.msra.mxu0 0.0
    %3282 = vmatpush.msra.mxu0 0.0
    %3283 = vmatpush.msra.mxu0 0.0
    %3284 = vmatpush.msra.mxu0 0.0
    %3285 = vmatpush.msra.mxu0 0.0
    %3286 = vmatpush.msra.mxu0 0.0
    %3287 = vmatpush.msra.mxu0 0.0
    %3288 = vmatpush.msra.mxu0 0.0
    %3289 = vmatpush.msra.mxu0 0.0
    %3290 = vmatpush.msra.mxu0 0.0
    %3291 = vmatpush.msra.mxu0 0.0
    %3292 = vmatpush.msra.mxu0 0.0
    %3293 = vmatpush.msra.mxu0 0.0
    %3294 = vmatpush.msra.mxu0 0.0
    %3295 = vmatpush.msra.mxu0 0.0
    %v3296 = vand.u32 %v2466, 4294901760
    %v3297 = vsub.f32 %v2466, %v3296
    %3298 = vmatpush.msra.mxu0 %v3297
    %v3299 = vand.u32 %v3185, 4294901760
    %v3300 = vsub.f32 %v3185, %v3299
    %3301 = vmatmul.f32.gmra.mxu0 %v3300
    %v3302 = vpop.f32.mrf.mxu0
    %v3303 = vadd.f32 %v3267, %v3302
    %v3304 = vand.u32 %v3187, 4294901760
    %v3305 = vsub.f32 %v3187, %v3304
    %3306 = vmatmul.f32.gmra.mxu0 %v3305
    %v3307 = vpop.f32.mrf.mxu0
    %v3308 = vadd.f32 %v3271, %v3307
    %v3309 = vand.u32 %v3189, 4294901760
    %v3310 = vsub.f32 %v3189, %v3309
    %3311 = vmatmul.f32.gmra.mxu0 %v3310
    %v3312 = vpop.f32.mrf.mxu0
    %v3313 = vadd.f32 %v3275, %v3312
    %v3314 = vand.u32 %v3191, 4294901760
    %v3315 = vsub.f32 %v3191, %v3314
    %3316 = vmatmul.f32.gmra.mxu0 %v3315
    %v3317 = vpop.f32.mrf.mxu0
    %v3318 = vadd.f32 %v3279, %v3317
    %3319 = vdwg.mxu0
    %3320 = vmatpush.msra.mxu0 0.0
    %3321 = vmatpush.msra.mxu0 0.0
    %3322 = vmatpush.msra.mxu0 0.0
    %3323 = vmatpush.msra.mxu0 0.0
    %3324 = vmatpush.msra.mxu0 0.0
    %3325 = vmatpush.msra.mxu0 0.0
    %3326 = vmatpush.msra.mxu0 0.0
    %3327 = vmatpush.msra.mxu0 0.0
    %3328 = vmatpush.msra.mxu0 0.0
    %3329 = vmatpush.msra.mxu0 0.0
    %3330 = vmatpush.msra.mxu0 0.0
    %3331 = vmatpush.msra.mxu0 0.0
    %3332 = vmatpush.msra.mxu0 0.0
    %3333 = vmatpush.msra.mxu0 0.0
    %3334 = vmatpush.msra.mxu0 0.0
    %v3335 = vand.u32 %v2466, 4294901760
    %3336 = vmatpush.msra.mxu0 %v3335
    %v3337 = vand.u32 %v3185, 4294901760
    %v3338 = vsub.f32 %v3185, %v3337
    %v3339 = vand.u32 %v3338, 4294901760
    %3340 = vmatmul.f32.gmra.mxu0 %v3339
    %v3341 = vpop.f32.mrf.mxu0
    %v3342 = vadd.f32 %v3303, %v3341
    %v3343 = vand.u32 %v3187, 4294901760
    %v3344 = vsub.f32 %v3187, %v3343
    %v3345 = vand.u32 %v3344, 4294901760
    %3346 = vmatmul.f32.gmra.mxu0 %v3345
    %v3347 = vpop.f32.mrf.mxu0
    %v3348 = vadd.f32 %v3308, %v3347
    %v3349 = vand.u32 %v3189, 4294901760
    %v3350 = vsub.f32 %v3189, %v3349
    %v3351 = vand.u32 %v3350, 4294901760
    %3352 = vmatmul.f32.gmra.mxu0 %v3351
    %v3353 = vpop.f32.mrf.mxu0
    %v3354 = vadd.f32 %v3313, %v3353
    %v3355 = vand.u32 %v3191, 4294901760
    %v3356 = vsub.f32 %v3191, %v3355
    %v3357 = vand.u32 %v3356, 4294901760
    %3358 = vmatmul.f32.gmra.mxu0 %v3357
    %v3359 = vpop.f32.mrf.mxu0
    %v3360 = vadd.f32 %v3318, %v3359
    %3361 = vdwg.mxu0
    %3362 = vmatpush.msra.mxu0 0.0
    %3363 = vmatpush.msra.mxu0 0.0
    %3364 = vmatpush.msra.mxu0 0.0
    %3365 = vmatpush.msra.mxu0 0.0
    %3366 = vmatpush.msra.mxu0 0.0
    %3367 = vmatpush.msra.mxu0 0.0
    %3368 = vmatpush.msra.mxu0 0.0
    %3369 = vmatpush.msra.mxu0 0.0
    %3370 = vmatpush.msra.mxu0 0.0
    %3371 = vmatpush.msra.mxu0 0.0
    %3372 = vmatpush.msra.mxu0 0.0
    %3373 = vmatpush.msra.mxu0 0.0
    %3374 = vmatpush.msra.mxu0 0.0
    %3375 = vmatpush.msra.mxu0 0.0
    %3376 = vmatpush.msra.mxu0 0.0
    %v3377 = vand.u32 %v2466, 4294901760
    %v3378 = vsub.f32 %v2466, %v3377
    %v3379 = vand.u32 %v3378, 4294901760
    %3380 = vmatpush.msra.mxu0 %v3379
    %v3381 = vand.u32 %v3185, 4294901760
    %3382 = vmatmul.f32.gmra.mxu0 %v3381
    %v3383 = vpop.f32.mrf.mxu0
    %v3384 = vadd.f32 %v3342, %v3383
    %v3385 = vand.u32 %v3187, 4294901760
    %3386 = vmatmul.f32.gmra.mxu0 %v3385
    %v3387 = vpop.f32.mrf.mxu0
    %v3388 = vadd.f32 %v3348, %v3387
    %v3389 = vand.u32 %v3189, 4294901760
    %3390 = vmatmul.f32.gmra.mxu0 %v3389
    %v3391 = vpop.f32.mrf.mxu0
    %v3392 = vadd.f32 %v3354, %v3391
    %v3393 = vand.u32 %v3191, 4294901760
    %3394 = vmatmul.f32.gmra.mxu0 %v3393
    %v3395 = vpop.f32.mrf.mxu0
    %v3396 = vadd.f32 %v3360, %v3395
    %3397 = vdwg.mxu0
    %3398 = vmatpush.msra.mxu0 0.0
    %3399 = vmatpush.msra.mxu0 0.0
    %3400 = vmatpush.msra.mxu0 0.0
    %3401 = vmatpush.msra.mxu0 0.0
    %3402 = vmatpush.msra.mxu0 0.0
    %3403 = vmatpush.msra.mxu0 0.0
    %3404 = vmatpush.msra.mxu0 0.0
    %3405 = vmatpush.msra.mxu0 0.0
    %3406 = vmatpush.msra.mxu0 0.0
    %3407 = vmatpush.msra.mxu0 0.0
    %3408 = vmatpush.msra.mxu0 0.0
    %3409 = vmatpush.msra.mxu0 0.0
    %3410 = vmatpush.msra.mxu0 0.0
    %3411 = vmatpush.msra.mxu0 0.0
    %3412 = vmatpush.msra.mxu0 0.0
    %v3413 = vand.u32 %v2466, 4294901760
    %3414 = vmatpush.msra.mxu0 %v3413
    %v3415 = vand.u32 %v3185, 4294901760
    %3416 = vmatmul.f32.gmra.mxu0 %v3415
    %v3417 = vpop.f32.mrf.mxu0
    %v3418 = vadd.f32 %v3384, %v3417
    %v3419 = vand.u32 %v3187, 4294901760
    %3420 = vmatmul.f32.gmra.mxu0 %v3419
    %v3421 = vpop.f32.mrf.mxu0
    %v3422 = vadd.f32 %v3388, %v3421
    %v3423 = vand.u32 %v3189, 4294901760
    %3424 = vmatmul.f32.gmra.mxu0 %v3423
    %v3425 = vpop.f32.mrf.mxu0
    %v3426 = vadd.f32 %v3392, %v3425
    %v3427 = vand.u32 %v3191, 4294901760
    %3428 = vmatmul.f32.gmra.mxu0 %v3427
    %v3429 = vpop.f32.mrf.mxu0
    %v3430 = vadd.f32 %v3396, %v3429
    %3431 = vdwg.mxu0
    %v3432 = vsel %vm38, %v3098, 0
    %v3434 = vsel %vm38, %v3113, 0
    %v3436 = vsel %vm38, %v3128, 0
    %v3438 = vsel %vm38, %v3143, 0
    %3440 = vmatpush.msra.mxu0 0.0
    %3441 = vmatpush.msra.mxu0 0.0
    %3442 = vmatpush.msra.mxu0 0.0
    %3443 = vmatpush.msra.mxu0 0.0
    %3444 = vmatpush.msra.mxu0 0.0
    %3445 = vmatpush.msra.mxu0 0.0
    %3446 = vmatpush.msra.mxu0 0.0
    %3447 = vmatpush.msra.mxu0 0.0
    %3448 = vmatpush.msra.mxu0 0.0
    %3449 = vmatpush.msra.mxu0 0.0
    %3450 = vmatpush.msra.mxu0 0.0
    %3451 = vmatpush.msra.mxu0 0.0
    %3452 = vmatpush.msra.mxu0 0.0
    %3453 = vmatpush.msra.mxu0 0.0
    %3454 = vmatpush.msra.mxu0 0.0
    %v3455 = vand.u32 %v2467, 4294901760
    %3456 = vmatpush.msra.mxu0 %v3455
    %v3457 = vand.u32 %v3432, 4294901760
    %v3458 = vsub.f32 %v3432, %v3457
    %v3459 = vand.u32 %v3458, 4294901760
    %v3460 = vsub.f32 %v3458, %v3459
    %v3461 = vand.u32 %v3460, 4294901760
    %3462 = vmatmul.f32.gmra.mxu0 %v3461
    %v3463 = vpop.f32.mrf.mxu0
    %v3464 = vadd.f32 0.0, %v3463
    %v3465 = vand.u32 %v3434, 4294901760
    %v3466 = vsub.f32 %v3434, %v3465
    %v3467 = vand.u32 %v3466, 4294901760
    %v3468 = vsub.f32 %v3466, %v3467
    %v3469 = vand.u32 %v3468, 4294901760
    %3470 = vmatmul.f32.gmra.mxu0 %v3469
    %v3471 = vpop.f32.mrf.mxu0
    %v3472 = vadd.f32 0.0, %v3471
    %v3473 = vand.u32 %v3436, 4294901760
    %v3474 = vsub.f32 %v3436, %v3473
    %v3475 = vand.u32 %v3474, 4294901760
    %v3476 = vsub.f32 %v3474, %v3475
    %v3477 = vand.u32 %v3476, 4294901760
    %3478 = vmatmul.f32.gmra.mxu0 %v3477
    %v3479 = vpop.f32.mrf.mxu0
    %v3480 = vadd.f32 0.0, %v3479
    %v3481 = vand.u32 %v3438, 4294901760
    %v3482 = vsub.f32 %v3438, %v3481
    %v3483 = vand.u32 %v3482, 4294901760
    %v3484 = vsub.f32 %v3482, %v3483
    %v3485 = vand.u32 %v3484, 4294901760
    %3486 = vmatmul.f32.gmra.mxu0 %v3485
    %v3487 = vpop.f32.mrf.mxu0
    %v3488 = vadd.f32 0.0, %v3487
    %3489 = vdwg.mxu0
    %3490 = vmatpush.msra.mxu0 0.0
    %3491 = vmatpush.msra.mxu0 0.0
    %3492 = vmatpush.msra.mxu0 0.0
    %3493 = vmatpush.msra.mxu0 0.0
    %3494 = vmatpush.msra.mxu0 0.0
    %3495 = vmatpush.msra.mxu0 0.0
    %3496 = vmatpush.msra.mxu0 0.0
    %3497 = vmatpush.msra.mxu0 0.0
    %3498 = vmatpush.msra.mxu0 0.0
    %3499 = vmatpush.msra.mxu0 0.0
    %3500 = vmatpush.msra.mxu0 0.0
    %3501 = vmatpush.msra.mxu0 0.0
    %3502 = vmatpush.msra.mxu0 0.0
    %3503 = vmatpush.msra.mxu0 0.0
    %3504 = vmatpush.msra.mxu0 0.0
    %v3505 = vand.u32 %v2467, 4294901760
    %v3506 = vsub.f32 %v2467, %v3505
    %v3507 = vand.u32 %v3506, 4294901760
    %v3508 = vsub.f32 %v3506, %v3507
    %v3509 = vand.u32 %v3508, 4294901760
    %3510 = vmatpush.msra.mxu0 %v3509
    %v3511 = vand.u32 %v3432, 4294901760
    %3512 = vmatmul.f32.gmra.mxu0 %v3511
    %v3513 = vpop.f32.mrf.mxu0
    %v3514 = vadd.f32 %v3464, %v3513
    %v3515 = vand.u32 %v3434, 4294901760
    %3516 = vmatmul.f32.gmra.mxu0 %v3515
    %v3517 = vpop.f32.mrf.mxu0
    %v3518 = vadd.f32 %v3472, %v3517
    %v3519 = vand.u32 %v3436, 4294901760
    %3520 = vmatmul.f32.gmra.mxu0 %v3519
    %v3521 = vpop.f32.mrf.mxu0
    %v3522 = vadd.f32 %v3480, %v3521
    %v3523 = vand.u32 %v3438, 4294901760
    %3524 = vmatmul.f32.gmra.mxu0 %v3523
    %v3525 = vpop.f32.mrf.mxu0
    %v3526 = vadd.f32 %v3488, %v3525
    %3527 = vdwg.mxu0
    %3528 = vmatpush.msra.mxu0 0.0
    %3529 = vmatpush.msra.mxu0 0.0
    %3530 = vmatpush.msra.mxu0 0.0
    %3531 = vmatpush.msra.mxu0 0.0
    %3532 = vmatpush.msra.mxu0 0.0
    %3533 = vmatpush.msra.mxu0 0.0
    %3534 = vmatpush.msra.mxu0 0.0
    %3535 = vmatpush.msra.mxu0 0.0
    %3536 = vmatpush.msra.mxu0 0.0
    %3537 = vmatpush.msra.mxu0 0.0
    %3538 = vmatpush.msra.mxu0 0.0
    %3539 = vmatpush.msra.mxu0 0.0
    %3540 = vmatpush.msra.mxu0 0.0
    %3541 = vmatpush.msra.mxu0 0.0
    %3542 = vmatpush.msra.mxu0 0.0
    %v3543 = vand.u32 %v2467, 4294901760
    %v3544 = vsub.f32 %v2467, %v3543
    %3545 = vmatpush.msra.mxu0 %v3544
    %v3546 = vand.u32 %v3432, 4294901760
    %v3547 = vsub.f32 %v3432, %v3546
    %3548 = vmatmul.f32.gmra.mxu0 %v3547
    %v3549 = vpop.f32.mrf.mxu0
    %v3550 = vadd.f32 %v3514, %v3549
    %v3551 = vand.u32 %v3434, 4294901760
    %v3552 = vsub.f32 %v3434, %v3551
    %3553 = vmatmul.f32.gmra.mxu0 %v3552
    %v3554 = vpop.f32.mrf.mxu0
    %v3555 = vadd.f32 %v3518, %v3554
    %v3556 = vand.u32 %v3436, 4294901760
    %v3557 = vsub.f32 %v3436, %v3556
    %3558 = vmatmul.f32.gmra.mxu0 %v3557
    %v3559 = vpop.f32.mrf.mxu0
    %v3560 = vadd.f32 %v3522, %v3559
    %v3561 = vand.u32 %v3438, 4294901760
    %v3562 = vsub.f32 %v3438, %v3561
    %3563 = vmatmul.f32.gmra.mxu0 %v3562
    %v3564 = vpop.f32.mrf.mxu0
    %v3565 = vadd.f32 %v3526, %v3564
    %3566 = vdwg.mxu0
    %3567 = vmatpush.msra.mxu0 0.0
    %3568 = vmatpush.msra.mxu0 0.0
    %3569 = vmatpush.msra.mxu0 0.0
    %3570 = vmatpush.msra.mxu0 0.0
    %3571 = vmatpush.msra.mxu0 0.0
    %3572 = vmatpush.msra.mxu0 0.0
    %3573 = vmatpush.msra.mxu0 0.0
    %3574 = vmatpush.msra.mxu0 0.0
    %3575 = vmatpush.msra.mxu0 0.0
    %3576 = vmatpush.msra.mxu0 0.0
    %3577 = vmatpush.msra.mxu0 0.0
    %3578 = vmatpush.msra.mxu0 0.0
    %3579 = vmatpush.msra.mxu0 0.0
    %3580 = vmatpush.msra.mxu0 0.0
    %3581 = vmatpush.msra.mxu0 0.0
    %v3582 = vand.u32 %v2467, 4294901760
    %3583 = vmatpush.msra.mxu0 %v3582
    %v3584 = vand.u32 %v3432, 4294901760
    %v3585 = vsub.f32 %v3432, %v3584
    %v3586 = vand.u32 %v3585, 4294901760
    %3587 = vmatmul.f32.gmra.mxu0 %v3586
    %v3588 = vpop.f32.mrf.mxu0
    %v3589 = vadd.f32 %v3550, %v3588
    %v3590 = vand.u32 %v3434, 4294901760
    %v3591 = vsub.f32 %v3434, %v3590
    %v3592 = vand.u32 %v3591, 4294901760
    %3593 = vmatmul.f32.gmra.mxu0 %v3592
    %v3594 = vpop.f32.mrf.mxu0
    %v3595 = vadd.f32 %v3555, %v3594
    %v3596 = vand.u32 %v3436, 4294901760
    %v3597 = vsub.f32 %v3436, %v3596
    %v3598 = vand.u32 %v3597, 4294901760
    %3599 = vmatmul.f32.gmra.mxu0 %v3598
    %v3600 = vpop.f32.mrf.mxu0
    %v3601 = vadd.f32 %v3560, %v3600
    %v3602 = vand.u32 %v3438, 4294901760
    %v3603 = vsub.f32 %v3438, %v3602
    %v3604 = vand.u32 %v3603, 4294901760
    %3605 = vmatmul.f32.gmra.mxu0 %v3604
    %v3606 = vpop.f32.mrf.mxu0
    %v3607 = vadd.f32 %v3565, %v3606
    %3608 = vdwg.mxu0
    %3609 = vmatpush.msra.mxu0 0.0
    %3610 = vmatpush.msra.mxu0 0.0
    %3611 = vmatpush.msra.mxu0 0.0
    %3612 = vmatpush.msra.mxu0 0.0
    %3613 = vmatpush.msra.mxu0 0.0
    %3614 = vmatpush.msra.mxu0 0.0
    %3615 = vmatpush.msra.mxu0 0.0
    %3616 = vmatpush.msra.mxu0 0.0
    %3617 = vmatpush.msra.mxu0 0.0
    %3618 = vmatpush.msra.mxu0 0.0
    %3619 = vmatpush.msra.mxu0 0.0
    %3620 = vmatpush.msra.mxu0 0.0
    %3621 = vmatpush.msra.mxu0 0.0
    %3622 = vmatpush.msra.mxu0 0.0
    %3623 = vmatpush.msra.mxu0 0.0
    %v3624 = vand.u32 %v2467, 4294901760
    %v3625 = vsub.f32 %v2467, %v3624
    %v3626 = vand.u32 %v3625, 4294901760
    %3627 = vmatpush.msra.mxu0 %v3626
    %v3628 = vand.u32 %v3432, 4294901760
    %3629 = vmatmul.f32.gmra.mxu0 %v3628
    %v3630 = vpop.f32.mrf.mxu0
    %v3631 = vadd.f32 %v3589, %v3630
    %v3632 = vand.u32 %v3434, 4294901760
    %3633 = vmatmul.f32.gmra.mxu0 %v3632
    %v3634 = vpop.f32.mrf.mxu0
    %v3635 = vadd.f32 %v3595, %v3634
    %v3636 = vand.u32 %v3436, 4294901760
    %3637 = vmatmul.f32.gmra.mxu0 %v3636
    %v3638 = vpop.f32.mrf.mxu0
    %v3639 = vadd.f32 %v3601, %v3638
    %v3640 = vand.u32 %v3438, 4294901760
    %3641 = vmatmul.f32.gmra.mxu0 %v3640
    %v3642 = vpop.f32.mrf.mxu0
    %v3643 = vadd.f32 %v3607, %v3642
    %3644 = vdwg.mxu0
    %3645 = vmatpush.msra.mxu0 0.0
    %3646 = vmatpush.msra.mxu0 0.0
    %3647 = vmatpush.msra.mxu0 0.0
    %3648 = vmatpush.msra.mxu0 0.0
    %3649 = vmatpush.msra.mxu0 0.0
    %3650 = vmatpush.msra.mxu0 0.0
    %3651 = vmatpush.msra.mxu0 0.0
    %3652 = vmatpush.msra.mxu0 0.0
    %3653 = vmatpush.msra.mxu0 0.0
    %3654 = vmatpush.msra.mxu0 0.0
    %3655 = vmatpush.msra.mxu0 0.0
    %3656 = vmatpush.msra.mxu0 0.0
    %3657 = vmatpush.msra.mxu0 0.0
    %3658 = vmatpush.msra.mxu0 0.0
    %3659 = vmatpush.msra.mxu0 0.0
    %v3660 = vand.u32 %v2467, 4294901760
    %3661 = vmatpush.msra.mxu0 %v3660
    %v3662 = vand.u32 %v3432, 4294901760
    %3663 = vmatmul.f32.gmra.mxu0 %v3662
    %v3664 = vpop.f32.mrf.mxu0
    %v3665 = vadd.f32 %v3631, %v3664
    %v3666 = vand.u32 %v3434, 4294901760
    %3667 = vmatmul.f32.gmra.mxu0 %v3666
    %v3668 = vpop.f32.mrf.mxu0
    %v3669 = vadd.f32 %v3635, %v3668
    %v3670 = vand.u32 %v3436, 4294901760
    %3671 = vmatmul.f32.gmra.mxu0 %v3670
    %v3672 = vpop.f32.mrf.mxu0
    %v3673 = vadd.f32 %v3639, %v3672
    %v3674 = vand.u32 %v3438, 4294901760
    %3675 = vmatmul.f32.gmra.mxu0 %v3674
    %v3676 = vpop.f32.mrf.mxu0
    %v3677 = vadd.f32 %v3643, %v3676
    %3678 = vdwg.mxu0
    %v3679 = vadd.f32 %v2199, %v3418
    %v3680 = vadd.f32 %v2203, %v3422
    %v3681 = vadd.f32 %v2207, %v3426
    %v3682 = vadd.f32 %v2211, %v3430
    %v3683 = vadd.f32 %v2450, %v3665
    %v3684 = vadd.f32 %v2454, %v3669
    %v3685 = vadd.f32 %v2458, %v3673
    %v3686 = vadd.f32 %v2462, %v3677
    %v3687 = vld [vmem:[%s1 + $0x18] sm:$0xff]
    %v3688 = vld [vmem:[%s1 + $0x38] sm:$0xff]
    %v3689 = vld [vmem:[%s2 + $0x18] sm:$0xff]
    %v3690 = vld [vmem:[%s2 + $0x38] sm:$0xff]
    %v3692 = vsel %vm38, %v3687, 0
    %3694 = vmatpush.xpose.msra.mxu0 0.0
    %3695 = vmatpush.xpose.msra.mxu0 0.0
    %3696 = vmatpush.xpose.msra.mxu0 0.0
    %3697 = vmatpush.xpose.msra.mxu0 0.0
    %3698 = vmatpush.xpose.msra.mxu0 0.0
    %3699 = vmatpush.xpose.msra.mxu0 0.0
    %3700 = vmatpush.xpose.msra.mxu0 0.0
    %3701 = vmatpush.xpose.msra.mxu0 0.0
    %3702 = vmatpush.xpose.msra.mxu0 0.0
    %3703 = vmatpush.xpose.msra.mxu0 0.0
    %3704 = vmatpush.xpose.msra.mxu0 0.0
    %3705 = vmatpush.xpose.msra.mxu0 0.0
    %3706 = vmatpush.xpose.msra.mxu0 0.0
    %3707 = vmatpush.xpose.msra.mxu0 0.0
    %3708 = vmatpush.xpose.msra.mxu0 0.0
    %v3709 = vand.u32 %v3692, 4294901760
    %3710 = vmatpush.xpose.msra.mxu0 %v3709
    %v3711 = vand.u32 %v40, 4294901760
    %v3712 = vsub.f32 %v40, %v3711
    %v3713 = vand.u32 %v3712, 4294901760
    %v3714 = vsub.f32 %v3712, %v3713
    %v3715 = vand.u32 %v3714, 4294901760
    %3716 = vmatmul.f32.gmra.mxu0 %v3715
    %v3717 = vpop.f32.mrf.mxu0
    %v3718 = vadd.f32 0.0, %v3717
    %v3719 = vand.u32 %v43, 4294901760
    %v3720 = vsub.f32 %v43, %v3719
    %v3721 = vand.u32 %v3720, 4294901760
    %v3722 = vsub.f32 %v3720, %v3721
    %v3723 = vand.u32 %v3722, 4294901760
    %3724 = vmatmul.f32.gmra.mxu0 %v3723
    %v3725 = vpop.f32.mrf.mxu0
    %v3726 = vadd.f32 0.0, %v3725
    %v3727 = vand.u32 %v46, 4294901760
    %v3728 = vsub.f32 %v46, %v3727
    %v3729 = vand.u32 %v3728, 4294901760
    %v3730 = vsub.f32 %v3728, %v3729
    %v3731 = vand.u32 %v3730, 4294901760
    %3732 = vmatmul.f32.gmra.mxu0 %v3731
    %v3733 = vpop.f32.mrf.mxu0
    %v3734 = vadd.f32 0.0, %v3733
    %v3735 = vand.u32 %v49, 4294901760
    %v3736 = vsub.f32 %v49, %v3735
    %v3737 = vand.u32 %v3736, 4294901760
    %v3738 = vsub.f32 %v3736, %v3737
    %v3739 = vand.u32 %v3738, 4294901760
    %3740 = vmatmul.f32.gmra.mxu0 %v3739
    %v3741 = vpop.f32.mrf.mxu0
    %v3742 = vadd.f32 0.0, %v3741
    %3743 = vdwg.mxu0
    %3744 = vmatpush.xpose.msra.mxu0 0.0
    %3745 = vmatpush.xpose.msra.mxu0 0.0
    %3746 = vmatpush.xpose.msra.mxu0 0.0
    %3747 = vmatpush.xpose.msra.mxu0 0.0
    %3748 = vmatpush.xpose.msra.mxu0 0.0
    %3749 = vmatpush.xpose.msra.mxu0 0.0
    %3750 = vmatpush.xpose.msra.mxu0 0.0
    %3751 = vmatpush.xpose.msra.mxu0 0.0
    %3752 = vmatpush.xpose.msra.mxu0 0.0
    %3753 = vmatpush.xpose.msra.mxu0 0.0
    %3754 = vmatpush.xpose.msra.mxu0 0.0
    %3755 = vmatpush.xpose.msra.mxu0 0.0
    %3756 = vmatpush.xpose.msra.mxu0 0.0
    %3757 = vmatpush.xpose.msra.mxu0 0.0
    %3758 = vmatpush.xpose.msra.mxu0 0.0
    %v3759 = vand.u32 %v3692, 4294901760
    %v3760 = vsub.f32 %v3692, %v3759
    %v3761 = vand.u32 %v3760, 4294901760
    %v3762 = vsub.f32 %v3760, %v3761
    %v3763 = vand.u32 %v3762, 4294901760
    %3764 = vmatpush.xpose.msra.mxu0 %v3763
    %v3765 = vand.u32 %v40, 4294901760
    %3766 = vmatmul.f32.gmra.mxu0 %v3765
    %v3767 = vpop.f32.mrf.mxu0
    %v3768 = vadd.f32 %v3718, %v3767
    %v3769 = vand.u32 %v43, 4294901760
    %3770 = vmatmul.f32.gmra.mxu0 %v3769
    %v3771 = vpop.f32.mrf.mxu0
    %v3772 = vadd.f32 %v3726, %v3771
    %v3773 = vand.u32 %v46, 4294901760
    %3774 = vmatmul.f32.gmra.mxu0 %v3773
    %v3775 = vpop.f32.mrf.mxu0
    %v3776 = vadd.f32 %v3734, %v3775
    %v3777 = vand.u32 %v49, 4294901760
    %3778 = vmatmul.f32.gmra.mxu0 %v3777
    %v3779 = vpop.f32.mrf.mxu0
    %v3780 = vadd.f32 %v3742, %v3779
    %3781 = vdwg.mxu0
    %3782 = vmatpush.xpose.msra.mxu0 0.0
    %3783 = vmatpush.xpose.msra.mxu0 0.0
    %3784 = vmatpush.xpose.msra.mxu0 0.0
    %3785 = vmatpush.xpose.msra.mxu0 0.0
    %3786 = vmatpush.xpose.msra.mxu0 0.0
    %3787 = vmatpush.xpose.msra.mxu0 0.0
    %3788 = vmatpush.xpose.msra.mxu0 0.0
    %3789 = vmatpush.xpose.msra.mxu0 0.0
    %3790 = vmatpush.xpose.msra.mxu0 0.0
    %3791 = vmatpush.xpose.msra.mxu0 0.0
    %3792 = vmatpush.xpose.msra.mxu0 0.0
    %3793 = vmatpush.xpose.msra.mxu0 0.0
    %3794 = vmatpush.xpose.msra.mxu0 0.0
    %3795 = vmatpush.xpose.msra.mxu0 0.0
    %3796 = vmatpush.xpose.msra.mxu0 0.0
    %v3797 = vand.u32 %v3692, 4294901760
    %v3798 = vsub.f32 %v3692, %v3797
    %3799 = vmatpush.xpose.msra.mxu0 %v3798
    %v3800 = vand.u32 %v40, 4294901760
    %v3801 = vsub.f32 %v40, %v3800
    %3802 = vmatmul.f32.gmra.mxu0 %v3801
    %v3803 = vpop.f32.mrf.mxu0
    %v3804 = vadd.f32 %v3768, %v3803
    %v3805 = vand.u32 %v43, 4294901760
    %v3806 = vsub.f32 %v43, %v3805
    %3807 = vmatmul.f32.gmra.mxu0 %v3806
    %v3808 = vpop.f32.mrf.mxu0
    %v3809 = vadd.f32 %v3772, %v3808
    %v3810 = vand.u32 %v46, 4294901760
    %v3811 = vsub.f32 %v46, %v3810
    %3812 = vmatmul.f32.gmra.mxu0 %v3811
    %v3813 = vpop.f32.mrf.mxu0
    %v3814 = vadd.f32 %v3776, %v3813
    %v3815 = vand.u32 %v49, 4294901760
    %v3816 = vsub.f32 %v49, %v3815
    %3817 = vmatmul.f32.gmra.mxu0 %v3816
    %v3818 = vpop.f32.mrf.mxu0
    %v3819 = vadd.f32 %v3780, %v3818
    %3820 = vdwg.mxu0
    %3821 = vmatpush.xpose.msra.mxu0 0.0
    %3822 = vmatpush.xpose.msra.mxu0 0.0
    %3823 = vmatpush.xpose.msra.mxu0 0.0
    %3824 = vmatpush.xpose.msra.mxu0 0.0
    %3825 = vmatpush.xpose.msra.mxu0 0.0
    %3826 = vmatpush.xpose.msra.mxu0 0.0
    %3827 = vmatpush.xpose.msra.mxu0 0.0
    %3828 = vmatpush.xpose.msra.mxu0 0.0
    %3829 = vmatpush.xpose.msra.mxu0 0.0
    %3830 = vmatpush.xpose.msra.mxu0 0.0
    %3831 = vmatpush.xpose.msra.mxu0 0.0
    %3832 = vmatpush.xpose.msra.mxu0 0.0
    %3833 = vmatpush.xpose.msra.mxu0 0.0
    %3834 = vmatpush.xpose.msra.mxu0 0.0
    %3835 = vmatpush.xpose.msra.mxu0 0.0
    %v3836 = vand.u32 %v3692, 4294901760
    %3837 = vmatpush.xpose.msra.mxu0 %v3836
    %v3838 = vand.u32 %v40, 4294901760
    %v3839 = vsub.f32 %v40, %v3838
    %v3840 = vand.u32 %v3839, 4294901760
    %3841 = vmatmul.f32.gmra.mxu0 %v3840
    %v3842 = vpop.f32.mrf.mxu0
    %v3843 = vadd.f32 %v3804, %v3842
    %v3844 = vand.u32 %v43, 4294901760
    %v3845 = vsub.f32 %v43, %v3844
    %v3846 = vand.u32 %v3845, 4294901760
    %3847 = vmatmul.f32.gmra.mxu0 %v3846
    %v3848 = vpop.f32.mrf.mxu0
    %v3849 = vadd.f32 %v3809, %v3848
    %v3850 = vand.u32 %v46, 4294901760
    %v3851 = vsub.f32 %v46, %v3850
    %v3852 = vand.u32 %v3851, 4294901760
    %3853 = vmatmul.f32.gmra.mxu0 %v3852
    %v3854 = vpop.f32.mrf.mxu0
    %v3855 = vadd.f32 %v3814, %v3854
    %v3856 = vand.u32 %v49, 4294901760
    %v3857 = vsub.f32 %v49, %v3856
    %v3858 = vand.u32 %v3857, 4294901760
    %3859 = vmatmul.f32.gmra.mxu0 %v3858
    %v3860 = vpop.f32.mrf.mxu0
    %v3861 = vadd.f32 %v3819, %v3860
    %3862 = vdwg.mxu0
    %3863 = vmatpush.xpose.msra.mxu0 0.0
    %3864 = vmatpush.xpose.msra.mxu0 0.0
    %3865 = vmatpush.xpose.msra.mxu0 0.0
    %3866 = vmatpush.xpose.msra.mxu0 0.0
    %3867 = vmatpush.xpose.msra.mxu0 0.0
    %3868 = vmatpush.xpose.msra.mxu0 0.0
    %3869 = vmatpush.xpose.msra.mxu0 0.0
    %3870 = vmatpush.xpose.msra.mxu0 0.0
    %3871 = vmatpush.xpose.msra.mxu0 0.0
    %3872 = vmatpush.xpose.msra.mxu0 0.0
    %3873 = vmatpush.xpose.msra.mxu0 0.0
    %3874 = vmatpush.xpose.msra.mxu0 0.0
    %3875 = vmatpush.xpose.msra.mxu0 0.0
    %3876 = vmatpush.xpose.msra.mxu0 0.0
    %3877 = vmatpush.xpose.msra.mxu0 0.0
    %v3878 = vand.u32 %v3692, 4294901760
    %v3879 = vsub.f32 %v3692, %v3878
    %v3880 = vand.u32 %v3879, 4294901760
    %3881 = vmatpush.xpose.msra.mxu0 %v3880
    %v3882 = vand.u32 %v40, 4294901760
    %3883 = vmatmul.f32.gmra.mxu0 %v3882
    %v3884 = vpop.f32.mrf.mxu0
    %v3885 = vadd.f32 %v3843, %v3884
    %v3886 = vand.u32 %v43, 4294901760
    %3887 = vmatmul.f32.gmra.mxu0 %v3886
    %v3888 = vpop.f32.mrf.mxu0
    %v3889 = vadd.f32 %v3849, %v3888
    %v3890 = vand.u32 %v46, 4294901760
    %3891 = vmatmul.f32.gmra.mxu0 %v3890
    %v3892 = vpop.f32.mrf.mxu0
    %v3893 = vadd.f32 %v3855, %v3892
    %v3894 = vand.u32 %v49, 4294901760
    %3895 = vmatmul.f32.gmra.mxu0 %v3894
    %v3896 = vpop.f32.mrf.mxu0
    %v3897 = vadd.f32 %v3861, %v3896
    %3898 = vdwg.mxu0
    %3899 = vmatpush.xpose.msra.mxu0 0.0
    %3900 = vmatpush.xpose.msra.mxu0 0.0
    %3901 = vmatpush.xpose.msra.mxu0 0.0
    %3902 = vmatpush.xpose.msra.mxu0 0.0
    %3903 = vmatpush.xpose.msra.mxu0 0.0
    %3904 = vmatpush.xpose.msra.mxu0 0.0
    %3905 = vmatpush.xpose.msra.mxu0 0.0
    %3906 = vmatpush.xpose.msra.mxu0 0.0
    %3907 = vmatpush.xpose.msra.mxu0 0.0
    %3908 = vmatpush.xpose.msra.mxu0 0.0
    %3909 = vmatpush.xpose.msra.mxu0 0.0
    %3910 = vmatpush.xpose.msra.mxu0 0.0
    %3911 = vmatpush.xpose.msra.mxu0 0.0
    %3912 = vmatpush.xpose.msra.mxu0 0.0
    %3913 = vmatpush.xpose.msra.mxu0 0.0
    %v3914 = vand.u32 %v3692, 4294901760
    %3915 = vmatpush.xpose.msra.mxu0 %v3914
    %v3916 = vand.u32 %v40, 4294901760
    %3917 = vmatmul.f32.gmra.mxu0 %v3916
    %v3918 = vpop.f32.mrf.mxu0
    %v3919 = vadd.f32 %v3885, %v3918
    %v3920 = vand.u32 %v43, 4294901760
    %3921 = vmatmul.f32.gmra.mxu0 %v3920
    %v3922 = vpop.f32.mrf.mxu0
    %v3923 = vadd.f32 %v3889, %v3922
    %v3924 = vand.u32 %v46, 4294901760
    %3925 = vmatmul.f32.gmra.mxu0 %v3924
    %v3926 = vpop.f32.mrf.mxu0
    %v3927 = vadd.f32 %v3893, %v3926
    %v3928 = vand.u32 %v49, 4294901760
    %3929 = vmatmul.f32.gmra.mxu0 %v3928
    %v3930 = vpop.f32.mrf.mxu0
    %v3931 = vadd.f32 %v3897, %v3930
    %3932 = vdwg.mxu0
    %v3934 = vsel %vm38, %v3688, 0
    %3936 = vmatpush.xpose.msra.mxu0 0.0
    %3937 = vmatpush.xpose.msra.mxu0 0.0
    %3938 = vmatpush.xpose.msra.mxu0 0.0
    %3939 = vmatpush.xpose.msra.mxu0 0.0
    %3940 = vmatpush.xpose.msra.mxu0 0.0
    %3941 = vmatpush.xpose.msra.mxu0 0.0
    %3942 = vmatpush.xpose.msra.mxu0 0.0
    %3943 = vmatpush.xpose.msra.mxu0 0.0
    %3944 = vmatpush.xpose.msra.mxu0 0.0
    %3945 = vmatpush.xpose.msra.mxu0 0.0
    %3946 = vmatpush.xpose.msra.mxu0 0.0
    %3947 = vmatpush.xpose.msra.mxu0 0.0
    %3948 = vmatpush.xpose.msra.mxu0 0.0
    %3949 = vmatpush.xpose.msra.mxu0 0.0
    %3950 = vmatpush.xpose.msra.mxu0 0.0
    %v3951 = vand.u32 %v3934, 4294901760
    %3952 = vmatpush.xpose.msra.mxu0 %v3951
    %v3953 = vand.u32 %v294, 4294901760
    %v3954 = vsub.f32 %v294, %v3953
    %v3955 = vand.u32 %v3954, 4294901760
    %v3956 = vsub.f32 %v3954, %v3955
    %v3957 = vand.u32 %v3956, 4294901760
    %3958 = vmatmul.f32.gmra.mxu0 %v3957
    %v3959 = vpop.f32.mrf.mxu0
    %v3960 = vadd.f32 0.0, %v3959
    %v3961 = vand.u32 %v297, 4294901760
    %v3962 = vsub.f32 %v297, %v3961
    %v3963 = vand.u32 %v3962, 4294901760
    %v3964 = vsub.f32 %v3962, %v3963
    %v3965 = vand.u32 %v3964, 4294901760
    %3966 = vmatmul.f32.gmra.mxu0 %v3965
    %v3967 = vpop.f32.mrf.mxu0
    %v3968 = vadd.f32 0.0, %v3967
    %v3969 = vand.u32 %v300, 4294901760
    %v3970 = vsub.f32 %v300, %v3969
    %v3971 = vand.u32 %v3970, 4294901760
    %v3972 = vsub.f32 %v3970, %v3971
    %v3973 = vand.u32 %v3972, 4294901760
    %3974 = vmatmul.f32.gmra.mxu0 %v3973
    %v3975 = vpop.f32.mrf.mxu0
    %v3976 = vadd.f32 0.0, %v3975
    %v3977 = vand.u32 %v303, 4294901760
    %v3978 = vsub.f32 %v303, %v3977
    %v3979 = vand.u32 %v3978, 4294901760
    %v3980 = vsub.f32 %v3978, %v3979
    %v3981 = vand.u32 %v3980, 4294901760
    %3982 = vmatmul.f32.gmra.mxu0 %v3981
    %v3983 = vpop.f32.mrf.mxu0
    %v3984 = vadd.f32 0.0, %v3983
    %3985 = vdwg.mxu0
    %3986 = vmatpush.xpose.msra.mxu0 0.0
    %3987 = vmatpush.xpose.msra.mxu0 0.0
    %3988 = vmatpush.xpose.msra.mxu0 0.0
    %3989 = vmatpush.xpose.msra.mxu0 0.0
    %3990 = vmatpush.xpose.msra.mxu0 0.0
    %3991 = vmatpush.xpose.msra.mxu0 0.0
    %3992 = vmatpush.xpose.msra.mxu0 0.0
    %3993 = vmatpush.xpose.msra.mxu0 0.0
    %3994 = vmatpush.xpose.msra.mxu0 0.0
    %3995 = vmatpush.xpose.msra.mxu0 0.0
    %3996 = vmatpush.xpose.msra.mxu0 0.0
    %3997 = vmatpush.xpose.msra.mxu0 0.0
    %3998 = vmatpush.xpose.msra.mxu0 0.0
    %3999 = vmatpush.xpose.msra.mxu0 0.0
    %4000 = vmatpush.xpose.msra.mxu0 0.0
    %v4001 = vand.u32 %v3934, 4294901760
    %v4002 = vsub.f32 %v3934, %v4001
    %v4003 = vand.u32 %v4002, 4294901760
    %v4004 = vsub.f32 %v4002, %v4003
    %v4005 = vand.u32 %v4004, 4294901760
    %4006 = vmatpush.xpose.msra.mxu0 %v4005
    %v4007 = vand.u32 %v294, 4294901760
    %4008 = vmatmul.f32.gmra.mxu0 %v4007
    %v4009 = vpop.f32.mrf.mxu0
    %v4010 = vadd.f32 %v3960, %v4009
    %v4011 = vand.u32 %v297, 4294901760
    %4012 = vmatmul.f32.gmra.mxu0 %v4011
    %v4013 = vpop.f32.mrf.mxu0
    %v4014 = vadd.f32 %v3968, %v4013
    %v4015 = vand.u32 %v300, 4294901760
    %4016 = vmatmul.f32.gmra.mxu0 %v4015
    %v4017 = vpop.f32.mrf.mxu0
    %v4018 = vadd.f32 %v3976, %v4017
    %v4019 = vand.u32 %v303, 4294901760
    %4020 = vmatmul.f32.gmra.mxu0 %v4019
    %v4021 = vpop.f32.mrf.mxu0
    %v4022 = vadd.f32 %v3984, %v4021
    %4023 = vdwg.mxu0
    %4024 = vmatpush.xpose.msra.mxu0 0.0
    %4025 = vmatpush.xpose.msra.mxu0 0.0
    %4026 = vmatpush.xpose.msra.mxu0 0.0
    %4027 = vmatpush.xpose.msra.mxu0 0.0
    %4028 = vmatpush.xpose.msra.mxu0 0.0
    %4029 = vmatpush.xpose.msra.mxu0 0.0
    %4030 = vmatpush.xpose.msra.mxu0 0.0
    %4031 = vmatpush.xpose.msra.mxu0 0.0
    %4032 = vmatpush.xpose.msra.mxu0 0.0
    %4033 = vmatpush.xpose.msra.mxu0 0.0
    %4034 = vmatpush.xpose.msra.mxu0 0.0
    %4035 = vmatpush.xpose.msra.mxu0 0.0
    %4036 = vmatpush.xpose.msra.mxu0 0.0
    %4037 = vmatpush.xpose.msra.mxu0 0.0
    %4038 = vmatpush.xpose.msra.mxu0 0.0
    %v4039 = vand.u32 %v3934, 4294901760
    %v4040 = vsub.f32 %v3934, %v4039
    %4041 = vmatpush.xpose.msra.mxu0 %v4040
    %v4042 = vand.u32 %v294, 4294901760
    %v4043 = vsub.f32 %v294, %v4042
    %4044 = vmatmul.f32.gmra.mxu0 %v4043
    %v4045 = vpop.f32.mrf.mxu0
    %v4046 = vadd.f32 %v4010, %v4045
    %v4047 = vand.u32 %v297, 4294901760
    %v4048 = vsub.f32 %v297, %v4047
    %4049 = vmatmul.f32.gmra.mxu0 %v4048
    %v4050 = vpop.f32.mrf.mxu0
    %v4051 = vadd.f32 %v4014, %v4050
    %v4052 = vand.u32 %v300, 4294901760
    %v4053 = vsub.f32 %v300, %v4052
    %4054 = vmatmul.f32.gmra.mxu0 %v4053
    %v4055 = vpop.f32.mrf.mxu0
    %v4056 = vadd.f32 %v4018, %v4055
    %v4057 = vand.u32 %v303, 4294901760
    %v4058 = vsub.f32 %v303, %v4057
    %4059 = vmatmul.f32.gmra.mxu0 %v4058
    %v4060 = vpop.f32.mrf.mxu0
    %v4061 = vadd.f32 %v4022, %v4060
    %4062 = vdwg.mxu0
    %4063 = vmatpush.xpose.msra.mxu0 0.0
    %4064 = vmatpush.xpose.msra.mxu0 0.0
    %4065 = vmatpush.xpose.msra.mxu0 0.0
    %4066 = vmatpush.xpose.msra.mxu0 0.0
    %4067 = vmatpush.xpose.msra.mxu0 0.0
    %4068 = vmatpush.xpose.msra.mxu0 0.0
    %4069 = vmatpush.xpose.msra.mxu0 0.0
    %4070 = vmatpush.xpose.msra.mxu0 0.0
    %4071 = vmatpush.xpose.msra.mxu0 0.0
    %4072 = vmatpush.xpose.msra.mxu0 0.0
    %4073 = vmatpush.xpose.msra.mxu0 0.0
    %4074 = vmatpush.xpose.msra.mxu0 0.0
    %4075 = vmatpush.xpose.msra.mxu0 0.0
    %4076 = vmatpush.xpose.msra.mxu0 0.0
    %4077 = vmatpush.xpose.msra.mxu0 0.0
    %v4078 = vand.u32 %v3934, 4294901760
    %4079 = vmatpush.xpose.msra.mxu0 %v4078
    %v4080 = vand.u32 %v294, 4294901760
    %v4081 = vsub.f32 %v294, %v4080
    %v4082 = vand.u32 %v4081, 4294901760
    %4083 = vmatmul.f32.gmra.mxu0 %v4082
    %v4084 = vpop.f32.mrf.mxu0
    %v4085 = vadd.f32 %v4046, %v4084
    %v4086 = vand.u32 %v297, 4294901760
    %v4087 = vsub.f32 %v297, %v4086
    %v4088 = vand.u32 %v4087, 4294901760
    %4089 = vmatmul.f32.gmra.mxu0 %v4088
    %v4090 = vpop.f32.mrf.mxu0
    %v4091 = vadd.f32 %v4051, %v4090
    %v4092 = vand.u32 %v300, 4294901760
    %v4093 = vsub.f32 %v300, %v4092
    %v4094 = vand.u32 %v4093, 4294901760
    %4095 = vmatmul.f32.gmra.mxu0 %v4094
    %v4096 = vpop.f32.mrf.mxu0
    %v4097 = vadd.f32 %v4056, %v4096
    %v4098 = vand.u32 %v303, 4294901760
    %v4099 = vsub.f32 %v303, %v4098
    %v4100 = vand.u32 %v4099, 4294901760
    %4101 = vmatmul.f32.gmra.mxu0 %v4100
    %v4102 = vpop.f32.mrf.mxu0
    %v4103 = vadd.f32 %v4061, %v4102
    %4104 = vdwg.mxu0
    %4105 = vmatpush.xpose.msra.mxu0 0.0
    %4106 = vmatpush.xpose.msra.mxu0 0.0
    %4107 = vmatpush.xpose.msra.mxu0 0.0
    %4108 = vmatpush.xpose.msra.mxu0 0.0
    %4109 = vmatpush.xpose.msra.mxu0 0.0
    %4110 = vmatpush.xpose.msra.mxu0 0.0
    %4111 = vmatpush.xpose.msra.mxu0 0.0
    %4112 = vmatpush.xpose.msra.mxu0 0.0
    %4113 = vmatpush.xpose.msra.mxu0 0.0
    %4114 = vmatpush.xpose.msra.mxu0 0.0
    %4115 = vmatpush.xpose.msra.mxu0 0.0
    %4116 = vmatpush.xpose.msra.mxu0 0.0
    %4117 = vmatpush.xpose.msra.mxu0 0.0
    %4118 = vmatpush.xpose.msra.mxu0 0.0
    %4119 = vmatpush.xpose.msra.mxu0 0.0
    %v4120 = vand.u32 %v3934, 4294901760
    %v4121 = vsub.f32 %v3934, %v4120
    %v4122 = vand.u32 %v4121, 4294901760
    %4123 = vmatpush.xpose.msra.mxu0 %v4122
    %v4124 = vand.u32 %v294, 4294901760
    %4125 = vmatmul.f32.gmra.mxu0 %v4124
    %v4126 = vpop.f32.mrf.mxu0
    %v4127 = vadd.f32 %v4085, %v4126
    %v4128 = vand.u32 %v297, 4294901760
    %4129 = vmatmul.f32.gmra.mxu0 %v4128
    %v4130 = vpop.f32.mrf.mxu0
    %v4131 = vadd.f32 %v4091, %v4130
    %v4132 = vand.u32 %v300, 4294901760
    %4133 = vmatmul.f32.gmra.mxu0 %v4132
    %v4134 = vpop.f32.mrf.mxu0
    %v4135 = vadd.f32 %v4097, %v4134
    %v4136 = vand.u32 %v303, 4294901760
    %4137 = vmatmul.f32.gmra.mxu0 %v4136
    %v4138 = vpop.f32.mrf.mxu0
    %v4139 = vadd.f32 %v4103, %v4138
    %4140 = vdwg.mxu0
    %4141 = vmatpush.xpose.msra.mxu0 0.0
    %4142 = vmatpush.xpose.msra.mxu0 0.0
    %4143 = vmatpush.xpose.msra.mxu0 0.0
    %4144 = vmatpush.xpose.msra.mxu0 0.0
    %4145 = vmatpush.xpose.msra.mxu0 0.0
    %4146 = vmatpush.xpose.msra.mxu0 0.0
    %4147 = vmatpush.xpose.msra.mxu0 0.0
    %4148 = vmatpush.xpose.msra.mxu0 0.0
    %4149 = vmatpush.xpose.msra.mxu0 0.0
    %4150 = vmatpush.xpose.msra.mxu0 0.0
    %4151 = vmatpush.xpose.msra.mxu0 0.0
    %4152 = vmatpush.xpose.msra.mxu0 0.0
    %4153 = vmatpush.xpose.msra.mxu0 0.0
    %4154 = vmatpush.xpose.msra.mxu0 0.0
    %4155 = vmatpush.xpose.msra.mxu0 0.0
    %v4156 = vand.u32 %v3934, 4294901760
    %4157 = vmatpush.xpose.msra.mxu0 %v4156
    %v4158 = vand.u32 %v294, 4294901760
    %4159 = vmatmul.f32.gmra.mxu0 %v4158
    %v4160 = vpop.f32.mrf.mxu0
    %v4161 = vadd.f32 %v4127, %v4160
    %v4162 = vand.u32 %v297, 4294901760
    %4163 = vmatmul.f32.gmra.mxu0 %v4162
    %v4164 = vpop.f32.mrf.mxu0
    %v4165 = vadd.f32 %v4131, %v4164
    %v4166 = vand.u32 %v300, 4294901760
    %4167 = vmatmul.f32.gmra.mxu0 %v4166
    %v4168 = vpop.f32.mrf.mxu0
    %v4169 = vadd.f32 %v4135, %v4168
    %v4170 = vand.u32 %v303, 4294901760
    %4171 = vmatmul.f32.gmra.mxu0 %v4170
    %v4172 = vpop.f32.mrf.mxu0
    %v4173 = vadd.f32 %v4139, %v4172
    %4174 = vdwg.mxu0
    %v4175 = vsel %vm38, %v3919, -inf
    %4176 = vmax.xlane.f32.xlu0 %v4175
    %v4177 = vpop.xlane.xlu0 %4176
    %v4178 = vsel %vm38, %v3923, -inf
    %4179 = vmax.xlane.f32.xlu0 %v4178
    %v4180 = vpop.xlane.xlu0 %4179
    %v4181 = vsel %vm38, %v3927, -inf
    %4182 = vmax.xlane.f32.xlu0 %v4181
    %v4183 = vpop.xlane.xlu0 %4182
    %v4184 = vsel %vm38, %v3931, -inf
    %4185 = vmax.xlane.f32.xlu0 %v4184
    %v4186 = vpop.xlane.xlu0 %4185
    %v4187 = vsel %vm38, %v4161, -inf
    %4188 = vmax.xlane.f32.xlu0 %v4187
    %v4189 = vpop.xlane.xlu0 %4188
    %v4190 = vsel %vm38, %v4165, -inf
    %4191 = vmax.xlane.f32.xlu0 %v4190
    %v4192 = vpop.xlane.xlu0 %4191
    %v4193 = vsel %vm38, %v4169, -inf
    %4194 = vmax.xlane.f32.xlu0 %v4193
    %v4195 = vpop.xlane.xlu0 %4194
    %v4196 = vsel %vm38, %v4173, -inf
    %4197 = vmax.xlane.f32.xlu0 %v4196
    %v4198 = vpop.xlane.xlu0 %4197
    %v4199 = vsub.f32 %v3919, %v4177
    %v4200 = vsub.f32 %v3923, %v4180
    %v4201 = vsub.f32 %v3927, %v4183
    %v4202 = vsub.f32 %v3931, %v4186
    %v4203 = vsub.f32 %v4161, %v4189
    %v4204 = vsub.f32 %v4165, %v4192
    %v4205 = vsub.f32 %v4169, %v4195
    %v4206 = vsub.f32 %v4173, %v4198
    %v4207 = vmul.f32 %v4199, 1.442695
    %v4208 = vpow.pop %v4207
    %v4209 = vmul.f32 %v4200, 1.442695
    %v4210 = vpow.pop %v4209
    %v4211 = vmul.f32 %v4201, 1.442695
    %v4212 = vpow.pop %v4211
    %v4213 = vmul.f32 %v4202, 1.442695
    %v4214 = vpow.pop %v4213
    %v4215 = vmul.f32 %v4203, 1.442695
    %v4216 = vpow.pop %v4215
    %v4217 = vmul.f32 %v4204, 1.442695
    %v4218 = vpow.pop %v4217
    %v4219 = vmul.f32 %v4205, 1.442695
    %v4220 = vpow.pop %v4219
    %v4221 = vmul.f32 %v4206, 1.442695
    %v4222 = vpow.pop %v4221
    %v4223 = vsel %vm38, %v4208, 0.0
    %4224 = vadd.xlane.f32.xlu0 %v4223
    %v4225 = vpop.xlane.xlu0 %4224
    %v4226 = vsel %vm38, %v4210, 0.0
    %4227 = vadd.xlane.f32.xlu0 %v4226
    %v4228 = vpop.xlane.xlu0 %4227
    %v4229 = vsel %vm38, %v4212, 0.0
    %4230 = vadd.xlane.f32.xlu0 %v4229
    %v4231 = vpop.xlane.xlu0 %4230
    %v4232 = vsel %vm38, %v4214, 0.0
    %4233 = vadd.xlane.f32.xlu0 %v4232
    %v4234 = vpop.xlane.xlu0 %4233
    %v4235 = vsel %vm38, %v4216, 0.0
    %4236 = vadd.xlane.f32.xlu0 %v4235
    %v4237 = vpop.xlane.xlu0 %4236
    %v4238 = vsel %vm38, %v4218, 0.0
    %4239 = vadd.xlane.f32.xlu0 %v4238
    %v4240 = vpop.xlane.xlu0 %4239
    %v4241 = vsel %vm38, %v4220, 0.0
    %4242 = vadd.xlane.f32.xlu0 %v4241
    %v4243 = vpop.xlane.xlu0 %4242
    %v4244 = vsel %vm38, %v4222, 0.0
    %4245 = vadd.xlane.f32.xlu0 %v4244
    %v4246 = vpop.xlane.xlu0 %4245
    %v4247 = vrcp.pop %v4225
    %v4248 = vmul.f32 %v4225, %v4247
    %v4249 = vsub.f32 1.0, %v4248
    %v4250 = vmul.f32 %v4247, %v4249
    %v4251 = vadd.f32 %v4247, %v4250
    %vm4252 = vweird.f32 %v4225
    %vm4253 = vweird.f32 %v4247
    %vm4254 = vmor %vm4252, %vm4253
    %v4255 = vsel %vm4254, %v4247, %v4251
    %v4256 = vand.u32 2147483647, %v4225
    %vm4257 = vcmp.eq.f32.partialorder %v4256, 8.507059e+37
    %v4258 = vand.u32 %v4225, 2147483648
    %v4259 = vor.u32 1.1754944e-38, %v4258
    %v4260 = vsel %vm4257, %v4259, %v4255
    %v4261 = vmul.f32 %v4208, %v4260
    %v4262 = vrcp.pop %v4228
    %v4263 = vmul.f32 %v4228, %v4262
    %v4264 = vsub.f32 1.0, %v4263
    %v4265 = vmul.f32 %v4262, %v4264
    %v4266 = vadd.f32 %v4262, %v4265
    %vm4267 = vweird.f32 %v4228
    %vm4268 = vweird.f32 %v4262
    %vm4269 = vmor %vm4267, %vm4268
    %v4270 = vsel %vm4269, %v4262, %v4266
    %v4271 = vand.u32 2147483647, %v4228
    %vm4272 = vcmp.eq.f32.partialorder %v4271, 8.507059e+37
    %v4273 = vand.u32 %v4228, 2147483648
    %v4274 = vor.u32 1.1754944e-38, %v4273
    %v4275 = vsel %vm4272, %v4274, %v4270
    %v4276 = vmul.f32 %v4210, %v4275
    %v4277 = vrcp.pop %v4231
    %v4278 = vmul.f32 %v4231, %v4277
    %v4279 = vsub.f32 1.0, %v4278
    %v4280 = vmul.f32 %v4277, %v4279
    %v4281 = vadd.f32 %v4277, %v4280
    %vm4282 = vweird.f32 %v4231
    %vm4283 = vweird.f32 %v4277
    %vm4284 = vmor %vm4282, %vm4283
    %v4285 = vsel %vm4284, %v4277, %v4281
    %v4286 = vand.u32 2147483647, %v4231
    %vm4287 = vcmp.eq.f32.partialorder %v4286, 8.507059e+37
    %v4288 = vand.u32 %v4231, 2147483648
    %v4289 = vor.u32 1.1754944e-38, %v4288
    %v4290 = vsel %vm4287, %v4289, %v4285
    %v4291 = vmul.f32 %v4212, %v4290
    %v4292 = vrcp.pop %v4234
    %v4293 = vmul.f32 %v4234, %v4292
    %v4294 = vsub.f32 1.0, %v4293
    %v4295 = vmul.f32 %v4292, %v4294
    %v4296 = vadd.f32 %v4292, %v4295
    %vm4297 = vweird.f32 %v4234
    %vm4298 = vweird.f32 %v4292
    %vm4299 = vmor %vm4297, %vm4298
    %v4300 = vsel %vm4299, %v4292, %v4296
    %v4301 = vand.u32 2147483647, %v4234
    %vm4302 = vcmp.eq.f32.partialorder %v4301, 8.507059e+37
    %v4303 = vand.u32 %v4234, 2147483648
    %v4304 = vor.u32 1.1754944e-38, %v4303
    %v4305 = vsel %vm4302, %v4304, %v4300
    %v4306 = vmul.f32 %v4214, %v4305
    %v4307 = vrcp.pop %v4237
    %v4308 = vmul.f32 %v4237, %v4307
    %v4309 = vsub.f32 1.0, %v4308
    %v4310 = vmul.f32 %v4307, %v4309
    %v4311 = vadd.f32 %v4307, %v4310
    %vm4312 = vweird.f32 %v4237
    %vm4313 = vweird.f32 %v4307
    %vm4314 = vmor %vm4312, %vm4313
    %v4315 = vsel %vm4314, %v4307, %v4311
    %v4316 = vand.u32 2147483647, %v4237
    %vm4317 = vcmp.eq.f32.partialorder %v4316, 8.507059e+37
    %v4318 = vand.u32 %v4237, 2147483648
    %v4319 = vor.u32 1.1754944e-38, %v4318
    %v4320 = vsel %vm4317, %v4319, %v4315
    %v4321 = vmul.f32 %v4216, %v4320
    %v4322 = vrcp.pop %v4240
    %v4323 = vmul.f32 %v4240, %v4322
    %v4324 = vsub.f32 1.0, %v4323
    %v4325 = vmul.f32 %v4322, %v4324
    %v4326 = vadd.f32 %v4322, %v4325
    %vm4327 = vweird.f32 %v4240
    %vm4328 = vweird.f32 %v4322
    %vm4329 = vmor %vm4327, %vm4328
    %v4330 = vsel %vm4329, %v4322, %v4326
    %v4331 = vand.u32 2147483647, %v4240
    %vm4332 = vcmp.eq.f32.partialorder %v4331, 8.507059e+37
    %v4333 = vand.u32 %v4240, 2147483648
    %v4334 = vor.u32 1.1754944e-38, %v4333
    %v4335 = vsel %vm4332, %v4334, %v4330
    %v4336 = vmul.f32 %v4218, %v4335
    %v4337 = vrcp.pop %v4243
    %v4338 = vmul.f32 %v4243, %v4337
    %v4339 = vsub.f32 1.0, %v4338
    %v4340 = vmul.f32 %v4337, %v4339
    %v4341 = vadd.f32 %v4337, %v4340
    %vm4342 = vweird.f32 %v4243
    %vm4343 = vweird.f32 %v4337
    %vm4344 = vmor %vm4342, %vm4343
    %v4345 = vsel %vm4344, %v4337, %v4341
    %v4346 = vand.u32 2147483647, %v4243
    %vm4347 = vcmp.eq.f32.partialorder %v4346, 8.507059e+37
    %v4348 = vand.u32 %v4243, 2147483648
    %v4349 = vor.u32 1.1754944e-38, %v4348
    %v4350 = vsel %vm4347, %v4349, %v4345
    %v4351 = vmul.f32 %v4220, %v4350
    %v4352 = vrcp.pop %v4246
    %v4353 = vmul.f32 %v4246, %v4352
    %v4354 = vsub.f32 1.0, %v4353
    %v4355 = vmul.f32 %v4352, %v4354
    %v4356 = vadd.f32 %v4352, %v4355
    %vm4357 = vweird.f32 %v4246
    %vm4358 = vweird.f32 %v4352
    %vm4359 = vmor %vm4357, %vm4358
    %v4360 = vsel %vm4359, %v4352, %v4356
    %v4361 = vand.u32 2147483647, %v4246
    %vm4362 = vcmp.eq.f32.partialorder %v4361, 8.507059e+37
    %v4363 = vand.u32 %v4246, 2147483648
    %v4364 = vor.u32 1.1754944e-38, %v4363
    %v4365 = vsel %vm4362, %v4364, %v4360
    %v4366 = vmul.f32 %v4222, %v4365
    %4375 = vrot.lane.b32.xlu0 %v4261, 24
    %v4376 = vpop.permute.xlu0 %4375
    %4377 = vrot.lane.b32.xlu0 %v4276, 24
    %v4378 = vpop.permute.xlu0 %4377
    %4379 = vrot.lane.b32.xlu0 %v4291, 24
    %v4380 = vpop.permute.xlu0 %4379
    %4381 = vrot.lane.b32.xlu0 %v4306, 24
    %v4382 = vpop.permute.xlu0 %4381
    %4383 = vrot.lane.b32.xlu0 %v4321, 24
    %v4384 = vpop.permute.xlu0 %4383
    %4385 = vrot.lane.b32.xlu0 %v4336, 24
    %v4386 = vpop.permute.xlu0 %4385
    %4387 = vrot.lane.b32.xlu0 %v4351, 24
    %v4388 = vpop.permute.xlu0 %4387
    %4389 = vrot.lane.b32.xlu0 %v4366, 24
    %v4390 = vpop.permute.xlu0 %4389
    %vm4399 = vcmask 261312
    %4400 = vst.msk [vmem:[#allocation4] sm:$0xff] %vm4399, %v4376
    %4401 = vst.msk [vmem:[#allocation4 + $0x8] sm:$0xff] %vm4399, %v4378
    %4402 = vst.msk [vmem:[#allocation4 + $0x10] sm:$0xff] %vm4399, %v4380
    %4403 = vst.msk [vmem:[#allocation4 + $0x18] sm:$0xff] %vm4399, %v4382
    %4404 = vst.msk [vmem:[#allocation4 + $0x20] sm:$0xff] %vm4399, %v4384
    %4405 = vst.msk [vmem:[#allocation4 + $0x28] sm:$0xff] %vm4399, %v4386
    %4406 = vst.msk [vmem:[#allocation4 + $0x30] sm:$0xff] %vm4399, %v4388
    %4407 = vst.msk [vmem:[#allocation4 + $0x38] sm:$0xff] %vm4399, %v4390
    %v4408 = vsel %vm38, %v4261, 0
    %v4410 = vsel %vm38, %v4276, 0
    %v4412 = vsel %vm38, %v4291, 0
    %v4414 = vsel %vm38, %v4306, 0
    %4416 = vmatpush.msra.mxu0 0.0
    %4417 = vmatpush.msra.mxu0 0.0
    %4418 = vmatpush.msra.mxu0 0.0
    %4419 = vmatpush.msra.mxu0 0.0
    %4420 = vmatpush.msra.mxu0 0.0
    %4421 = vmatpush.msra.mxu0 0.0
    %4422 = vmatpush.msra.mxu0 0.0
    %4423 = vmatpush.msra.mxu0 0.0
    %4424 = vmatpush.msra.mxu0 0.0
    %4425 = vmatpush.msra.mxu0 0.0
    %4426 = vmatpush.msra.mxu0 0.0
    %4427 = vmatpush.msra.mxu0 0.0
    %4428 = vmatpush.msra.mxu0 0.0
    %4429 = vmatpush.msra.mxu0 0.0
    %4430 = vmatpush.msra.mxu0 0.0
    %v4431 = vand.u32 %v3689, 4294901760
    %4432 = vmatpush.msra.mxu0 %v4431
    %v4433 = vand.u32 %v4408, 4294901760
    %v4434 = vsub.f32 %v4408, %v4433
    %v4435 = vand.u32 %v4434, 4294901760
    %v4436 = vsub.f32 %v4434, %v4435
    %v4437 = vand.u32 %v4436, 4294901760
    %4438 = vmatmul.f32.gmra.mxu0 %v4437
    %v4439 = vpop.f32.mrf.mxu0
    %v4440 = vadd.f32 0.0, %v4439
    %v4441 = vand.u32 %v4410, 4294901760
    %v4442 = vsub.f32 %v4410, %v4441
    %v4443 = vand.u32 %v4442, 4294901760
    %v4444 = vsub.f32 %v4442, %v4443
    %v4445 = vand.u32 %v4444, 4294901760
    %4446 = vmatmul.f32.gmra.mxu0 %v4445
    %v4447 = vpop.f32.mrf.mxu0
    %v4448 = vadd.f32 0.0, %v4447
    %v4449 = vand.u32 %v4412, 4294901760
    %v4450 = vsub.f32 %v4412, %v4449
    %v4451 = vand.u32 %v4450, 4294901760
    %v4452 = vsub.f32 %v4450, %v4451
    %v4453 = vand.u32 %v4452, 4294901760
    %4454 = vmatmul.f32.gmra.mxu0 %v4453
    %v4455 = vpop.f32.mrf.mxu0
    %v4456 = vadd.f32 0.0, %v4455
    %v4457 = vand.u32 %v4414, 4294901760
    %v4458 = vsub.f32 %v4414, %v4457
    %v4459 = vand.u32 %v4458, 4294901760
    %v4460 = vsub.f32 %v4458, %v4459
    %v4461 = vand.u32 %v4460, 4294901760
    %4462 = vmatmul.f32.gmra.mxu0 %v4461
    %v4463 = vpop.f32.mrf.mxu0
    %v4464 = vadd.f32 0.0, %v4463
    %4465 = vdwg.mxu0
    %4466 = vmatpush.msra.mxu0 0.0
    %4467 = vmatpush.msra.mxu0 0.0
    %4468 = vmatpush.msra.mxu0 0.0
    %4469 = vmatpush.msra.mxu0 0.0
    %4470 = vmatpush.msra.mxu0 0.0
    %4471 = vmatpush.msra.mxu0 0.0
    %4472 = vmatpush.msra.mxu0 0.0
    %4473 = vmatpush.msra.mxu0 0.0
    %4474 = vmatpush.msra.mxu0 0.0
    %4475 = vmatpush.msra.mxu0 0.0
    %4476 = vmatpush.msra.mxu0 0.0
    %4477 = vmatpush.msra.mxu0 0.0
    %4478 = vmatpush.msra.mxu0 0.0
    %4479 = vmatpush.msra.mxu0 0.0
    %4480 = vmatpush.msra.mxu0 0.0
    %v4481 = vand.u32 %v3689, 4294901760
    %v4482 = vsub.f32 %v3689, %v4481
    %v4483 = vand.u32 %v4482, 4294901760
    %v4484 = vsub.f32 %v4482, %v4483
    %v4485 = vand.u32 %v4484, 4294901760
    %4486 = vmatpush.msra.mxu0 %v4485
    %v4487 = vand.u32 %v4408, 4294901760
    %4488 = vmatmul.f32.gmra.mxu0 %v4487
    %v4489 = vpop.f32.mrf.mxu0
    %v4490 = vadd.f32 %v4440, %v4489
    %v4491 = vand.u32 %v4410, 4294901760
    %4492 = vmatmul.f32.gmra.mxu0 %v4491
    %v4493 = vpop.f32.mrf.mxu0
    %v4494 = vadd.f32 %v4448, %v4493
    %v4495 = vand.u32 %v4412, 4294901760
    %4496 = vmatmul.f32.gmra.mxu0 %v4495
    %v4497 = vpop.f32.mrf.mxu0
    %v4498 = vadd.f32 %v4456, %v4497
    %v4499 = vand.u32 %v4414, 4294901760
    %4500 = vmatmul.f32.gmra.mxu0 %v4499
    %v4501 = vpop.f32.mrf.mxu0
    %v4502 = vadd.f32 %v4464, %v4501
    %4503 = vdwg.mxu0
    %4504 = vmatpush.msra.mxu0 0.0
    %4505 = vmatpush.msra.mxu0 0.0
    %4506 = vmatpush.msra.mxu0 0.0
    %4507 = vmatpush.msra.mxu0 0.0
    %4508 = vmatpush.msra.mxu0 0.0
    %4509 = vmatpush.msra.mxu0 0.0
    %4510 = vmatpush.msra.mxu0 0.0
    %4511 = vmatpush.msra.mxu0 0.0
    %4512 = vmatpush.msra.mxu0 0.0
    %4513 = vmatpush.msra.mxu0 0.0
    %4514 = vmatpush.msra.mxu0 0.0
    %4515 = vmatpush.msra.mxu0 0.0
    %4516 = vmatpush.msra.mxu0 0.0
    %4517 = vmatpush.msra.mxu0 0.0
    %4518 = vmatpush.msra.mxu0 0.0
    %v4519 = vand.u32 %v3689, 4294901760
    %v4520 = vsub.f32 %v3689, %v4519
    %4521 = vmatpush.msra.mxu0 %v4520
    %v4522 = vand.u32 %v4408, 4294901760
    %v4523 = vsub.f32 %v4408, %v4522
    %4524 = vmatmul.f32.gmra.mxu0 %v4523
    %v4525 = vpop.f32.mrf.mxu0
    %v4526 = vadd.f32 %v4490, %v4525
    %v4527 = vand.u32 %v4410, 4294901760
    %v4528 = vsub.f32 %v4410, %v4527
    %4529 = vmatmul.f32.gmra.mxu0 %v4528
    %v4530 = vpop.f32.mrf.mxu0
    %v4531 = vadd.f32 %v4494, %v4530
    %v4532 = vand.u32 %v4412, 4294901760
    %v4533 = vsub.f32 %v4412, %v4532
    %4534 = vmatmul.f32.gmra.mxu0 %v4533
    %v4535 = vpop.f32.mrf.mxu0
    %v4536 = vadd.f32 %v4498, %v4535
    %v4537 = vand.u32 %v4414, 4294901760
    %v4538 = vsub.f32 %v4414, %v4537
    %4539 = vmatmul.f32.gmra.mxu0 %v4538
    %v4540 = vpop.f32.mrf.mxu0
    %v4541 = vadd.f32 %v4502, %v4540
    %4542 = vdwg.mxu0
    %4543 = vmatpush.msra.mxu0 0.0
    %4544 = vmatpush.msra.mxu0 0.0
    %4545 = vmatpush.msra.mxu0 0.0
    %4546 = vmatpush.msra.mxu0 0.0
    %4547 = vmatpush.msra.mxu0 0.0
    %4548 = vmatpush.msra.mxu0 0.0
    %4549 = vmatpush.msra.mxu0 0.0
    %4550 = vmatpush.msra.mxu0 0.0
    %4551 = vmatpush.msra.mxu0 0.0
    %4552 = vmatpush.msra.mxu0 0.0
    %4553 = vmatpush.msra.mxu0 0.0
    %4554 = vmatpush.msra.mxu0 0.0
    %4555 = vmatpush.msra.mxu0 0.0
    %4556 = vmatpush.msra.mxu0 0.0
    %4557 = vmatpush.msra.mxu0 0.0
    %v4558 = vand.u32 %v3689, 4294901760
    %4559 = vmatpush.msra.mxu0 %v4558
    %v4560 = vand.u32 %v4408, 4294901760
    %v4561 = vsub.f32 %v4408, %v4560
    %v4562 = vand.u32 %v4561, 4294901760
    %4563 = vmatmul.f32.gmra.mxu0 %v4562
    %v4564 = vpop.f32.mrf.mxu0
    %v4565 = vadd.f32 %v4526, %v4564
    %v4566 = vand.u32 %v4410, 4294901760
    %v4567 = vsub.f32 %v4410, %v4566
    %v4568 = vand.u32 %v4567, 4294901760
    %4569 = vmatmul.f32.gmra.mxu0 %v4568
    %v4570 = vpop.f32.mrf.mxu0
    %v4571 = vadd.f32 %v4531, %v4570
    %v4572 = vand.u32 %v4412, 4294901760
    %v4573 = vsub.f32 %v4412, %v4572
    %v4574 = vand.u32 %v4573, 4294901760
    %4575 = vmatmul.f32.gmra.mxu0 %v4574
    %v4576 = vpop.f32.mrf.mxu0
    %v4577 = vadd.f32 %v4536, %v4576
    %v4578 = vand.u32 %v4414, 4294901760
    %v4579 = vsub.f32 %v4414, %v4578
    %v4580 = vand.u32 %v4579, 4294901760
    %4581 = vmatmul.f32.gmra.mxu0 %v4580
    %v4582 = vpop.f32.mrf.mxu0
    %v4583 = vadd.f32 %v4541, %v4582
    %4584 = vdwg.mxu0
    %4585 = vmatpush.msra.mxu0 0.0
    %4586 = vmatpush.msra.mxu0 0.0
    %4587 = vmatpush.msra.mxu0 0.0
    %4588 = vmatpush.msra.mxu0 0.0
    %4589 = vmatpush.msra.mxu0 0.0
    %4590 = vmatpush.msra.mxu0 0.0
    %4591 = vmatpush.msra.mxu0 0.0
    %4592 = vmatpush.msra.mxu0 0.0
    %4593 = vmatpush.msra.mxu0 0.0
    %4594 = vmatpush.msra.mxu0 0.0
    %4595 = vmatpush.msra.mxu0 0.0
    %4596 = vmatpush.msra.mxu0 0.0
    %4597 = vmatpush.msra.mxu0 0.0
    %4598 = vmatpush.msra.mxu0 0.0
    %4599 = vmatpush.msra.mxu0 0.0
    %v4600 = vand.u32 %v3689, 4294901760
    %v4601 = vsub.f32 %v3689, %v4600
    %v4602 = vand.u32 %v4601, 4294901760
    %4603 = vmatpush.msra.mxu0 %v4602
    %v4604 = vand.u32 %v4408, 4294901760
    %4605 = vmatmul.f32.gmra.mxu0 %v4604
    %v4606 = vpop.f32.mrf.mxu0
    %v4607 = vadd.f32 %v4565, %v4606
    %v4608 = vand.u32 %v4410, 4294901760
    %4609 = vmatmul.f32.gmra.mxu0 %v4608
    %v4610 = vpop.f32.mrf.mxu0
    %v4611 = vadd.f32 %v4571, %v4610
    %v4612 = vand.u32 %v4412, 4294901760
    %4613 = vmatmul.f32.gmra.mxu0 %v4612
    %v4614 = vpop.f32.mrf.mxu0
    %v4615 = vadd.f32 %v4577, %v4614
    %v4616 = vand.u32 %v4414, 4294901760
    %4617 = vmatmul.f32.gmra.mxu0 %v4616
    %v4618 = vpop.f32.mrf.mxu0
    %v4619 = vadd.f32 %v4583, %v4618
    %4620 = vdwg.mxu0
    %4621 = vmatpush.msra.mxu0 0.0
    %4622 = vmatpush.msra.mxu0 0.0
    %4623 = vmatpush.msra.mxu0 0.0
    %4624 = vmatpush.msra.mxu0 0.0
    %4625 = vmatpush.msra.mxu0 0.0
    %4626 = vmatpush.msra.mxu0 0.0
    %4627 = vmatpush.msra.mxu0 0.0
    %4628 = vmatpush.msra.mxu0 0.0
    %4629 = vmatpush.msra.mxu0 0.0
    %4630 = vmatpush.msra.mxu0 0.0
    %4631 = vmatpush.msra.mxu0 0.0
    %4632 = vmatpush.msra.mxu0 0.0
    %4633 = vmatpush.msra.mxu0 0.0
    %4634 = vmatpush.msra.mxu0 0.0
    %4635 = vmatpush.msra.mxu0 0.0
    %v4636 = vand.u32 %v3689, 4294901760
    %4637 = vmatpush.msra.mxu0 %v4636
    %v4638 = vand.u32 %v4408, 4294901760
    %4639 = vmatmul.f32.gmra.mxu0 %v4638
    %v4640 = vpop.f32.mrf.mxu0
    %v4641 = vadd.f32 %v4607, %v4640
    %v4642 = vand.u32 %v4410, 4294901760
    %4643 = vmatmul.f32.gmra.mxu0 %v4642
    %v4644 = vpop.f32.mrf.mxu0
    %v4645 = vadd.f32 %v4611, %v4644
    %v4646 = vand.u32 %v4412, 4294901760
    %4647 = vmatmul.f32.gmra.mxu0 %v4646
    %v4648 = vpop.f32.mrf.mxu0
    %v4649 = vadd.f32 %v4615, %v4648
    %v4650 = vand.u32 %v4414, 4294901760
    %4651 = vmatmul.f32.gmra.mxu0 %v4650
    %v4652 = vpop.f32.mrf.mxu0
    %v4653 = vadd.f32 %v4619, %v4652
    %4654 = vdwg.mxu0
    %v4655 = vsel %vm38, %v4321, 0
    %v4657 = vsel %vm38, %v4336, 0
    %v4659 = vsel %vm38, %v4351, 0
    %v4661 = vsel %vm38, %v4366, 0
    %4663 = vmatpush.msra.mxu0 0.0
    %4664 = vmatpush.msra.mxu0 0.0
    %4665 = vmatpush.msra.mxu0 0.0
    %4666 = vmatpush.msra.mxu0 0.0
    %4667 = vmatpush.msra.mxu0 0.0
    %4668 = vmatpush.msra.mxu0 0.0
    %4669 = vmatpush.msra.mxu0 0.0
    %4670 = vmatpush.msra.mxu0 0.0
    %4671 = vmatpush.msra.mxu0 0.0
    %4672 = vmatpush.msra.mxu0 0.0
    %4673 = vmatpush.msra.mxu0 0.0
    %4674 = vmatpush.msra.mxu0 0.0
    %4675 = vmatpush.msra.mxu0 0.0
    %4676 = vmatpush.msra.mxu0 0.0
    %4677 = vmatpush.msra.mxu0 0.0
    %v4678 = vand.u32 %v3690, 4294901760
    %4679 = vmatpush.msra.mxu0 %v4678
    %v4680 = vand.u32 %v4655, 4294901760
    %v4681 = vsub.f32 %v4655, %v4680
    %v4682 = vand.u32 %v4681, 4294901760
    %v4683 = vsub.f32 %v4681, %v4682
    %v4684 = vand.u32 %v4683, 4294901760
    %4685 = vmatmul.f32.gmra.mxu0 %v4684
    %v4686 = vpop.f32.mrf.mxu0
    %v4687 = vadd.f32 0.0, %v4686
    %v4688 = vand.u32 %v4657, 4294901760
    %v4689 = vsub.f32 %v4657, %v4688
    %v4690 = vand.u32 %v4689, 4294901760
    %v4691 = vsub.f32 %v4689, %v4690
    %v4692 = vand.u32 %v4691, 4294901760
    %4693 = vmatmul.f32.gmra.mxu0 %v4692
    %v4694 = vpop.f32.mrf.mxu0
    %v4695 = vadd.f32 0.0, %v4694
    %v4696 = vand.u32 %v4659, 4294901760
    %v4697 = vsub.f32 %v4659, %v4696
    %v4698 = vand.u32 %v4697, 4294901760
    %v4699 = vsub.f32 %v4697, %v4698
    %v4700 = vand.u32 %v4699, 4294901760
    %4701 = vmatmul.f32.gmra.mxu0 %v4700
    %v4702 = vpop.f32.mrf.mxu0
    %v4703 = vadd.f32 0.0, %v4702
    %v4704 = vand.u32 %v4661, 4294901760
    %v4705 = vsub.f32 %v4661, %v4704
    %v4706 = vand.u32 %v4705, 4294901760
    %v4707 = vsub.f32 %v4705, %v4706
    %v4708 = vand.u32 %v4707, 4294901760
    %4709 = vmatmul.f32.gmra.mxu0 %v4708
    %v4710 = vpop.f32.mrf.mxu0
    %v4711 = vadd.f32 0.0, %v4710
    %4712 = vdwg.mxu0
    %4713 = vmatpush.msra.mxu0 0.0
    %4714 = vmatpush.msra.mxu0 0.0
    %4715 = vmatpush.msra.mxu0 0.0
    %4716 = vmatpush.msra.mxu0 0.0
    %4717 = vmatpush.msra.mxu0 0.0
    %4718 = vmatpush.msra.mxu0 0.0
    %4719 = vmatpush.msra.mxu0 0.0
    %4720 = vmatpush.msra.mxu0 0.0
    %4721 = vmatpush.msra.mxu0 0.0
    %4722 = vmatpush.msra.mxu0 0.0
    %4723 = vmatpush.msra.mxu0 0.0
    %4724 = vmatpush.msra.mxu0 0.0
    %4725 = vmatpush.msra.mxu0 0.0
    %4726 = vmatpush.msra.mxu0 0.0
    %4727 = vmatpush.msra.mxu0 0.0
    %v4728 = vand.u32 %v3690, 4294901760
    %v4729 = vsub.f32 %v3690, %v4728
    %v4730 = vand.u32 %v4729, 4294901760
    %v4731 = vsub.f32 %v4729, %v4730
    %v4732 = vand.u32 %v4731, 4294901760
    %4733 = vmatpush.msra.mxu0 %v4732
    %v4734 = vand.u32 %v4655, 4294901760
    %4735 = vmatmul.f32.gmra.mxu0 %v4734
    %v4736 = vpop.f32.mrf.mxu0
    %v4737 = vadd.f32 %v4687, %v4736
    %v4738 = vand.u32 %v4657, 4294901760
    %4739 = vmatmul.f32.gmra.mxu0 %v4738
    %v4740 = vpop.f32.mrf.mxu0
    %v4741 = vadd.f32 %v4695, %v4740
    %v4742 = vand.u32 %v4659, 4294901760
    %4743 = vmatmul.f32.gmra.mxu0 %v4742
    %v4744 = vpop.f32.mrf.mxu0
    %v4745 = vadd.f32 %v4703, %v4744
    %v4746 = vand.u32 %v4661, 4294901760
    %4747 = vmatmul.f32.gmra.mxu0 %v4746
    %v4748 = vpop.f32.mrf.mxu0
    %v4749 = vadd.f32 %v4711, %v4748
    %4750 = vdwg.mxu0
    %4751 = vmatpush.msra.mxu0 0.0
    %4752 = vmatpush.msra.mxu0 0.0
    %4753 = vmatpush.msra.mxu0 0.0
    %4754 = vmatpush.msra.mxu0 0.0
    %4755 = vmatpush.msra.mxu0 0.0
    %4756 = vmatpush.msra.mxu0 0.0
    %4757 = vmatpush.msra.mxu0 0.0
    %4758 = vmatpush.msra.mxu0 0.0
    %4759 = vmatpush.msra.mxu0 0.0
    %4760 = vmatpush.msra.mxu0 0.0
    %4761 = vmatpush.msra.mxu0 0.0
    %4762 = vmatpush.msra.mxu0 0.0
    %4763 = vmatpush.msra.mxu0 0.0
    %4764 = vmatpush.msra.mxu0 0.0
    %4765 = vmatpush.msra.mxu0 0.0
    %v4766 = vand.u32 %v3690, 4294901760
    %v4767 = vsub.f32 %v3690, %v4766
    %4768 = vmatpush.msra.mxu0 %v4767
    %v4769 = vand.u32 %v4655, 4294901760
    %v4770 = vsub.f32 %v4655, %v4769
    %4771 = vmatmul.f32.gmra.mxu0 %v4770
    %v4772 = vpop.f32.mrf.mxu0
    %v4773 = vadd.f32 %v4737, %v4772
    %v4774 = vand.u32 %v4657, 4294901760
    %v4775 = vsub.f32 %v4657, %v4774
    %4776 = vmatmul.f32.gmra.mxu0 %v4775
    %v4777 = vpop.f32.mrf.mxu0
    %v4778 = vadd.f32 %v4741, %v4777
    %v4779 = vand.u32 %v4659, 4294901760
    %v4780 = vsub.f32 %v4659, %v4779
    %4781 = vmatmul.f32.gmra.mxu0 %v4780
    %v4782 = vpop.f32.mrf.mxu0
    %v4783 = vadd.f32 %v4745, %v4782
    %v4784 = vand.u32 %v4661, 4294901760
    %v4785 = vsub.f32 %v4661, %v4784
    %4786 = vmatmul.f32.gmra.mxu0 %v4785
    %v4787 = vpop.f32.mrf.mxu0
    %v4788 = vadd.f32 %v4749, %v4787
    %4789 = vdwg.mxu0
    %4790 = vmatpush.msra.mxu0 0.0
    %4791 = vmatpush.msra.mxu0 0.0
    %4792 = vmatpush.msra.mxu0 0.0
    %4793 = vmatpush.msra.mxu0 0.0
    %4794 = vmatpush.msra.mxu0 0.0
    %4795 = vmatpush.msra.mxu0 0.0
    %4796 = vmatpush.msra.mxu0 0.0
    %4797 = vmatpush.msra.mxu0 0.0
    %4798 = vmatpush.msra.mxu0 0.0
    %4799 = vmatpush.msra.mxu0 0.0
    %4800 = vmatpush.msra.mxu0 0.0
    %4801 = vmatpush.msra.mxu0 0.0
    %4802 = vmatpush.msra.mxu0 0.0
    %4803 = vmatpush.msra.mxu0 0.0
    %4804 = vmatpush.msra.mxu0 0.0
    %v4805 = vand.u32 %v3690, 4294901760
    %4806 = vmatpush.msra.mxu0 %v4805
    %v4807 = vand.u32 %v4655, 4294901760
    %v4808 = vsub.f32 %v4655, %v4807
    %v4809 = vand.u32 %v4808, 4294901760
    %4810 = vmatmul.f32.gmra.mxu0 %v4809
    %v4811 = vpop.f32.mrf.mxu0
    %v4812 = vadd.f32 %v4773, %v4811
    %v4813 = vand.u32 %v4657, 4294901760
    %v4814 = vsub.f32 %v4657, %v4813
    %v4815 = vand.u32 %v4814, 4294901760
    %4816 = vmatmul.f32.gmra.mxu0 %v4815
    %v4817 = vpop.f32.mrf.mxu0
    %v4818 = vadd.f32 %v4778, %v4817
    %v4819 = vand.u32 %v4659, 4294901760
    %v4820 = vsub.f32 %v4659, %v4819
    %v4821 = vand.u32 %v4820, 4294901760
    %4822 = vmatmul.f32.gmra.mxu0 %v4821
    %v4823 = vpop.f32.mrf.mxu0
    %v4824 = vadd.f32 %v4783, %v4823
    %v4825 = vand.u32 %v4661, 4294901760
    %v4826 = vsub.f32 %v4661, %v4825
    %v4827 = vand.u32 %v4826, 4294901760
    %4828 = vmatmul.f32.gmra.mxu0 %v4827
    %v4829 = vpop.f32.mrf.mxu0
    %v4830 = vadd.f32 %v4788, %v4829
    %4831 = vdwg.mxu0
    %4832 = vmatpush.msra.mxu0 0.0
    %4833 = vmatpush.msra.mxu0 0.0
    %4834 = vmatpush.msra.mxu0 0.0
    %4835 = vmatpush.msra.mxu0 0.0
    %4836 = vmatpush.msra.mxu0 0.0
    %4837 = vmatpush.msra.mxu0 0.0
    %4838 = vmatpush.msra.mxu0 0.0
    %4839 = vmatpush.msra.mxu0 0.0
    %4840 = vmatpush.msra.mxu0 0.0
    %4841 = vmatpush.msra.mxu0 0.0
    %4842 = vmatpush.msra.mxu0 0.0
    %4843 = vmatpush.msra.mxu0 0.0
    %4844 = vmatpush.msra.mxu0 0.0
    %4845 = vmatpush.msra.mxu0 0.0
    %4846 = vmatpush.msra.mxu0 0.0
    %v4847 = vand.u32 %v3690, 4294901760
    %v4848 = vsub.f32 %v3690, %v4847
    %v4849 = vand.u32 %v4848, 4294901760
    %4850 = vmatpush.msra.mxu0 %v4849
    %v4851 = vand.u32 %v4655, 4294901760
    %4852 = vmatmul.f32.gmra.mxu0 %v4851
    %v4853 = vpop.f32.mrf.mxu0
    %v4854 = vadd.f32 %v4812, %v4853
    %v4855 = vand.u32 %v4657, 4294901760
    %4856 = vmatmul.f32.gmra.mxu0 %v4855
    %v4857 = vpop.f32.mrf.mxu0
    %v4858 = vadd.f32 %v4818, %v4857
    %v4859 = vand.u32 %v4659, 4294901760
    %4860 = vmatmul.f32.gmra.mxu0 %v4859
    %v4861 = vpop.f32.mrf.mxu0
    %v4862 = vadd.f32 %v4824, %v4861
    %v4863 = vand.u32 %v4661, 4294901760
    %4864 = vmatmul.f32.gmra.mxu0 %v4863
    %v4865 = vpop.f32.mrf.mxu0
    %v4866 = vadd.f32 %v4830, %v4865
    %4867 = vdwg.mxu0
    %4868 = vmatpush.msra.mxu0 0.0
    %4869 = vmatpush.msra.mxu0 0.0
    %4870 = vmatpush.msra.mxu0 0.0
    %4871 = vmatpush.msra.mxu0 0.0
    %4872 = vmatpush.msra.mxu0 0.0
    %4873 = vmatpush.msra.mxu0 0.0
    %4874 = vmatpush.msra.mxu0 0.0
    %4875 = vmatpush.msra.mxu0 0.0
    %4876 = vmatpush.msra.mxu0 0.0
    %4877 = vmatpush.msra.mxu0 0.0
    %4878 = vmatpush.msra.mxu0 0.0
    %4879 = vmatpush.msra.mxu0 0.0
    %4880 = vmatpush.msra.mxu0 0.0
    %4881 = vmatpush.msra.mxu0 0.0
    %4882 = vmatpush.msra.mxu0 0.0
    %v4883 = vand.u32 %v3690, 4294901760
    %4884 = vmatpush.msra.mxu0 %v4883
    %v4885 = vand.u32 %v4655, 4294901760
    %4886 = vmatmul.f32.gmra.mxu0 %v4885
    %v4887 = vpop.f32.mrf.mxu0
    %v4888 = vadd.f32 %v4854, %v4887
    %v4889 = vand.u32 %v4657, 4294901760
    %4890 = vmatmul.f32.gmra.mxu0 %v4889
    %v4891 = vpop.f32.mrf.mxu0
    %v4892 = vadd.f32 %v4858, %v4891
    %v4893 = vand.u32 %v4659, 4294901760
    %4894 = vmatmul.f32.gmra.mxu0 %v4893
    %v4895 = vpop.f32.mrf.mxu0
    %v4896 = vadd.f32 %v4862, %v4895
    %v4897 = vand.u32 %v4661, 4294901760
    %4898 = vmatmul.f32.gmra.mxu0 %v4897
    %v4899 = vpop.f32.mrf.mxu0
    %v4900 = vadd.f32 %v4866, %v4899
    %4901 = vdwg.mxu0
    %v4902 = vadd.f32 %v3679, %v4641
    %v4903 = vadd.f32 %v3680, %v4645
    %v4904 = vadd.f32 %v3681, %v4649
    %v4905 = vadd.f32 %v3682, %v4653
    %v4906 = vadd.f32 %v3683, %v4888
    %v4907 = vadd.f32 %v3684, %v4892
    %v4908 = vadd.f32 %v3685, %v4896
    %v4909 = vadd.f32 %v3686, %v4900
    %4910 = vst.msk [vmem:[#allocation2] sm:$0xff] %vm38, %v4902
    %4911 = vst.msk [vmem:[#allocation2 + $0x8] sm:$0xff] %vm38, %v4906
    %4914 = vrot.lane.b32.xlu0 %v4903, 8
    %v4915 = vpop.permute.xlu0 %4914
    %4916 = vrot.lane.b32.xlu0 %v4907, 8
    %v4917 = vpop.permute.xlu0 %4916
    %4920 = vst.msk [vmem:[#allocation2] sm:$0xff] %vm1459, %v4915
    %4921 = vst.msk [vmem:[#allocation2 + $0x8] sm:$0xff] %vm1459, %v4917
    %4924 = vrot.lane.b32.xlu0 %v4904, 16
    %v4925 = vpop.permute.xlu0 %4924
    %4926 = vrot.lane.b32.xlu0 %v4908, 16
    %v4927 = vpop.permute.xlu0 %4926
    %4930 = vst.msk [vmem:[#allocation2] sm:$0xff] %vm3176, %v4925
    %4931 = vst.msk [vmem:[#allocation2 + $0x8] sm:$0xff] %vm3176, %v4927
    %4934 = vrot.lane.b32.xlu0 %v4905, 24
    %v4935 = vpop.permute.xlu0 %4934
    %4936 = vrot.lane.b32.xlu0 %v4909, 24
    %v4937 = vpop.permute.xlu0 %4936
    %4940 = vst.msk [vmem:[#allocation2] sm:$0xff] %vm4399, %v4935
    %4941 = vst.msk [vmem:[#allocation2 + $0x8] sm:$0xff] %vm4399, %v4937
    // Predicated region
    $region14: #{tpu_custom_call.1} parent=1 // pred_check
      _
    $region15: #{tpu_custom_call.1} parent=1 // pred_check_branch
      %4943 = sbr.rel (0) target = $region17
    $region16: #{tpu_custom_call.1} parent=1 // pred_region
      %4945 = vsyncadd [#allocation3], 0
      %s4946 = sshll.u32 [#allocation2], 4
      %s4947 = int_to_ptr.vmem [resolvable:$true] %s4946
      %s4948 = sshll.u32 %s3, 4
      %s4949 = int_to_ptr.hbm [resolvable:$true] %s4948
      %4954 = dma.vmem_to_hbm [thread:$0]  %s4947, 256, %s4949, [#allocation3], 128, 128, 8
    $region17: #{tpu_custom_call.1} parent=1 // pred_fallthru
      _
    // Predicated region
    $region18: #{tpu_custom_call.1} parent=1 // pred_check
      _
    $region19: #{tpu_custom_call.1} parent=1 // pred_check_branch
      %4956 = sbr.rel (0) target = $region21
    $region20: #{tpu_custom_call.1} parent=1 // pred_region
      %4958 = vsyncadd [#allocation5], 0
      %s4959 = sshll.u32 [#allocation4], 4
      %s4960 = int_to_ptr.vmem [resolvable:$true] %s4959
      %s4961 = sshll.u32 %s4, 4
      %s4962 = int_to_ptr.hbm [resolvable:$true] %s4961
      %4967 = dma.vmem_to_hbm [thread:$0]  %s4960, 1024, %s4962, [#allocation5], 128, 128, 8
    $region21: #{tpu_custom_call.1} parent=1 // pred_fallthru
      _
    // Predicated region
    $region22: #{tpu_custom_call.1} parent=1 // pred_check
      _
    $region23: #{tpu_custom_call.1} parent=1 // pred_check_branch
      %4969 = sbr.rel (0) target = $region25
    $region24: #{tpu_custom_call.1} parent=1 // pred_region
      %4971 = dma.done [#allocation3], 256
    $region25: #{tpu_custom_call.1} parent=1 // pred_fallthru
      _
    // Predicated region
    $region26: #{tpu_custom_call.1} parent=1 // pred_check
      _
    $region27: #{tpu_custom_call.1} parent=1 // pred_check_branch
      %4973 = sbr.rel (0) target = $region29
    $region28: #{tpu_custom_call.1} parent=1 // pred_region
      %4975 = dma.done [#allocation5], 1024
    $region29: #{tpu_custom_call.1} parent=1 // pred_fallthru
      _
    %4976 = vsyncpa [#allocation3], 1
    %4977 = vsyncpa [#allocation5], 1

</llo_original>
